<compile_context>
chip_gen: v6e
topology: v6e:2x2x1
jax: 0.10.0
libtpu: 0.0.40
codegen_flags: <defaults>
</compile_context>

<pallas_src>
import functools
import math

import jax
import jax.numpy as jnp
from jax import lax
from jax.experimental import pallas as pl
from jax.experimental.pallas import tpu as pltpu


LN_EPS = 1e-8  # LayerNormalization default eps in the reference module


def _layer_norm_f32(y, gamma, beta):
    mean = jnp.mean(y, axis=-1, keepdims=True)
    var = jnp.mean((y - mean) ** 2, axis=-1, keepdims=True)
    return gamma * ((y - mean) * lax.rsqrt(var + LN_EPS)) + beta


def _vmem_capacity_bytes():
    """Physical VMEM of the current TPU generation (conservative 64 MiB fallback)."""
    try:
        info = pltpu.get_tpu_info()
        for attr in ("vmem_capacity_bytes", "vmem_bytes", "vmem_size_bytes"):
            v = getattr(info, attr, None)
            if v:
                return int(v)
    except Exception:
        pass
    return 64 << 20  # v7x per-TensorCore VMEM (smallest of v5e/v6e/v7x)


def encoder_layer_kernel(
    x_ref,                        # (S, D)     input dtype (bf16 or f32)
    wqkv_ref,                     # (D, 3D)    dtype; q columns pre-scaled by 1/sqrt(hd)
    bqkv_ref,                     # (1, 3D)    f32;   q part pre-scaled
    wo_ref,                       # (D, D)     dtype
    bo_ref,                       # (1, D)     f32
    g1_ref, be1_ref,              # (1, D)     f32
    w1_ref, b1_ref,               # (D, F) dtype, (1, F) f32
    w2_ref, b2_ref,               # (F, D) dtype, (1, D) f32
    g2_ref, be2_ref,              # (1, D)     f32
    out_ref,                      # (S, D)     input dtype
    attn_ref,                     # (S, S)     input dtype (head-mean attention)
    vs_ref,                       # VMEM scratch (H*S, hd) f32, head-major value slab
    attn_acc_ref,                 # VMEM scratch (S, S)    f32, attention accumulator
    *, num_heads,
):
    dt = x_ref.dtype
    S, D = x_ref.shape
    H = num_heads
    hd = D // H

    x = x_ref[...]                             # narrow-dtype MXU operand
    x_f32 = x.astype(jnp.float32)              # residual / LayerNorm path in f32

    # Fused qkv projection: one full-width (S, D) @ (D, 3D) matmul, f32 accumulation.
    qkv = jnp.dot(x, wqkv_ref[...], preferred_element_type=jnp.float32) + bqkv_ref[...]

    attn_acc_ref[...] = jnp.zeros_like(attn_acc_ref)

    for h in range(H):                         # static unroll; cross-head state lives in refs
        base = 3 * hd * h                      # PyTorch column layout: per head [q | k | v]
        q = qkv[:, base:base + hd]             # already scaled by 1/sqrt(d_k)
        k = qkv[:, base + hd:base + 2 * hd]
        v = qkv[:, base + 2 * hd:base + 3 * hd]

        # scores = q_scaled @ k^T : contract the head dim directly (no transpose op).
        scores = lax.dot_general(
            q.astype(dt), k.astype(dt), (((1,), (1,)), ((), ())),
            preferred_element_type=jnp.float32)

        # Softmax over keys, f32; divide on the EUP via approximate reciprocal.
        scores = scores - jnp.max(scores, axis=-1, keepdims=True)
        p = jnp.exp(scores)
        p = p * pl.reciprocal(jnp.sum(p, axis=-1, keepdims=True), approx=True)

        attn_acc_ref[...] += p                 # VMEM accumulation, no live (S,S) value

        # Head-contiguous block store of this head's attention values.
        vs_ref[h * S:(h + 1) * S, :] = jnp.dot(
            p.astype(dt), v.astype(dt), preferred_element_type=jnp.float32)

    # attention output #2: mean over heads of the attention maps (dim=1 mean in PyTorch)
    attn_ref[...] = (attn_acc_ref[...] * (1.0 / H)).astype(attn_ref.dtype)

    # PyTorch head merge: values.reshape(B, S, H*hd) WITHOUT permuting heads back.
    # Merged row r = flat rows [r*H, r*H + H) of the head-major (H*S, hd) slab, so merged
    # column block c is the stride-H sublane slice of the scratch starting at row c.
    merged = jnp.concatenate(
        [vs_ref[pl.ds(c, S, stride=H), :] for c in range(H)], axis=-1).astype(dt)

    # Single full-width output projection (S, D) @ (D, D).
    attn_out = (jnp.dot(merged, wo_ref[...], preferred_element_type=jnp.float32)
                + bo_ref[...])

    # dropout (identity in eval) + residual + norm1
    h1 = _layer_norm_f32(attn_out + x_f32, g1_ref[...], be1_ref[...])

    # MLP: linear1(relu(h1)) -> dropout(identity) -> linear2(relu(.))
    a1 = jnp.maximum(h1, 0.0).astype(dt)
    m = jnp.dot(a1, w1_ref[...], preferred_element_type=jnp.float32) + b1_ref[...]
    a2 = jnp.maximum(m, 0.0).astype(dt)
    mlp_out = jnp.dot(a2, w2_ref[...], preferred_element_type=jnp.float32) + b2_ref[...]

    # dropout (identity in eval) + residual + norm2
    out = _layer_norm_f32(mlp_out + h1, g2_ref[...], be2_ref[...])
    out_ref[...] = out.astype(out_ref.dtype)


def encoder_layer_pallas(x, params, num_heads):
    """x: (batch, seq, d_model). Returns (layer_out, mean_attention)."""
    B, S, D = x.shape
    H = num_heads
    assert D % H == 0, "d_model must be divisible by num_heads (as in the PyTorch module)"
    hd = D // H
    F = params["w1"].shape[1]
    dt = x.dtype
    f32 = jnp.float32

    # ---------- host-side packing (no sel matrix, no per-head transposes) ------------
    # Fold 1/sqrt(d_k) into the q columns of the fused qkv weight + bias.  Column layout
    # matches PyTorch: per head, [q | k | v] blocks of hd each.
    inv_sqrt_dk = 1.0 / math.sqrt(hd)
    col = jnp.arange(3 * D)
    col_scale = jnp.where((col % (3 * hd)) < hd, inv_sqrt_dk, 1.0).astype(f32)
    wqkv = (params["w_qkv"].astype(f32) * col_scale[None, :]).astype(dt)   # (D, 3D)
    bqkv = (params["b_qkv"].astype(f32) * col_scale).reshape(1, 3 * D)     # (1, 3D) f32

    wo = params["w_o"].astype(dt)                       # (D, D)
    bo = params["b_o"].astype(f32).reshape(1, D)
    w1 = params["w1"].astype(dt)                        # (D, F)
    b1 = params["b1"].astype(f32).reshape(1, F)
    w2 = params["w2"].astype(dt)                        # (F, D)
    b2 = params["b2"].astype(f32).reshape(1, D)
    g1 = params["gamma1"].astype(f32).reshape(1, D)
    be1 = params["beta1"].astype(f32).reshape(1, D)
    g2 = params["gamma2"].astype(f32).reshape(1, D)
    be2 = params["beta2"].astype(f32).reshape(1, D)

    operands = (x, wqkv, bqkv, wo, bo, g1, be1, w1, b1, w2, b2, g2, be2)

    # ---------- cost estimate (gather term removed) -----------------------------------
    flops_per_batch = (
        2 * S * D * (3 * D)              # fused qkv projection
        + H * (2 * S * S * hd) * 2       # scores + attn @ v
        + 2 * S * D * D                  # output projection
        + 2 * S * D * F + 2 * S * F * D  # MLP
    )
    transcendentals = B * (H * S * S + H * S + 2 * S)   # exp + softmax rcp + 2 LN rsqrt
    out_bytes = B * S * D * x.dtype.itemsize + B * S * S * x.dtype.itemsize
    bytes_accessed = sum(int(a.size) * a.dtype.itemsize for a in operands) + out_bytes
    cost = pl.CostEstimate(flops=int(B * flops_per_batch),
                           transcendentals=int(transcendentals),
                           bytes_accessed=int(bytes_accessed))

    # ---------- generation-aware VMEM budget -------------------------------------------
    def padded(rows, cols, itemsize):   # crude VMEM-tile padding model
        return ((rows + 7) // 8) * 8 * max(cols, 128) * itemsize

    weight_bytes = sum(int(a.size) * a.dtype.itemsize for a in operands[1:])
    io_bytes = (padded(S, D, x.dtype.itemsize) * 2          # x tile + out tile
                + padded(S, S, x.dtype.itemsize))           # attn tile
    scratch_bytes = padded(H * S, hd, 4) + padded(S, S, 4)
    headroom = 1 << 20

    cap = _vmem_capacity_bytes()
    budget = int(cap * 0.78)   # ~100 MiB of v5e/v6e's 128 MiB, ~50 MiB of v7x's 64 MiB

    def vmem_needed(single_buffer_weights):
        wb = weight_bytes * (1 if single_buffer_weights else 2)
        return wb + 2 * io_bytes + scratch_bytes + headroom

    need1 = vmem_needed(True)
    if need1 > budget:
        raise ValueError(
            f"EncoderLayer kernel needs ~{need1 >> 20} MiB VMEM but only ~{budget >> 20} "
            f"MiB is available on this TPU generation; tile seq/d_model/num_ffn instead "
            f"of relying on whole-layer residency.")

    full2 = lambda b: (0, 0)
    seq_blk = lambda b: (b, 0, 0)

    def run(single_buffer_weights):
        if single_buffer_weights:
            cspec = lambda shape: pl.BlockSpec(shape, full2, pipeline_mode=pl.Buffered(1))
        else:
            cspec = lambda shape: pl.BlockSpec(shape, full2)
        need = vmem_needed(single_buffer_weights)
        vmem_limit = int(min(max(need, 16 << 20), budget))

        return pl.pallas_call(
            functools.partial(encoder_layer_kernel, num_heads=H),
            out_shape=(
                jax.ShapeDtypeStruct((B, S, D), dt),
                jax.ShapeDtypeStruct((B, S, S), dt),   # attention emitted in input dtype
            ),
            grid_spec=pltpu.PrefetchScalarGridSpec(
                num_scalar_prefetch=0,
                grid=(B,),                              # one full sequence per grid step
                in_specs=[
                    pl.BlockSpec((None, S, D), seq_blk),    # x
                    cspec((D, 3 * D)),                      # fused qkv weight
                    cspec((1, 3 * D)),                      # fused qkv bias
                    cspec((D, D)),                          # wo
                    cspec((1, D)),                          # bo
                    cspec((1, D)),                          # gamma1
                    cspec((1, D)),                          # beta1
                    cspec((D, F)),                          # w1
                    cspec((1, F)),                          # b1
                    cspec((F, D)),                          # w2
                    cspec((1, D)),                          # b2
                    cspec((1, D)),                          # gamma2
                    cspec((1, D)),                          # beta2
                ],
                out_specs=[
                    pl.BlockSpec((None, S, D), seq_blk),
                    pl.BlockSpec((None, S, S), seq_blk),
                ],
                scratch_shapes=[
                    pltpu.VMEM((H * S, hd), jnp.float32),   # head-major value slab
                    pltpu.VMEM((S, S), jnp.float32),        # attention accumulator
                ],
            ),
            compiler_params=pltpu.CompilerParams(
                dimension_semantics=("parallel",),          # batch grid -> megacore sharding
                vmem_limit_bytes=vmem_limit,
            ),
            cost_estimate=cost,
        )(*operands)

    try:
        return run(True)
    except Exception:
        if vmem_needed(False) > budget:
            raise
        # pl.Buffered(1) rejected by this jax/Mosaic version: fall back to the default
        # double-buffered weights (identical numerics, just higher VMEM residency).
        return run(False)


# ---------------------------- parameters / reference ------------------------------------

def init_encoder_params(key, d_model, num_heads, num_ffn):
    """nn.Linear-style init; weights stored already transposed as (in, out)."""
    ks = jax.random.split(key, 8)

    def linear(kw, kb, fan_in, fan_out):
        bound = 1.0 / math.sqrt(fan_in)
        w = jax.random.uniform(kw, (fan_in, fan_out), jnp.float32, -bound, bound)
        b = jax.random.uniform(kb, (fan_out,), jnp.float32, -bound, bound)
        return w, b

    w_qkv, b_qkv = linear(ks[0], ks[1], d_model, 3 * d_model)
    w_o, b_o = linear(ks[2], ks[3], d_model, d_model)
    w1, b1 = linear(ks[4], ks[5], d_model, num_ffn)
    w2, b2 = linear(ks[6], ks[7], num_ffn, d_model)
    return dict(
        w_qkv=w_qkv, b_qkv=b_qkv, w_o=w_o, b_o=b_o,
        gamma1=jnp.ones((d_model,), jnp.float32), beta1=jnp.zeros((d_model,), jnp.float32),
        w1=w1, b1=b1, w2=w2, b2=b2,
        gamma2=jnp.ones((d_model,), jnp.float32), beta2=jnp.zeros((d_model,), jnp.float32),
    )


_WEIGHT_KEYS = ("w_qkv", "w_o", "w1", "w2")


def cast_weights(params, dtype):
    """Round matmul weights to `dtype`; biases / LayerNorm params stay f32."""
    return {k: (v.astype(dtype) if k in _WEIGHT_KEYS else v) for k, v in params.items()}


def encoder_layer_reference(x, params, num_heads):
    """Pure-JAX f32 mirror of the PyTorch EncoderLayer.forward (eval mode)."""
    f32 = jnp.float32
    x = x.astype(f32)
    B, S, D = x.shape
    H = num_heads
    hd = D // H
    w_qkv, b_qkv = params["w_qkv"].astype(f32), params["b_qkv"].astype(f32)
    w_o, b_o = params["w_o"].astype(f32), params["b_o"].astype(f32)
    w1, b1 = params["w1"].astype(f32), params["b1"].astype(f32)
    w2, b2 = params["w2"].astype(f32), params["b2"].astype(f32)
    g1, be1 = params["gamma1"].astype(f32), params["beta1"].astype(f32)
    g2, be2 = params["gamma2"].astype(f32), params["beta2"].astype(f32)

    def layer_norm(y, gamma, beta):
        mean = y.mean(axis=-1, keepdims=True)
        var = ((y - mean) ** 2).mean(axis=-1, keepdims=True)
        return gamma * (y - mean) / jnp.sqrt(var + LN_EPS) + beta

    residual = x
    qkv = x @ w_qkv + b_qkv
    qkv = qkv.reshape(B, S, H, 3 * hd).transpose(0, 2, 1, 3)          # (B, H, S, 3hd)
    q, k, v = qkv[..., :hd], qkv[..., hd:2 * hd], qkv[..., 2 * hd:]
    scores = jnp.einsum("bhqd,bhkd->bhqk", q, k) / math.sqrt(hd)
    attn = jax.nn.softmax(scores, axis=-1)
    vals = jnp.einsum("bhqk,bhkd->bhqd", attn, v)                     # (B, H, S, hd)
    vals = vals.reshape(B, S, H * hd)   # faithful to source: reshape WITHOUT permuting back
    attn_mean = attn.mean(axis=1)
    attn_out = vals @ w_o + b_o
    h1 = layer_norm(attn_out + residual, g1, be1)     # dropout = identity in eval
    a1 = jnp.maximum(h1, 0.0)
    m = a1 @ w1 + b1
    a2 = jnp.maximum(m, 0.0)                          # dropout = identity in eval
    mlp_out = a2 @ w2 + b2
    out = layer_norm(mlp_out + h1, g2, be2)           # dropout = identity in eval
    return out, attn_mean


if __name__ == "__main__":
    d_model, num_heads, num_ffn = 32, 4, 64
    batch, seq = 2, 8

    key = jax.random.PRNGKey(0)
    kx, kp = jax.random.split(key)
    x_f32 = jax.random.normal(kx, (batch, seq, d_model), jnp.float32)
    params = init_encoder_params(kp, d_model, num_heads, num_ffn)

    # ---- f32 run: numerics check ----------------------------------------------------
    out32, attn32 = encoder_layer_pallas(x_f32, params, num_heads)
    out32 = jax.block_until_ready(out32)
    attn32 = jax.block_until_ready(attn32)
    ref32, refattn32 = encoder_layer_reference(x_f32, params, num_heads)
    assert out32.shape == (batch, seq, d_model) and attn32.shape == (batch, seq, seq)
    err_o32 = float(jnp.max(jnp.abs(out32.astype(jnp.float32) - ref32)))
    err_a32 = float(jnp.max(jnp.abs(attn32.astype(jnp.float32) - refattn32)))
    assert err_o32 < 5e-2, f"f32 output mismatch: {err_o32}"
    assert err_a32 < 2e-2, f"f32 attention mismatch: {err_a32}"

    # ---- bf16 run: fast MXU path (bf16 operands, f32 accumulation) -------------------
    params_bf16 = cast_weights(params, jnp.bfloat16)
    x_bf16 = x_f32.astype(jnp.bfloat16)
    out16, attn16 = encoder_layer_pallas(x_bf16, params_bf16, num_heads)
    out16 = jax.block_until_ready(out16)
    attn16 = jax.block_until_ready(attn16)
    ref16, refattn16 = encoder_layer_reference(x_bf16, params_bf16, num_heads)
    err_o16 = float(jnp.max(jnp.abs(out16.astype(jnp.float32) - ref16)))
    err_a16 = float(jnp.max(jnp.abs(attn16.astype(jnp.float32) - refattn16)))
    assert err_o16 < 2.5e-1, f"bf16 output mismatch: {err_o16}"
    assert err_a16 < 7.5e-2, f"bf16 attention mismatch: {err_a16}"

    print("KERNEL_OK")
</pallas_src>

<mosaic_0001>
module attributes {stable_mosaic.version = 11 : i64} {
  func.func @encoder_layer_kernel(%arg0: i32, %arg1: memref<1x8x32xf32, #tpu.memory_space<vmem>>, %arg2: memref<32x96xf32, #tpu.memory_space<vmem>>, %arg3: memref<1x96xf32, #tpu.memory_space<vmem>>, %arg4: memref<32x32xf32, #tpu.memory_space<vmem>>, %arg5: memref<1x32xf32, #tpu.memory_space<vmem>>, %arg6: memref<1x32xf32, #tpu.memory_space<vmem>>, %arg7: memref<1x32xf32, #tpu.memory_space<vmem>>, %arg8: memref<32x64xf32, #tpu.memory_space<vmem>>, %arg9: memref<1x64xf32, #tpu.memory_space<vmem>>, %arg10: memref<64x32xf32, #tpu.memory_space<vmem>>, %arg11: memref<1x32xf32, #tpu.memory_space<vmem>>, %arg12: memref<1x32xf32, #tpu.memory_space<vmem>>, %arg13: memref<1x32xf32, #tpu.memory_space<vmem>>, %arg14: memref<1x8x32xf32, #tpu.memory_space<vmem>>, %arg15: memref<1x8x8xf32, #tpu.memory_space<vmem>>, %arg16: memref<32x8xf32, #tpu.memory_space<vmem>>, %arg17: memref<8x8xf32, #tpu.memory_space<vmem>>) attributes {dimension_semantics = [#tpu.dimension_semantics<parallel>], iteration_bounds = array<i64: 2>, scalar_prefetch = 0 : i64, scratch_operands = 2 : i64, tpu.core_type = #tpu.core_type<tc>, window_params = [{transform_indices = @transform_0, window_bounds = array<i64: 1, 8, 32>}, {pipeline_mode = #tpu.pipeline_mode<synchronous>, transform_indices = @transform_1, window_bounds = array<i64: 32, 96>}, {pipeline_mode = #tpu.pipeline_mode<synchronous>, transform_indices = @transform_2, window_bounds = array<i64: 1, 96>}, {pipeline_mode = #tpu.pipeline_mode<synchronous>, transform_indices = @transform_3, window_bounds = array<i64: 32, 32>}, {pipeline_mode = #tpu.pipeline_mode<synchronous>, transform_indices = @transform_4, window_bounds = array<i64: 1, 32>}, {pipeline_mode = #tpu.pipeline_mode<synchronous>, transform_indices = @transform_5, window_bounds = array<i64: 1, 32>}, {pipeline_mode = #tpu.pipeline_mode<synchronous>, transform_indices = @transform_6, window_bounds = array<i64: 1, 32>}, {pipeline_mode = #tpu.pipeline_mode<synchronous>, transform_indices = @transform_7, window_bounds = array<i64: 32, 64>}, {pipeline_mode = #tpu.pipeline_mode<synchronous>, transform_indices = @transform_8, window_bounds = array<i64: 1, 64>}, {pipeline_mode = #tpu.pipeline_mode<synchronous>, transform_indices = @transform_9, window_bounds = array<i64: 64, 32>}, {pipeline_mode = #tpu.pipeline_mode<synchronous>, transform_indices = @transform_10, window_bounds = array<i64: 1, 32>}, {pipeline_mode = #tpu.pipeline_mode<synchronous>, transform_indices = @transform_11, window_bounds = array<i64: 1, 32>}, {pipeline_mode = #tpu.pipeline_mode<synchronous>, transform_indices = @transform_12, window_bounds = array<i64: 1, 32>}, {transform_indices = @transform_13, window_bounds = array<i64: 1, 8, 32>}, {transform_indices = @transform_14, window_bounds = array<i64: 1, 8, 8>}]} {
    %c0 = arith.constant 0 : index
    %c0_0 = arith.constant 0 : index
    %c0_1 = arith.constant 0 : index
    %0 = vector.load %arg1[%c0, %c0_0, %c0_1] : memref<1x8x32xf32, #tpu.memory_space<vmem>>, vector<1x8x32xf32>
    %1 = vector.shape_cast %0 : vector<1x8x32xf32> to vector<8x32xf32>
    %c0_2 = arith.constant 0 : index
    %c0_3 = arith.constant 0 : index
    %2 = vector.load %arg2[%c0_2, %c0_3] : memref<32x96xf32, #tpu.memory_space<vmem>>, vector<32x96xf32>
    %cst = arith.constant dense<0.000000e+00> : vector<8x96xf32>
    %3 = tpu.matmul %1, %2, %cst {dimension_numbers = #tpu.dot_dimension_numbers<[1], [0], [0], [1], [0, 0, 1, 1], [], []>} : vector<8x32xf32>, vector<32x96xf32>, vector<8x96xf32> -> vector<8x96xf32>
    %c0_4 = arith.constant 0 : index
    %c0_5 = arith.constant 0 : index
    %4 = vector.load %arg3[%c0_4, %c0_5] : memref<1x96xf32, #tpu.memory_space<vmem>>, vector<1x96xf32>
    %5 = vector.broadcast %4 : vector<1x96xf32> to vector<8x96xf32>
    %6 = arith.addf %3, %5 : vector<8x96xf32>
    %cst_6 = arith.constant 0.000000e+00 : f32
    %7 = vector.broadcast %cst_6 : f32 to vector<8x8xf32>
    %c0_7 = arith.constant 0 : index
    %c0_8 = arith.constant 0 : index
    %8 = vector.load %arg17[%c0_7, %c0_8] : memref<8x8xf32, #tpu.memory_space<vmem>>, vector<8x8xf32>
    tpu.vector_store %arg17[%c0_7, %c0_8], %7 {strides = array<i32>} : memref<8x8xf32, #tpu.memory_space<vmem>>, vector<8x8xf32>,
    %9 = vector.extract_strided_slice %6 {offsets = [0, 0], sizes = [8, 8], strides = [1, 1]} : vector<8x96xf32> to vector<8x8xf32>
    %10 = vector.extract_strided_slice %6 {offsets = [0, 8], sizes = [8, 8], strides = [1, 1]} : vector<8x96xf32> to vector<8x8xf32>
    %11 = vector.extract_strided_slice %6 {offsets = [0, 16], sizes = [8, 8], strides = [1, 1]} : vector<8x96xf32> to vector<8x8xf32>
    %cst_9 = arith.constant dense<0.000000e+00> : vector<8x8xf32>
    %12 = tpu.matmul %9, %10, %cst_9 {dimension_numbers = #tpu.dot_dimension_numbers<[1], [1], [0], [0], [0, 0, 1, 0], [], []>} : vector<8x8xf32>, vector<8x8xf32>, vector<8x8xf32> -> vector<8x8xf32>
    %cst_10 = arith.constant dense<0xFF800000> : vector<8xf32>
    %13 = vector.multi_reduction <maximumf>, %12, %cst_10 [1] : vector<8x8xf32> to vector<8xf32>
    %14 = vector.shape_cast %13 : vector<8xf32> to vector<8x1xf32>
    %15 = vector.broadcast %14 : vector<8x1xf32> to vector<8x8xf32>
    %16 = arith.subf %12, %15 : vector<8x8xf32>
    %17 = math.exp %16 : vector<8x8xf32>
    %cst_11 = arith.constant dense<0.000000e+00> : vector<8xf32>
    %18 = vector.multi_reduction <add>, %17, %cst_11 [1] : vector<8x8xf32> to vector<8xf32>
    %19 = vector.shape_cast %18 : vector<8xf32> to vector<8x1xf32>
    %20 = tpu.reciprocal %19 {approx = true} : vector<8x1xf32> -> vector<8x1xf32>
    %21 = vector.broadcast %20 : vector<8x1xf32> to vector<8x8xf32>
    %22 = arith.mulf %17, %21 : vector<8x8xf32>
    %c0_12 = arith.constant 0 : index
    %c0_13 = arith.constant 0 : index
    %23 = vector.load %arg17[%c0_12, %c0_13] : memref<8x8xf32, #tpu.memory_space<vmem>>, vector<8x8xf32>
    %24 = arith.addf %23, %22 : vector<8x8xf32>
    %c0_14 = arith.constant 0 : index
    %c0_15 = arith.constant 0 : index
    %25 = vector.load %arg17[%c0_14, %c0_15] : memref<8x8xf32, #tpu.memory_space<vmem>>, vector<8x8xf32>
    tpu.vector_store %arg17[%c0_14, %c0_15], %24 {strides = array<i32>} : memref<8x8xf32, #tpu.memory_space<vmem>>, vector<8x8xf32>,
    %cst_16 = arith.constant dense<0.000000e+00> : vector<8x8xf32>
    %26 = tpu.matmul %22, %11, %cst_16 {dimension_numbers = #tpu.dot_dimension_numbers<[1], [0], [0], [1], [0, 0, 1, 1], [], []>} : vector<8x8xf32>, vector<8x8xf32>, vector<8x8xf32> -> vector<8x8xf32>
    %c0_17 = arith.constant 0 : index
    %c0_18 = arith.constant 0 : index
    %27 = vector.load %arg16[%c0_17, %c0_18] : memref<32x8xf32, #tpu.memory_space<vmem>>, vector<8x8xf32>
    tpu.vector_store %arg16[%c0_17, %c0_18], %26 {strides = array<i32>} : memref<32x8xf32, #tpu.memory_space<vmem>>, vector<8x8xf32>,
    %28 = vector.extract_strided_slice %6 {offsets = [0, 24], sizes = [8, 8], strides = [1, 1]} : vector<8x96xf32> to vector<8x8xf32>
    %29 = vector.extract_strided_slice %6 {offsets = [0, 32], sizes = [8, 8], strides = [1, 1]} : vector<8x96xf32> to vector<8x8xf32>
    %30 = vector.extract_strided_slice %6 {offsets = [0, 40], sizes = [8, 8], strides = [1, 1]} : vector<8x96xf32> to vector<8x8xf32>
    %cst_19 = arith.constant dense<0.000000e+00> : vector<8x8xf32>
    %31 = tpu.matmul %28, %29, %cst_19 {dimension_numbers = #tpu.dot_dimension_numbers<[1], [1], [0], [0], [0, 0, 1, 0], [], []>} : vector<8x8xf32>, vector<8x8xf32>, vector<8x8xf32> -> vector<8x8xf32>
    %cst_20 = arith.constant dense<0xFF800000> : vector<8xf32>
    %32 = vector.multi_reduction <maximumf>, %31, %cst_20 [1] : vector<8x8xf32> to vector<8xf32>
    %33 = vector.shape_cast %32 : vector<8xf32> to vector<8x1xf32>
    %34 = vector.broadcast %33 : vector<8x1xf32> to vector<8x8xf32>
    %35 = arith.subf %31, %34 : vector<8x8xf32>
    %36 = math.exp %35 : vector<8x8xf32>
    %cst_21 = arith.constant dense<0.000000e+00> : vector<8xf32>
    %37 = vector.multi_reduction <add>, %36, %cst_21 [1] : vector<8x8xf32> to vector<8xf32>
    %38 = vector.shape_cast %37 : vector<8xf32> to vector<8x1xf32>
    %39 = tpu.reciprocal %38 {approx = true} : vector<8x1xf32> -> vector<8x1xf32>
    %40 = vector.broadcast %39 : vector<8x1xf32> to vector<8x8xf32>
    %41 = arith.mulf %36, %40 : vector<8x8xf32>
    %c0_22 = arith.constant 0 : index
    %c0_23 = arith.constant 0 : index
    %42 = vector.load %arg17[%c0_22, %c0_23] : memref<8x8xf32, #tpu.memory_space<vmem>>, vector<8x8xf32>
    %43 = arith.addf %42, %41 : vector<8x8xf32>
    %c0_24 = arith.constant 0 : index
    %c0_25 = arith.constant 0 : index
    %44 = vector.load %arg17[%c0_24, %c0_25] : memref<8x8xf32, #tpu.memory_space<vmem>>, vector<8x8xf32>
    tpu.vector_store %arg17[%c0_24, %c0_25], %43 {strides = array<i32>} : memref<8x8xf32, #tpu.memory_space<vmem>>, vector<8x8xf32>,
    %cst_26 = arith.constant dense<0.000000e+00> : vector<8x8xf32>
    %45 = tpu.matmul %41, %30, %cst_26 {dimension_numbers = #tpu.dot_dimension_numbers<[1], [0], [0], [1], [0, 0, 1, 1], [], []>} : vector<8x8xf32>, vector<8x8xf32>, vector<8x8xf32> -> vector<8x8xf32>
    %c8 = arith.constant 8 : index
    %c0_27 = arith.constant 0 : index
    %46 = vector.load %arg16[%c8, %c0_27] : memref<32x8xf32, #tpu.memory_space<vmem>>, vector<8x8xf32>
    tpu.vector_store %arg16[%c8, %c0_27], %45 {strides = array<i32>} : memref<32x8xf32, #tpu.memory_space<vmem>>, vector<8x8xf32>,
    %47 = vector.extract_strided_slice %6 {offsets = [0, 48], sizes = [8, 8], strides = [1, 1]} : vector<8x96xf32> to vector<8x8xf32>
    %48 = vector.extract_strided_slice %6 {offsets = [0, 56], sizes = [8, 8], strides = [1, 1]} : vector<8x96xf32> to vector<8x8xf32>
    %49 = vector.extract_strided_slice %6 {offsets = [0, 64], sizes = [8, 8], strides = [1, 1]} : vector<8x96xf32> to vector<8x8xf32>
    %cst_28 = arith.constant dense<0.000000e+00> : vector<8x8xf32>
    %50 = tpu.matmul %47, %48, %cst_28 {dimension_numbers = #tpu.dot_dimension_numbers<[1], [1], [0], [0], [0, 0, 1, 0], [], []>} : vector<8x8xf32>, vector<8x8xf32>, vector<8x8xf32> -> vector<8x8xf32>
    %cst_29 = arith.constant dense<0xFF800000> : vector<8xf32>
    %51 = vector.multi_reduction <maximumf>, %50, %cst_29 [1] : vector<8x8xf32> to vector<8xf32>
    %52 = vector.shape_cast %51 : vector<8xf32> to vector<8x1xf32>
    %53 = vector.broadcast %52 : vector<8x1xf32> to vector<8x8xf32>
    %54 = arith.subf %50, %53 : vector<8x8xf32>
    %55 = math.exp %54 : vector<8x8xf32>
    %cst_30 = arith.constant dense<0.000000e+00> : vector<8xf32>
    %56 = vector.multi_reduction <add>, %55, %cst_30 [1] : vector<8x8xf32> to vector<8xf32>
    %57 = vector.shape_cast %56 : vector<8xf32> to vector<8x1xf32>
    %58 = tpu.reciprocal %57 {approx = true} : vector<8x1xf32> -> vector<8x1xf32>
    %59 = vector.broadcast %58 : vector<8x1xf32> to vector<8x8xf32>
    %60 = arith.mulf %55, %59 : vector<8x8xf32>
    %c0_31 = arith.constant 0 : index
    %c0_32 = arith.constant 0 : index
    %61 = vector.load %arg17[%c0_31, %c0_32] : memref<8x8xf32, #tpu.memory_space<vmem>>, vector<8x8xf32>
    %62 = arith.addf %61, %60 : vector<8x8xf32>
    %c0_33 = arith.constant 0 : index
    %c0_34 = arith.constant 0 : index
    %63 = vector.load %arg17[%c0_33, %c0_34] : memref<8x8xf32, #tpu.memory_space<vmem>>, vector<8x8xf32>
    tpu.vector_store %arg17[%c0_33, %c0_34], %62 {strides = array<i32>} : memref<8x8xf32, #tpu.memory_space<vmem>>, vector<8x8xf32>,
    %cst_35 = arith.constant dense<0.000000e+00> : vector<8x8xf32>
    %64 = tpu.matmul %60, %49, %cst_35 {dimension_numbers = #tpu.dot_dimension_numbers<[1], [0], [0], [1], [0, 0, 1, 1], [], []>} : vector<8x8xf32>, vector<8x8xf32>, vector<8x8xf32> -> vector<8x8xf32>
    %c16 = arith.constant 16 : index
    %c0_36 = arith.constant 0 : index
    %65 = vector.load %arg16[%c16, %c0_36] : memref<32x8xf32, #tpu.memory_space<vmem>>, vector<8x8xf32>
    tpu.vector_store %arg16[%c16, %c0_36], %64 {strides = array<i32>} : memref<32x8xf32, #tpu.memory_space<vmem>>, vector<8x8xf32>,
    %66 = vector.extract_strided_slice %6 {offsets = [0, 72], sizes = [8, 8], strides = [1, 1]} : vector<8x96xf32> to vector<8x8xf32>
    %67 = vector.extract_strided_slice %6 {offsets = [0, 80], sizes = [8, 8], strides = [1, 1]} : vector<8x96xf32> to vector<8x8xf32>
    %68 = vector.extract_strided_slice %6 {offsets = [0, 88], sizes = [8, 8], strides = [1, 1]} : vector<8x96xf32> to vector<8x8xf32>
    %cst_37 = arith.constant dense<0.000000e+00> : vector<8x8xf32>
    %69 = tpu.matmul %66, %67, %cst_37 {dimension_numbers = #tpu.dot_dimension_numbers<[1], [1], [0], [0], [0, 0, 1, 0], [], []>} : vector<8x8xf32>, vector<8x8xf32>, vector<8x8xf32> -> vector<8x8xf32>
    %cst_38 = arith.constant dense<0xFF800000> : vector<8xf32>
    %70 = vector.multi_reduction <maximumf>, %69, %cst_38 [1] : vector<8x8xf32> to vector<8xf32>
    %71 = vector.shape_cast %70 : vector<8xf32> to vector<8x1xf32>
    %72 = vector.broadcast %71 : vector<8x1xf32> to vector<8x8xf32>
    %73 = arith.subf %69, %72 : vector<8x8xf32>
    %74 = math.exp %73 : vector<8x8xf32>
    %cst_39 = arith.constant dense<0.000000e+00> : vector<8xf32>
    %75 = vector.multi_reduction <add>, %74, %cst_39 [1] : vector<8x8xf32> to vector<8xf32>
    %76 = vector.shape_cast %75 : vector<8xf32> to vector<8x1xf32>
    %77 = tpu.reciprocal %76 {approx = true} : vector<8x1xf32> -> vector<8x1xf32>
    %78 = vector.broadcast %77 : vector<8x1xf32> to vector<8x8xf32>
    %79 = arith.mulf %74, %78 : vector<8x8xf32>
    %c0_40 = arith.constant 0 : index
    %c0_41 = arith.constant 0 : index
    %80 = vector.load %arg17[%c0_40, %c0_41] : memref<8x8xf32, #tpu.memory_space<vmem>>, vector<8x8xf32>
    %81 = arith.addf %80, %79 : vector<8x8xf32>
    %c0_42 = arith.constant 0 : index
    %c0_43 = arith.constant 0 : index
    %82 = vector.load %arg17[%c0_42, %c0_43] : memref<8x8xf32, #tpu.memory_space<vmem>>, vector<8x8xf32>
    tpu.vector_store %arg17[%c0_42, %c0_43], %81 {strides = array<i32>} : memref<8x8xf32, #tpu.memory_space<vmem>>, vector<8x8xf32>,
    %cst_44 = arith.constant dense<0.000000e+00> : vector<8x8xf32>
    %83 = tpu.matmul %79, %68, %cst_44 {dimension_numbers = #tpu.dot_dimension_numbers<[1], [0], [0], [1], [0, 0, 1, 1], [], []>} : vector<8x8xf32>, vector<8x8xf32>, vector<8x8xf32> -> vector<8x8xf32>
    %c24 = arith.constant 24 : index
    %c0_45 = arith.constant 0 : index
    %84 = vector.load %arg16[%c24, %c0_45] : memref<32x8xf32, #tpu.memory_space<vmem>>, vector<8x8xf32>
    tpu.vector_store %arg16[%c24, %c0_45], %83 {strides = array<i32>} : memref<32x8xf32, #tpu.memory_space<vmem>>, vector<8x8xf32>,
    %c0_46 = arith.constant 0 : index
    %c0_47 = arith.constant 0 : index
    %85 = vector.load %arg17[%c0_46, %c0_47] : memref<8x8xf32, #tpu.memory_space<vmem>>, vector<8x8xf32>
    %cst_48 = arith.constant 2.500000e-01 : f32
    %86 = vector.broadcast %cst_48 : f32 to vector<8x8xf32>
    %87 = arith.mulf %85, %86 : vector<8x8xf32>
    %c0_49 = arith.constant 0 : index
    %c0_50 = arith.constant 0 : index
    %c0_51 = arith.constant 0 : index
    %88 = vector.load %arg15[%c0_49, %c0_50, %c0_51] : memref<1x8x8xf32, #tpu.memory_space<vmem>>, vector<1x8x8xf32>
    %89 = vector.shape_cast %88 : vector<1x8x8xf32> to vector<8x8xf32>
    %90 = vector.shape_cast %87 : vector<8x8xf32> to vector<1x8x8xf32>
    tpu.vector_store %arg15[%c0_49, %c0_50, %c0_51], %90 {strides = array<i32>} : memref<1x8x8xf32, #tpu.memory_space<vmem>>, vector<1x8x8xf32>,
    %c0_52 = arith.constant 0 : index
    %c0_53 = arith.constant 0 : index
    %91 = tpu.strided_load %arg16[%c0_52, %c0_53] {strides = array<i32: 4, 1>} : memref<32x8xf32, #tpu.memory_space<vmem>>, vector<8x8xf32>
    %c1 = arith.constant 1 : index
    %c0_54 = arith.constant 0 : index
    %92 = tpu.strided_load %arg16[%c1, %c0_54] {strides = array<i32: 4, 1>} : memref<32x8xf32, #tpu.memory_space<vmem>>, vector<8x8xf32>
    %c2 = arith.constant 2 : index
    %c0_55 = arith.constant 0 : index
    %93 = tpu.strided_load %arg16[%c2, %c0_55] {strides = array<i32: 4, 1>} : memref<32x8xf32, #tpu.memory_space<vmem>>, vector<8x8xf32>
    %c3 = arith.constant 3 : index
    %c0_56 = arith.constant 0 : index
    %94 = tpu.strided_load %arg16[%c3, %c0_56] {strides = array<i32: 4, 1>} : memref<32x8xf32, #tpu.memory_space<vmem>>, vector<8x8xf32>
    %95 = tpu.concatenate %91, %92, %93, %94 in 1 : vector<8x8xf32>, vector<8x8xf32>, vector<8x8xf32>, vector<8x8xf32> -> vector<8x32xf32>
    %c0_57 = arith.constant 0 : index
    %c0_58 = arith.constant 0 : index
    %96 = vector.load %arg4[%c0_57, %c0_58] : memref<32x32xf32, #tpu.memory_space<vmem>>, vector<32x32xf32>
    %cst_59 = arith.constant dense<0.000000e+00> : vector<8x32xf32>
    %97 = tpu.matmul %95, %96, %cst_59 {dimension_numbers = #tpu.dot_dimension_numbers<[1], [0], [0], [1], [0, 0, 1, 1], [], []>} : vector<8x32xf32>, vector<32x32xf32>, vector<8x32xf32> -> vector<8x32xf32>
    %c0_60 = arith.constant 0 : index
    %c0_61 = arith.constant 0 : index
    %98 = vector.load %arg5[%c0_60, %c0_61] : memref<1x32xf32, #tpu.memory_space<vmem>>, vector<1x32xf32>
    %99 = vector.broadcast %98 : vector<1x32xf32> to vector<8x32xf32>
    %100 = arith.addf %97, %99 : vector<8x32xf32>
    %101 = arith.addf %100, %1 : vector<8x32xf32>
    %c0_62 = arith.constant 0 : index
    %c0_63 = arith.constant 0 : index
    %102 = vector.load %arg6[%c0_62, %c0_63] : memref<1x32xf32, #tpu.memory_space<vmem>>, vector<1x32xf32>
    %c0_64 = arith.constant 0 : index
    %c0_65 = arith.constant 0 : index
    %103 = vector.load %arg7[%c0_64, %c0_65] : memref<1x32xf32, #tpu.memory_space<vmem>>, vector<1x32xf32>
    %cst_66 = arith.constant dense<0.000000e+00> : vector<8xf32>
    %104 = vector.multi_reduction <add>, %101, %cst_66 [1] : vector<8x32xf32> to vector<8xf32>
    %105 = vector.shape_cast %104 : vector<8xf32> to vector<8x1xf32>
    %cst_67 = arith.constant 3.200000e+01 : f32
    %106 = vector.broadcast %cst_67 : f32 to vector<8x1xf32>
    %107 = arith.divf %105, %106 : vector<8x1xf32>
    %108 = vector.broadcast %107 : vector<8x1xf32> to vector<8x32xf32>
    %109 = arith.subf %101, %108 : vector<8x32xf32>
    %110 = arith.mulf %109, %109 : vector<8x32xf32>
    %cst_68 = arith.constant dense<0.000000e+00> : vector<8xf32>
    %111 = vector.multi_reduction <add>, %110, %cst_68 [1] : vector<8x32xf32> to vector<8xf32>
    %112 = vector.shape_cast %111 : vector<8xf32> to vector<8x1xf32>
    %cst_69 = arith.constant 3.200000e+01 : f32
    %113 = vector.broadcast %cst_69 : f32 to vector<8x1xf32>
    %114 = arith.divf %112, %113 : vector<8x1xf32>
    %115 = vector.broadcast %107 : vector<8x1xf32> to vector<8x32xf32>
    %116 = arith.subf %101, %115 : vector<8x32xf32>
    %cst_70 = arith.constant 9.99999993E-9 : f32
    %117 = vector.broadcast %cst_70 : f32 to vector<8x1xf32>
    %118 = arith.addf %114, %117 : vector<8x1xf32>
    %119 = math.rsqrt %118 : vector<8x1xf32>
    %120 = vector.broadcast %119 : vector<8x1xf32> to vector<8x32xf32>
    %121 = arith.mulf %116, %120 : vector<8x32xf32>
    %122 = vector.broadcast %102 : vector<1x32xf32> to vector<8x32xf32>
    %123 = arith.mulf %122, %121 : vector<8x32xf32>
    %124 = vector.broadcast %103 : vector<1x32xf32> to vector<8x32xf32>
    %125 = arith.addf %123, %124 : vector<8x32xf32>
    %cst_71 = arith.constant 0.000000e+00 : f32
    %126 = vector.broadcast %cst_71 : f32 to vector<8x32xf32>
    %127 = arith.maximumf %125, %126 : vector<8x32xf32>
    %c0_72 = arith.constant 0 : index
    %c0_73 = arith.constant 0 : index
    %128 = vector.load %arg8[%c0_72, %c0_73] : memref<32x64xf32, #tpu.memory_space<vmem>>, vector<32x64xf32>
    %cst_74 = arith.constant dense<0.000000e+00> : vector<8x64xf32>
    %129 = tpu.matmul %127, %128, %cst_74 {dimension_numbers = #tpu.dot_dimension_numbers<[1], [0], [0], [1], [0, 0, 1, 1], [], []>} : vector<8x32xf32>, vector<32x64xf32>, vector<8x64xf32> -> vector<8x64xf32>
    %c0_75 = arith.constant 0 : index
    %c0_76 = arith.constant 0 : index
    %130 = vector.load %arg9[%c0_75, %c0_76] : memref<1x64xf32, #tpu.memory_space<vmem>>, vector<1x64xf32>
    %131 = vector.broadcast %130 : vector<1x64xf32> to vector<8x64xf32>
    %132 = arith.addf %129, %131 : vector<8x64xf32>
    %cst_77 = arith.constant 0.000000e+00 : f32
    %133 = vector.broadcast %cst_77 : f32 to vector<8x64xf32>
    %134 = arith.maximumf %132, %133 : vector<8x64xf32>
    %c0_78 = arith.constant 0 : index
    %c0_79 = arith.constant 0 : index
    %135 = vector.load %arg10[%c0_78, %c0_79] : memref<64x32xf32, #tpu.memory_space<vmem>>, vector<64x32xf32>
    %cst_80 = arith.constant dense<0.000000e+00> : vector<8x32xf32>
    %136 = tpu.matmul %134, %135, %cst_80 {dimension_numbers = #tpu.dot_dimension_numbers<[1], [0], [0], [1], [0, 0, 1, 1], [], []>} : vector<8x64xf32>, vector<64x32xf32>, vector<8x32xf32> -> vector<8x32xf32>
    %c0_81 = arith.constant 0 : index
    %c0_82 = arith.constant 0 : index
    %137 = vector.load %arg11[%c0_81, %c0_82] : memref<1x32xf32, #tpu.memory_space<vmem>>, vector<1x32xf32>
    %138 = vector.broadcast %137 : vector<1x32xf32> to vector<8x32xf32>
    %139 = arith.addf %136, %138 : vector<8x32xf32>
    %140 = arith.addf %139, %125 : vector<8x32xf32>
    %c0_83 = arith.constant 0 : index
    %c0_84 = arith.constant 0 : index
    %141 = vector.load %arg12[%c0_83, %c0_84] : memref<1x32xf32, #tpu.memory_space<vmem>>, vector<1x32xf32>
    %c0_85 = arith.constant 0 : index
    %c0_86 = arith.constant 0 : index
    %142 = vector.load %arg13[%c0_85, %c0_86] : memref<1x32xf32, #tpu.memory_space<vmem>>, vector<1x32xf32>
    %cst_87 = arith.constant dense<0.000000e+00> : vector<8xf32>
    %143 = vector.multi_reduction <add>, %140, %cst_87 [1] : vector<8x32xf32> to vector<8xf32>
    %144 = vector.shape_cast %143 : vector<8xf32> to vector<8x1xf32>
    %cst_88 = arith.constant 3.200000e+01 : f32
    %145 = vector.broadcast %cst_88 : f32 to vector<8x1xf32>
    %146 = arith.divf %144, %145 : vector<8x1xf32>
    %147 = vector.broadcast %146 : vector<8x1xf32> to vector<8x32xf32>
    %148 = arith.subf %140, %147 : vector<8x32xf32>
    %149 = arith.mulf %148, %148 : vector<8x32xf32>
    %cst_89 = arith.constant dense<0.000000e+00> : vector<8xf32>
    %150 = vector.multi_reduction <add>, %149, %cst_89 [1] : vector<8x32xf32> to vector<8xf32>
    %151 = vector.shape_cast %150 : vector<8xf32> to vector<8x1xf32>
    %cst_90 = arith.constant 3.200000e+01 : f32
    %152 = vector.broadcast %cst_90 : f32 to vector<8x1xf32>
    %153 = arith.divf %151, %152 : vector<8x1xf32>
    %154 = vector.broadcast %146 : vector<8x1xf32> to vector<8x32xf32>
    %155 = arith.subf %140, %154 : vector<8x32xf32>
    %cst_91 = arith.constant 9.99999993E-9 : f32
    %156 = vector.broadcast %cst_91 : f32 to vector<8x1xf32>
    %157 = arith.addf %153, %156 : vector<8x1xf32>
    %158 = math.rsqrt %157 : vector<8x1xf32>
    %159 = vector.broadcast %158 : vector<8x1xf32> to vector<8x32xf32>
    %160 = arith.mulf %155, %159 : vector<8x32xf32>
    %161 = vector.broadcast %141 : vector<1x32xf32> to vector<8x32xf32>
    %162 = arith.mulf %161, %160 : vector<8x32xf32>
    %163 = vector.broadcast %142 : vector<1x32xf32> to vector<8x32xf32>
    %164 = arith.addf %162, %163 : vector<8x32xf32>
    %c0_92 = arith.constant 0 : index
    %c0_93 = arith.constant 0 : index
    %c0_94 = arith.constant 0 : index
    %165 = vector.load %arg14[%c0_92, %c0_93, %c0_94] : memref<1x8x32xf32, #tpu.memory_space<vmem>>, vector<1x8x32xf32>
    %166 = vector.shape_cast %165 : vector<1x8x32xf32> to vector<8x32xf32>
    %167 = vector.shape_cast %164 : vector<8x32xf32> to vector<1x8x32xf32>
    tpu.vector_store %arg14[%c0_92, %c0_93, %c0_94], %167 {strides = array<i32>} : memref<1x8x32xf32, #tpu.memory_space<vmem>>, vector<1x8x32xf32>,
    return
  }
  func.func @transform_0(%arg0: i32) -> (i32, i32, i32) {
    %c0_i32 = arith.constant 0 : i32
    %c0_i32_0 = arith.constant 0 : i32
    %c0_i32_1 = arith.constant 0 : i32
    return %arg0, %c0_i32, %c0_i32_0 : i32, i32, i32
  }
  func.func @transform_1(%arg0: i32) -> (i32, i32) {
    %c0_i32 = arith.constant 0 : i32
    %c0_i32_0 = arith.constant 0 : i32
    %c0_i32_1 = arith.constant 0 : i32
    return %c0_i32, %c0_i32_0 : i32, i32
  }
  func.func @transform_2(%arg0: i32) -> (i32, i32) {
    %c0_i32 = arith.constant 0 : i32
    %c0_i32_0 = arith.constant 0 : i32
    %c0_i32_1 = arith.constant 0 : i32
    return %c0_i32, %c0_i32_0 : i32, i32
  }
  func.func @transform_3(%arg0: i32) -> (i32, i32) {
    %c0_i32 = arith.constant 0 : i32
    %c0_i32_0 = arith.constant 0 : i32
    %c0_i32_1 = arith.constant 0 : i32
    return %c0_i32, %c0_i32_0 : i32, i32
  }
  func.func @transform_4(%arg0: i32) -> (i32, i32) {
    %c0_i32 = arith.constant 0 : i32
    %c0_i32_0 = arith.constant 0 : i32
    %c0_i32_1 = arith.constant 0 : i32
    return %c0_i32, %c0_i32_0 : i32, i32
  }
  func.func @transform_5(%arg0: i32) -> (i32, i32) {
    %c0_i32 = arith.constant 0 : i32
    %c0_i32_0 = arith.constant 0 : i32
    %c0_i32_1 = arith.constant 0 : i32
    return %c0_i32, %c0_i32_0 : i32, i32
  }
  func.func @transform_6(%arg0: i32) -> (i32, i32) {
    %c0_i32 = arith.constant 0 : i32
    %c0_i32_0 = arith.constant 0 : i32
    %c0_i32_1 = arith.constant 0 : i32
    return %c0_i32, %c0_i32_0 : i32, i32
  }
  func.func @transform_7(%arg0: i32) -> (i32, i32) {
    %c0_i32 = arith.constant 0 : i32
    %c0_i32_0 = arith.constant 0 : i32
    %c0_i32_1 = arith.constant 0 : i32
    return %c0_i32, %c0_i32_0 : i32, i32
  }
  func.func @transform_8(%arg0: i32) -> (i32, i32) {
    %c0_i32 = arith.constant 0 : i32
    %c0_i32_0 = arith.constant 0 : i32
    %c0_i32_1 = arith.constant 0 : i32
    return %c0_i32, %c0_i32_0 : i32, i32
  }
  func.func @transform_9(%arg0: i32) -> (i32, i32) {
    %c0_i32 = arith.constant 0 : i32
    %c0_i32_0 = arith.constant 0 : i32
    %c0_i32_1 = arith.constant 0 : i32
    return %c0_i32, %c0_i32_0 : i32, i32
  }
  func.func @transform_10(%arg0: i32) -> (i32, i32) {
    %c0_i32 = arith.constant 0 : i32
    %c0_i32_0 = arith.constant 0 : i32
    %c0_i32_1 = arith.constant 0 : i32
    return %c0_i32, %c0_i32_0 : i32, i32
  }
  func.func @transform_11(%arg0: i32) -> (i32, i32) {
    %c0_i32 = arith.constant 0 : i32
    %c0_i32_0 = arith.constant 0 : i32
    %c0_i32_1 = arith.constant 0 : i32
    return %c0_i32, %c0_i32_0 : i32, i32
  }
  func.func @transform_12(%arg0: i32) -> (i32, i32) {
    %c0_i32 = arith.constant 0 : i32
    %c0_i32_0 = arith.constant 0 : i32
    %c0_i32_1 = arith.constant 0 : i32
    return %c0_i32, %c0_i32_0 : i32, i32
  }
  func.func @transform_13(%arg0: i32) -> (i32, i32, i32) {
    %c0_i32 = arith.constant 0 : i32
    %c0_i32_0 = arith.constant 0 : i32
    %c0_i32_1 = arith.constant 0 : i32
    return %arg0, %c0_i32, %c0_i32_0 : i32, i32, i32
  }
  func.func @transform_14(%arg0: i32) -> (i32, i32, i32) {
    %c0_i32 = arith.constant 0 : i32
    %c0_i32_0 = arith.constant 0 : i32
    %c0_i32_1 = arith.constant 0 : i32
    return %arg0, %c0_i32, %c0_i32_0 : i32, i32, i32
  }
}

module attributes {stable_mosaic.version = 11 : i64} {
  func.func @encoder_layer_kernel(%arg0: i32, %arg1: memref<1x8x32xf32, #tpu.memory_space<vmem>>, %arg2: memref<32x96xf32, #tpu.memory_space<vmem>>, %arg3: memref<1x96xf32, #tpu.memory_space<vmem>>, %arg4: memref<32x32xf32, #tpu.memory_space<vmem>>, %arg5: memref<1x32xf32, #tpu.memory_space<vmem>>, %arg6: memref<1x32xf32, #tpu.memory_space<vmem>>, %arg7: memref<1x32xf32, #tpu.memory_space<vmem>>, %arg8: memref<32x64xf32, #tpu.memory_space<vmem>>, %arg9: memref<1x64xf32, #tpu.memory_space<vmem>>, %arg10: memref<64x32xf32, #tpu.memory_space<vmem>>, %arg11: memref<1x32xf32, #tpu.memory_space<vmem>>, %arg12: memref<1x32xf32, #tpu.memory_space<vmem>>, %arg13: memref<1x32xf32, #tpu.memory_space<vmem>>, %arg14: memref<1x8x32xf32, #tpu.memory_space<vmem>>, %arg15: memref<1x8x8xf32, #tpu.memory_space<vmem>>, %arg16: memref<32x8xf32, #tpu.memory_space<vmem>>, %arg17: memref<8x8xf32, #tpu.memory_space<vmem>>) attributes {dimension_semantics = [#tpu.dimension_semantics<parallel>], iteration_bounds = array<i64: 2>, scalar_prefetch = 0 : i64, scratch_operands = 2 : i64, tpu.core_type = #tpu.core_type<tc>, window_params = [{transform_indices = @transform_0, window_bounds = array<i64: 1, 8, 32>}, {pipeline_mode = #tpu.pipeline_mode<synchronous>, transform_indices = @transform_1, window_bounds = array<i64: 32, 96>}, {pipeline_mode = #tpu.pipeline_mode<synchronous>, transform_indices = @transform_2, window_bounds = array<i64: 1, 96>}, {pipeline_mode = #tpu.pipeline_mode<synchronous>, transform_indices = @transform_3, window_bounds = array<i64: 32, 32>}, {pipeline_mode = #tpu.pipeline_mode<synchronous>, transform_indices = @transform_4, window_bounds = array<i64: 1, 32>}, {pipeline_mode = #tpu.pipeline_mode<synchronous>, transform_indices = @transform_5, window_bounds = array<i64: 1, 32>}, {pipeline_mode = #tpu.pipeline_mode<synchronous>, transform_indices = @transform_6, window_bounds = array<i64: 1, 32>}, {pipeline_mode = #tpu.pipeline_mode<synchronous>, transform_indices = @transform_7, window_bounds = array<i64: 32, 64>}, {pipeline_mode = #tpu.pipeline_mode<synchronous>, transform_indices = @transform_8, window_bounds = array<i64: 1, 64>}, {pipeline_mode = #tpu.pipeline_mode<synchronous>, transform_indices = @transform_9, window_bounds = array<i64: 64, 32>}, {pipeline_mode = #tpu.pipeline_mode<synchronous>, transform_indices = @transform_10, window_bounds = array<i64: 1, 32>}, {pipeline_mode = #tpu.pipeline_mode<synchronous>, transform_indices = @transform_11, window_bounds = array<i64: 1, 32>}, {pipeline_mode = #tpu.pipeline_mode<synchronous>, transform_indices = @transform_12, window_bounds = array<i64: 1, 32>}, {transform_indices = @transform_13, window_bounds = array<i64: 1, 8, 32>}, {transform_indices = @transform_14, window_bounds = array<i64: 1, 8, 8>}]} {
    %c0 = arith.constant 0 : index
    %c0_0 = arith.constant 0 : index
    %c0_1 = arith.constant 0 : index
    %0 = vector.load %arg1[%c0, %c0_0, %c0_1] : memref<1x8x32xf32, #tpu.memory_space<vmem>>, vector<1x8x32xf32>
    %1 = vector.shape_cast %0 : vector<1x8x32xf32> to vector<8x32xf32>
    %c0_2 = arith.constant 0 : index
    %c0_3 = arith.constant 0 : index
    %2 = vector.load %arg2[%c0_2, %c0_3] : memref<32x96xf32, #tpu.memory_space<vmem>>, vector<32x96xf32>
    %cst = arith.constant dense<0.000000e+00> : vector<8x96xf32>
    %3 = tpu.matmul %1, %2, %cst {dimension_numbers = #tpu.dot_dimension_numbers<[1], [0], [0], [1], [0, 0, 1, 1], [], []>} : vector<8x32xf32>, vector<32x96xf32>, vector<8x96xf32> -> vector<8x96xf32>
    %c0_4 = arith.constant 0 : index
    %c0_5 = arith.constant 0 : index
    %4 = vector.load %arg3[%c0_4, %c0_5] : memref<1x96xf32, #tpu.memory_space<vmem>>, vector<1x96xf32>
    %5 = vector.broadcast %4 : vector<1x96xf32> to vector<8x96xf32>
    %6 = arith.addf %3, %5 : vector<8x96xf32>
    %cst_6 = arith.constant 0.000000e+00 : f32
    %7 = vector.broadcast %cst_6 : f32 to vector<8x8xf32>
    %c0_7 = arith.constant 0 : index
    %c0_8 = arith.constant 0 : index
    %8 = vector.load %arg17[%c0_7, %c0_8] : memref<8x8xf32, #tpu.memory_space<vmem>>, vector<8x8xf32>
    tpu.vector_store %arg17[%c0_7, %c0_8], %7 {strides = array<i32>} : memref<8x8xf32, #tpu.memory_space<vmem>>, vector<8x8xf32>,
    %9 = vector.extract_strided_slice %6 {offsets = [0, 0], sizes = [8, 8], strides = [1, 1]} : vector<8x96xf32> to vector<8x8xf32>
    %10 = vector.extract_strided_slice %6 {offsets = [0, 8], sizes = [8, 8], strides = [1, 1]} : vector<8x96xf32> to vector<8x8xf32>
    %11 = vector.extract_strided_slice %6 {offsets = [0, 16], sizes = [8, 8], strides = [1, 1]} : vector<8x96xf32> to vector<8x8xf32>
    %cst_9 = arith.constant dense<0.000000e+00> : vector<8x8xf32>
    %12 = tpu.matmul %9, %10, %cst_9 {dimension_numbers = #tpu.dot_dimension_numbers<[1], [1], [0], [0], [0, 0, 1, 0], [], []>} : vector<8x8xf32>, vector<8x8xf32>, vector<8x8xf32> -> vector<8x8xf32>
    %cst_10 = arith.constant dense<0xFF800000> : vector<8xf32>
    %13 = vector.multi_reduction <maximumf>, %12, %cst_10 [1] : vector<8x8xf32> to vector<8xf32>
    %14 = vector.shape_cast %13 : vector<8xf32> to vector<8x1xf32>
    %15 = vector.broadcast %14 : vector<8x1xf32> to vector<8x8xf32>
    %16 = arith.subf %12, %15 : vector<8x8xf32>
    %17 = math.exp %16 : vector<8x8xf32>
    %cst_11 = arith.constant dense<0.000000e+00> : vector<8xf32>
    %18 = vector.multi_reduction <add>, %17, %cst_11 [1] : vector<8x8xf32> to vector<8xf32>
    %19 = vector.shape_cast %18 : vector<8xf32> to vector<8x1xf32>
    %20 = tpu.reciprocal %19 {approx = true} : vector<8x1xf32> -> vector<8x1xf32>
    %21 = vector.broadcast %20 : vector<8x1xf32> to vector<8x8xf32>
    %22 = arith.mulf %17, %21 : vector<8x8xf32>
    %c0_12 = arith.constant 0 : index
    %c0_13 = arith.constant 0 : index
    %23 = vector.load %arg17[%c0_12, %c0_13] : memref<8x8xf32, #tpu.memory_space<vmem>>, vector<8x8xf32>
    %24 = arith.addf %23, %22 : vector<8x8xf32>
    %c0_14 = arith.constant 0 : index
    %c0_15 = arith.constant 0 : index
    %25 = vector.load %arg17[%c0_14, %c0_15] : memref<8x8xf32, #tpu.memory_space<vmem>>, vector<8x8xf32>
    tpu.vector_store %arg17[%c0_14, %c0_15], %24 {strides = array<i32>} : memref<8x8xf32, #tpu.memory_space<vmem>>, vector<8x8xf32>,
    %cst_16 = arith.constant dense<0.000000e+00> : vector<8x8xf32>
    %26 = tpu.matmul %22, %11, %cst_16 {dimension_numbers = #tpu.dot_dimension_numbers<[1], [0], [0], [1], [0, 0, 1, 1], [], []>} : vector<8x8xf32>, vector<8x8xf32>, vector<8x8xf32> -> vector<8x8xf32>
    %c0_17 = arith.constant 0 : index
    %c0_18 = arith.constant 0 : index
    %27 = vector.load %arg16[%c0_17, %c0_18] : memref<32x8xf32, #tpu.memory_space<vmem>>, vector<8x8xf32>
    tpu.vector_store %arg16[%c0_17, %c0_18], %26 {strides = array<i32>} : memref<32x8xf32, #tpu.memory_space<vmem>>, vector<8x8xf32>,
    %28 = vector.extract_strided_slice %6 {offsets = [0, 24], sizes = [8, 8], strides = [1, 1]} : vector<8x96xf32> to vector<8x8xf32>
    %29 = vector.extract_strided_slice %6 {offsets = [0, 32], sizes = [8, 8], strides = [1, 1]} : vector<8x96xf32> to vector<8x8xf32>
    %30 = vector.extract_strided_slice %6 {offsets = [0, 40], sizes = [8, 8], strides = [1, 1]} : vector<8x96xf32> to vector<8x8xf32>
    %cst_19 = arith.constant dense<0.000000e+00> : vector<8x8xf32>
    %31 = tpu.matmul %28, %29, %cst_19 {dimension_numbers = #tpu.dot_dimension_numbers<[1], [1], [0], [0], [0, 0, 1, 0], [], []>} : vector<8x8xf32>, vector<8x8xf32>, vector<8x8xf32> -> vector<8x8xf32>
    %cst_20 = arith.constant dense<0xFF800000> : vector<8xf32>
    %32 = vector.multi_reduction <maximumf>, %31, %cst_20 [1] : vector<8x8xf32> to vector<8xf32>
    %33 = vector.shape_cast %32 : vector<8xf32> to vector<8x1xf32>
    %34 = vector.broadcast %33 : vector<8x1xf32> to vector<8x8xf32>
    %35 = arith.subf %31, %34 : vector<8x8xf32>
    %36 = math.exp %35 : vector<8x8xf32>
    %cst_21 = arith.constant dense<0.000000e+00> : vector<8xf32>
    %37 = vector.multi_reduction <add>, %36, %cst_21 [1] : vector<8x8xf32> to vector<8xf32>
    %38 = vector.shape_cast %37 : vector<8xf32> to vector<8x1xf32>
    %39 = tpu.reciprocal %38 {approx = true} : vector<8x1xf32> -> vector<8x1xf32>
    %40 = vector.broadcast %39 : vector<8x1xf32> to vector<8x8xf32>
    %41 = arith.mulf %36, %40 : vector<8x8xf32>
    %c0_22 = arith.constant 0 : index
    %c0_23 = arith.constant 0 : index
    %42 = vector.load %arg17[%c0_22, %c0_23] : memref<8x8xf32, #tpu.memory_space<vmem>>, vector<8x8xf32>
    %43 = arith.addf %42, %41 : vector<8x8xf32>
    %c0_24 = arith.constant 0 : index
    %c0_25 = arith.constant 0 : index
    %44 = vector.load %arg17[%c0_24, %c0_25] : memref<8x8xf32, #tpu.memory_space<vmem>>, vector<8x8xf32>
    tpu.vector_store %arg17[%c0_24, %c0_25], %43 {strides = array<i32>} : memref<8x8xf32, #tpu.memory_space<vmem>>, vector<8x8xf32>,
    %cst_26 = arith.constant dense<0.000000e+00> : vector<8x8xf32>
    %45 = tpu.matmul %41, %30, %cst_26 {dimension_numbers = #tpu.dot_dimension_numbers<[1], [0], [0], [1], [0, 0, 1, 1], [], []>} : vector<8x8xf32>, vector<8x8xf32>, vector<8x8xf32> -> vector<8x8xf32>
    %c8 = arith.constant 8 : index
    %c0_27 = arith.constant 0 : index
    %46 = vector.load %arg16[%c8, %c0_27] : memref<32x8xf32, #tpu.memory_space<vmem>>, vector<8x8xf32>
    tpu.vector_store %arg16[%c8, %c0_27], %45 {strides = array<i32>} : memref<32x8xf32, #tpu.memory_space<vmem>>, vector<8x8xf32>,
    %47 = vector.extract_strided_slice %6 {offsets = [0, 48], sizes = [8, 8], strides = [1, 1]} : vector<8x96xf32> to vector<8x8xf32>
    %48 = vector.extract_strided_slice %6 {offsets = [0, 56], sizes = [8, 8], strides = [1, 1]} : vector<8x96xf32> to vector<8x8xf32>
    %49 = vector.extract_strided_slice %6 {offsets = [0, 64], sizes = [8, 8], strides = [1, 1]} : vector<8x96xf32> to vector<8x8xf32>
    %cst_28 = arith.constant dense<0.000000e+00> : vector<8x8xf32>
    %50 = tpu.matmul %47, %48, %cst_28 {dimension_numbers = #tpu.dot_dimension_numbers<[1], [1], [0], [0], [0, 0, 1, 0], [], []>} : vector<8x8xf32>, vector<8x8xf32>, vector<8x8xf32> -> vector<8x8xf32>
    %cst_29 = arith.constant dense<0xFF800000> : vector<8xf32>
    %51 = vector.multi_reduction <maximumf>, %50, %cst_29 [1] : vector<8x8xf32> to vector<8xf32>
    %52 = vector.shape_cast %51 : vector<8xf32> to vector<8x1xf32>
    %53 = vector.broadcast %52 : vector<8x1xf32> to vector<8x8xf32>
    %54 = arith.subf %50, %53 : vector<8x8xf32>
    %55 = math.exp %54 : vector<8x8xf32>
    %cst_30 = arith.constant dense<0.000000e+00> : vector<8xf32>
    %56 = vector.multi_reduction <add>, %55, %cst_30 [1] : vector<8x8xf32> to vector<8xf32>
    %57 = vector.shape_cast %56 : vector<8xf32> to vector<8x1xf32>
    %58 = tpu.reciprocal %57 {approx = true} : vector<8x1xf32> -> vector<8x1xf32>
    %59 = vector.broadcast %58 : vector<8x1xf32> to vector<8x8xf32>
    %60 = arith.mulf %55, %59 : vector<8x8xf32>
    %c0_31 = arith.constant 0 : index
    %c0_32 = arith.constant 0 : index
    %61 = vector.load %arg17[%c0_31, %c0_32] : memref<8x8xf32, #tpu.memory_space<vmem>>, vector<8x8xf32>
    %62 = arith.addf %61, %60 : vector<8x8xf32>
    %c0_33 = arith.constant 0 : index
    %c0_34 = arith.constant 0 : index
    %63 = vector.load %arg17[%c0_33, %c0_34] : memref<8x8xf32, #tpu.memory_space<vmem>>, vector<8x8xf32>
    tpu.vector_store %arg17[%c0_33, %c0_34], %62 {strides = array<i32>} : memref<8x8xf32, #tpu.memory_space<vmem>>, vector<8x8xf32>,
    %cst_35 = arith.constant dense<0.000000e+00> : vector<8x8xf32>
    %64 = tpu.matmul %60, %49, %cst_35 {dimension_numbers = #tpu.dot_dimension_numbers<[1], [0], [0], [1], [0, 0, 1, 1], [], []>} : vector<8x8xf32>, vector<8x8xf32>, vector<8x8xf32> -> vector<8x8xf32>
    %c16 = arith.constant 16 : index
    %c0_36 = arith.constant 0 : index
    %65 = vector.load %arg16[%c16, %c0_36] : memref<32x8xf32, #tpu.memory_space<vmem>>, vector<8x8xf32>
    tpu.vector_store %arg16[%c16, %c0_36], %64 {strides = array<i32>} : memref<32x8xf32, #tpu.memory_space<vmem>>, vector<8x8xf32>,
    %66 = vector.extract_strided_slice %6 {offsets = [0, 72], sizes = [8, 8], strides = [1, 1]} : vector<8x96xf32> to vector<8x8xf32>
    %67 = vector.extract_strided_slice %6 {offsets = [0, 80], sizes = [8, 8], strides = [1, 1]} : vector<8x96xf32> to vector<8x8xf32>
    %68 = vector.extract_strided_slice %6 {offsets = [0, 88], sizes = [8, 8], strides = [1, 1]} : vector<8x96xf32> to vector<8x8xf32>
    %cst_37 = arith.constant dense<0.000000e+00> : vector<8x8xf32>
    %69 = tpu.matmul %66, %67, %cst_37 {dimension_numbers = #tpu.dot_dimension_numbers<[1], [1], [0], [0], [0, 0, 1, 0], [], []>} : vector<8x8xf32>, vector<8x8xf32>, vector<8x8xf32> -> vector<8x8xf32>
    %cst_38 = arith.constant dense<0xFF800000> : vector<8xf32>
    %70 = vector.multi_reduction <maximumf>, %69, %cst_38 [1] : vector<8x8xf32> to vector<8xf32>
    %71 = vector.shape_cast %70 : vector<8xf32> to vector<8x1xf32>
    %72 = vector.broadcast %71 : vector<8x1xf32> to vector<8x8xf32>
    %73 = arith.subf %69, %72 : vector<8x8xf32>
    %74 = math.exp %73 : vector<8x8xf32>
    %cst_39 = arith.constant dense<0.000000e+00> : vector<8xf32>
    %75 = vector.multi_reduction <add>, %74, %cst_39 [1] : vector<8x8xf32> to vector<8xf32>
    %76 = vector.shape_cast %75 : vector<8xf32> to vector<8x1xf32>
    %77 = tpu.reciprocal %76 {approx = true} : vector<8x1xf32> -> vector<8x1xf32>
    %78 = vector.broadcast %77 : vector<8x1xf32> to vector<8x8xf32>
    %79 = arith.mulf %74, %78 : vector<8x8xf32>
    %c0_40 = arith.constant 0 : index
    %c0_41 = arith.constant 0 : index
    %80 = vector.load %arg17[%c0_40, %c0_41] : memref<8x8xf32, #tpu.memory_space<vmem>>, vector<8x8xf32>
    %81 = arith.addf %80, %79 : vector<8x8xf32>
    %c0_42 = arith.constant 0 : index
    %c0_43 = arith.constant 0 : index
    %82 = vector.load %arg17[%c0_42, %c0_43] : memref<8x8xf32, #tpu.memory_space<vmem>>, vector<8x8xf32>
    tpu.vector_store %arg17[%c0_42, %c0_43], %81 {strides = array<i32>} : memref<8x8xf32, #tpu.memory_space<vmem>>, vector<8x8xf32>,
    %cst_44 = arith.constant dense<0.000000e+00> : vector<8x8xf32>
    %83 = tpu.matmul %79, %68, %cst_44 {dimension_numbers = #tpu.dot_dimension_numbers<[1], [0], [0], [1], [0, 0, 1, 1], [], []>} : vector<8x8xf32>, vector<8x8xf32>, vector<8x8xf32> -> vector<8x8xf32>
    %c24 = arith.constant 24 : index
    %c0_45 = arith.constant 0 : index
    %84 = vector.load %arg16[%c24, %c0_45] : memref<32x8xf32, #tpu.memory_space<vmem>>, vector<8x8xf32>
    tpu.vector_store %arg16[%c24, %c0_45], %83 {strides = array<i32>} : memref<32x8xf32, #tpu.memory_space<vmem>>, vector<8x8xf32>,
    %c0_46 = arith.constant 0 : index
    %c0_47 = arith.constant 0 : index
    %85 = vector.load %arg17[%c0_46, %c0_47] : memref<8x8xf32, #tpu.memory_space<vmem>>, vector<8x8xf32>
    %cst_48 = arith.constant 2.500000e-01 : f32
    %86 = vector.broadcast %cst_48 : f32 to vector<8x8xf32>
    %87 = arith.mulf %85, %86 : vector<8x8xf32>
    %c0_49 = arith.constant 0 : index
    %c0_50 = arith.constant 0 : index
    %c0_51 = arith.constant 0 : index
    %88 = vector.load %arg15[%c0_49, %c0_50, %c0_51] : memref<1x8x8xf32, #tpu.memory_space<vmem>>, vector<1x8x8xf32>
    %89 = vector.shape_cast %88 : vector<1x8x8xf32> to vector<8x8xf32>
    %90 = vector.shape_cast %87 : vector<8x8xf32> to vector<1x8x8xf32>
    tpu.vector_store %arg15[%c0_49, %c0_50, %c0_51], %90 {strides = array<i32>} : memref<1x8x8xf32, #tpu.memory_space<vmem>>, vector<1x8x8xf32>,
    %c0_52 = arith.constant 0 : index
    %c0_53 = arith.constant 0 : index
    %91 = tpu.strided_load %arg16[%c0_52, %c0_53] {strides = array<i32: 4, 1>} : memref<32x8xf32, #tpu.memory_space<vmem>>, vector<8x8xf32>
    %c1 = arith.constant 1 : index
    %c0_54 = arith.constant 0 : index
    %92 = tpu.strided_load %arg16[%c1, %c0_54] {strides = array<i32: 4, 1>} : memref<32x8xf32, #tpu.memory_space<vmem>>, vector<8x8xf32>
    %c2 = arith.constant 2 : index
    %c0_55 = arith.constant 0 : index
    %93 = tpu.strided_load %arg16[%c2, %c0_55] {strides = array<i32: 4, 1>} : memref<32x8xf32, #tpu.memory_space<vmem>>, vector<8x8xf32>
    %c3 = arith.constant 3 : index
    %c0_56 = arith.constant 0 : index
    %94 = tpu.strided_load %arg16[%c3, %c0_56] {strides = array<i32: 4, 1>} : memref<32x8xf32, #tpu.memory_space<vmem>>, vector<8x8xf32>
    %95 = tpu.concatenate %91, %92, %93, %94 in 1 : vector<8x8xf32>, vector<8x8xf32>, vector<8x8xf32>, vector<8x8xf32> -> vector<8x32xf32>
    %c0_57 = arith.constant 0 : index
    %c0_58 = arith.constant 0 : index
    %96 = vector.load %arg4[%c0_57, %c0_58] : memref<32x32xf32, #tpu.memory_space<vmem>>, vector<32x32xf32>
    %cst_59 = arith.constant dense<0.000000e+00> : vector<8x32xf32>
    %97 = tpu.matmul %95, %96, %cst_59 {dimension_numbers = #tpu.dot_dimension_numbers<[1], [0], [0], [1], [0, 0, 1, 1], [], []>} : vector<8x32xf32>, vector<32x32xf32>, vector<8x32xf32> -> vector<8x32xf32>
    %c0_60 = arith.constant 0 : index
    %c0_61 = arith.constant 0 : index
    %98 = vector.load %arg5[%c0_60, %c0_61] : memref<1x32xf32, #tpu.memory_space<vmem>>, vector<1x32xf32>
    %99 = vector.broadcast %98 : vector<1x32xf32> to vector<8x32xf32>
    %100 = arith.addf %97, %99 : vector<8x32xf32>
    %101 = arith.addf %100, %1 : vector<8x32xf32>
    %c0_62 = arith.constant 0 : index
    %c0_63 = arith.constant 0 : index
    %102 = vector.load %arg6[%c0_62, %c0_63] : memref<1x32xf32, #tpu.memory_space<vmem>>, vector<1x32xf32>
    %c0_64 = arith.constant 0 : index
    %c0_65 = arith.constant 0 : index
    %103 = vector.load %arg7[%c0_64, %c0_65] : memref<1x32xf32, #tpu.memory_space<vmem>>, vector<1x32xf32>
    %cst_66 = arith.constant dense<0.000000e+00> : vector<8xf32>
    %104 = vector.multi_reduction <add>, %101, %cst_66 [1] : vector<8x32xf32> to vector<8xf32>
    %105 = vector.shape_cast %104 : vector<8xf32> to vector<8x1xf32>
    %cst_67 = arith.constant 3.200000e+01 : f32
    %106 = vector.broadcast %cst_67 : f32 to vector<8x1xf32>
    %107 = arith.divf %105, %106 : vector<8x1xf32>
    %108 = vector.broadcast %107 : vector<8x1xf32> to vector<8x32xf32>
    %109 = arith.subf %101, %108 : vector<8x32xf32>
    %110 = arith.mulf %109, %109 : vector<8x32xf32>
    %cst_68 = arith.constant dense<0.000000e+00> : vector<8xf32>
    %111 = vector.multi_reduction <add>, %110, %cst_68 [1] : vector<8x32xf32> to vector<8xf32>
    %112 = vector.shape_cast %111 : vector<8xf32> to vector<8x1xf32>
    %cst_69 = arith.constant 3.200000e+01 : f32
    %113 = vector.broadcast %cst_69 : f32 to vector<8x1xf32>
    %114 = arith.divf %112, %113 : vector<8x1xf32>
    %115 = vector.broadcast %107 : vector<8x1xf32> to vector<8x32xf32>
    %116 = arith.subf %101, %115 : vector<8x32xf32>
    %cst_70 = arith.constant 9.99999993E-9 : f32
    %117 = vector.broadcast %cst_70 : f32 to vector<8x1xf32>
    %118 = arith.addf %114, %117 : vector<8x1xf32>
    %119 = math.rsqrt %118 : vector<8x1xf32>
    %120 = vector.broadcast %119 : vector<8x1xf32> to vector<8x32xf32>
    %121 = arith.mulf %116, %120 : vector<8x32xf32>
    %122 = vector.broadcast %102 : vector<1x32xf32> to vector<8x32xf32>
    %123 = arith.mulf %122, %121 : vector<8x32xf32>
    %124 = vector.broadcast %103 : vector<1x32xf32> to vector<8x32xf32>
    %125 = arith.addf %123, %124 : vector<8x32xf32>
    %cst_71 = arith.constant 0.000000e+00 : f32
    %126 = vector.broadcast %cst_71 : f32 to vector<8x32xf32>
    %127 = arith.maximumf %125, %126 : vector<8x32xf32>
    %c0_72 = arith.constant 0 : index
    %c0_73 = arith.constant 0 : index
    %128 = vector.load %arg8[%c0_72, %c0_73] : memref<32x64xf32, #tpu.memory_space<vmem>>, vector<32x64xf32>
    %cst_74 = arith.constant dense<0.000000e+00> : vector<8x64xf32>
    %129 = tpu.matmul %127, %128, %cst_74 {dimension_numbers = #tpu.dot_dimension_numbers<[1], [0], [0], [1], [0, 0, 1, 1], [], []>} : vector<8x32xf32>, vector<32x64xf32>, vector<8x64xf32> -> vector<8x64xf32>
    %c0_75 = arith.constant 0 : index
    %c0_76 = arith.constant 0 : index
    %130 = vector.load %arg9[%c0_75, %c0_76] : memref<1x64xf32, #tpu.memory_space<vmem>>, vector<1x64xf32>
    %131 = vector.broadcast %130 : vector<1x64xf32> to vector<8x64xf32>
    %132 = arith.addf %129, %131 : vector<8x64xf32>
    %cst_77 = arith.constant 0.000000e+00 : f32
    %133 = vector.broadcast %cst_77 : f32 to vector<8x64xf32>
    %134 = arith.maximumf %132, %133 : vector<8x64xf32>
    %c0_78 = arith.constant 0 : index
    %c0_79 = arith.constant 0 : index
    %135 = vector.load %arg10[%c0_78, %c0_79] : memref<64x32xf32, #tpu.memory_space<vmem>>, vector<64x32xf32>
    %cst_80 = arith.constant dense<0.000000e+00> : vector<8x32xf32>
    %136 = tpu.matmul %134, %135, %cst_80 {dimension_numbers = #tpu.dot_dimension_numbers<[1], [0], [0], [1], [0, 0, 1, 1], [], []>} : vector<8x64xf32>, vector<64x32xf32>, vector<8x32xf32> -> vector<8x32xf32>
    %c0_81 = arith.constant 0 : index
    %c0_82 = arith.constant 0 : index
    %137 = vector.load %arg11[%c0_81, %c0_82] : memref<1x32xf32, #tpu.memory_space<vmem>>, vector<1x32xf32>
    %138 = vector.broadcast %137 : vector<1x32xf32> to vector<8x32xf32>
    %139 = arith.addf %136, %138 : vector<8x32xf32>
    %140 = arith.addf %139, %125 : vector<8x32xf32>
    %c0_83 = arith.constant 0 : index
    %c0_84 = arith.constant 0 : index
    %141 = vector.load %arg12[%c0_83, %c0_84] : memref<1x32xf32, #tpu.memory_space<vmem>>, vector<1x32xf32>
    %c0_85 = arith.constant 0 : index
    %c0_86 = arith.constant 0 : index
    %142 = vector.load %arg13[%c0_85, %c0_86] : memref<1x32xf32, #tpu.memory_space<vmem>>, vector<1x32xf32>
    %cst_87 = arith.constant dense<0.000000e+00> : vector<8xf32>
    %143 = vector.multi_reduction <add>, %140, %cst_87 [1] : vector<8x32xf32> to vector<8xf32>
    %144 = vector.shape_cast %143 : vector<8xf32> to vector<8x1xf32>
    %cst_88 = arith.constant 3.200000e+01 : f32
    %145 = vector.broadcast %cst_88 : f32 to vector<8x1xf32>
    %146 = arith.divf %144, %145 : vector<8x1xf32>
    %147 = vector.broadcast %146 : vector<8x1xf32> to vector<8x32xf32>
    %148 = arith.subf %140, %147 : vector<8x32xf32>
    %149 = arith.mulf %148, %148 : vector<8x32xf32>
    %cst_89 = arith.constant dense<0.000000e+00> : vector<8xf32>
    %150 = vector.multi_reduction <add>, %149, %cst_89 [1] : vector<8x32xf32> to vector<8xf32>
    %151 = vector.shape_cast %150 : vector<8xf32> to vector<8x1xf32>
    %cst_90 = arith.constant 3.200000e+01 : f32
    %152 = vector.broadcast %cst_90 : f32 to vector<8x1xf32>
    %153 = arith.divf %151, %152 : vector<8x1xf32>
    %154 = vector.broadcast %146 : vector<8x1xf32> to vector<8x32xf32>
    %155 = arith.subf %140, %154 : vector<8x32xf32>
    %cst_91 = arith.constant 9.99999993E-9 : f32
    %156 = vector.broadcast %cst_91 : f32 to vector<8x1xf32>
    %157 = arith.addf %153, %156 : vector<8x1xf32>
    %158 = math.rsqrt %157 : vector<8x1xf32>
    %159 = vector.broadcast %158 : vector<8x1xf32> to vector<8x32xf32>
    %160 = arith.mulf %155, %159 : vector<8x32xf32>
    %161 = vector.broadcast %141 : vector<1x32xf32> to vector<8x32xf32>
    %162 = arith.mulf %161, %160 : vector<8x32xf32>
    %163 = vector.broadcast %142 : vector<1x32xf32> to vector<8x32xf32>
    %164 = arith.addf %162, %163 : vector<8x32xf32>
    %c0_92 = arith.constant 0 : index
    %c0_93 = arith.constant 0 : index
    %c0_94 = arith.constant 0 : index
    %165 = vector.load %arg14[%c0_92, %c0_93, %c0_94] : memref<1x8x32xf32, #tpu.memory_space<vmem>>, vector<1x8x32xf32>
    %166 = vector.shape_cast %165 : vector<1x8x32xf32> to vector<8x32xf32>
    %167 = vector.shape_cast %164 : vector<8x32xf32> to vector<1x8x32xf32>
    tpu.vector_store %arg14[%c0_92, %c0_93, %c0_94], %167 {strides = array<i32>} : memref<1x8x32xf32, #tpu.memory_space<vmem>>, vector<1x8x32xf32>,
    return
  }
  func.func @transform_0(%arg0: i32) -> (i32, i32, i32) {
    %c0_i32 = arith.constant 0 : i32
    %c0_i32_0 = arith.constant 0 : i32
    %c0_i32_1 = arith.constant 0 : i32
    return %arg0, %c0_i32, %c0_i32_0 : i32, i32, i32
  }
  func.func @transform_1(%arg0: i32) -> (i32, i32) {
    %c0_i32 = arith.constant 0 : i32
    %c0_i32_0 = arith.constant 0 : i32
    %c0_i32_1 = arith.constant 0 : i32
    return %c0_i32, %c0_i32_0 : i32, i32
  }
  func.func @transform_2(%arg0: i32) -> (i32, i32) {
    %c0_i32 = arith.constant 0 : i32
    %c0_i32_0 = arith.constant 0 : i32
    %c0_i32_1 = arith.constant 0 : i32
    return %c0_i32, %c0_i32_0 : i32, i32
  }
  func.func @transform_3(%arg0: i32) -> (i32, i32) {
    %c0_i32 = arith.constant 0 : i32
    %c0_i32_0 = arith.constant 0 : i32
    %c0_i32_1 = arith.constant 0 : i32
    return %c0_i32, %c0_i32_0 : i32, i32
  }
  func.func @transform_4(%arg0: i32) -> (i32, i32) {
    %c0_i32 = arith.constant 0 : i32
    %c0_i32_0 = arith.constant 0 : i32
    %c0_i32_1 = arith.constant 0 : i32
    return %c0_i32, %c0_i32_0 : i32, i32
  }
  func.func @transform_5(%arg0: i32) -> (i32, i32) {
    %c0_i32 = arith.constant 0 : i32
    %c0_i32_0 = arith.constant 0 : i32
    %c0_i32_1 = arith.constant 0 : i32
    return %c0_i32, %c0_i32_0 : i32, i32
  }
  func.func @transform_6(%arg0: i32) -> (i32, i32) {
    %c0_i32 = arith.constant 0 : i32
    %c0_i32_0 = arith.constant 0 : i32
    %c0_i32_1 = arith.constant 0 : i32
    return %c0_i32, %c0_i32_0 : i32, i32
  }
  func.func @transform_7(%arg0: i32) -> (i32, i32) {
    %c0_i32 = arith.constant 0 : i32
    %c0_i32_0 = arith.constant 0 : i32
    %c0_i32_1 = arith.constant 0 : i32
    return %c0_i32, %c0_i32_0 : i32, i32
  }
  func.func @transform_8(%arg0: i32) -> (i32, i32) {
    %c0_i32 = arith.constant 0 : i32
    %c0_i32_0 = arith.constant 0 : i32
    %c0_i32_1 = arith.constant 0 : i32
    return %c0_i32, %c0_i32_0 : i32, i32
  }
  func.func @transform_9(%arg0: i32) -> (i32, i32) {
    %c0_i32 = arith.constant 0 : i32
    %c0_i32_0 = arith.constant 0 : i32
    %c0_i32_1 = arith.constant 0 : i32
    return %c0_i32, %c0_i32_0 : i32, i32
  }
  func.func @transform_10(%arg0: i32) -> (i32, i32) {
    %c0_i32 = arith.constant 0 : i32
    %c0_i32_0 = arith.constant 0 : i32
    %c0_i32_1 = arith.constant 0 : i32
    return %c0_i32, %c0_i32_0 : i32, i32
  }
  func.func @transform_11(%arg0: i32) -> (i32, i32) {
    %c0_i32 = arith.constant 0 : i32
    %c0_i32_0 = arith.constant 0 : i32
    %c0_i32_1 = arith.constant 0 : i32
    return %c0_i32, %c0_i32_0 : i32, i32
  }
  func.func @transform_12(%arg0: i32) -> (i32, i32) {
    %c0_i32 = arith.constant 0 : i32
    %c0_i32_0 = arith.constant 0 : i32
    %c0_i32_1 = arith.constant 0 : i32
    return %c0_i32, %c0_i32_0 : i32, i32
  }
  func.func @transform_13(%arg0: i32) -> (i32, i32, i32) {
    %c0_i32 = arith.constant 0 : i32
    %c0_i32_0 = arith.constant 0 : i32
    %c0_i32_1 = arith.constant 0 : i32
    return %arg0, %c0_i32, %c0_i32_0 : i32, i32, i32
  }
  func.func @transform_14(%arg0: i32) -> (i32, i32, i32) {
    %c0_i32 = arith.constant 0 : i32
    %c0_i32_0 = arith.constant 0 : i32
    %c0_i32_1 = arith.constant 0 : i32
    return %arg0, %c0_i32, %c0_i32_0 : i32, i32, i32
  }
}

</mosaic_0001>

<llo_original>
// kernel: tpu_custom_call.1
$region0: #{tpu_custom_call.1}
  #allocation0 [shape = 'u32[]', space=smem, size = 0x4, offset = 0x4, fixed_abs, tag = 'smem constant byte address 0x4 - core index']
  #allocation1 [shape = 'u32[144,128]{1,0:T(1,128)}', space=vmem, size = 0x12000, scoped, tag = 'internal scratch']
  #allocation2 [shape = 'f32[32,8]{1,0:T(8,128)}', space=vmem, size = 0x4000, scoped, tag = 'scratch operand']
  #allocation3 [shape = 'f32[8,8]{1,0:T(8,128)}', space=vmem, size = 0x1000, scoped, tag = 'scratch operand']
  %s0 = inlined_call_operand.hbm [shape: f32[2,8,32], index: 0, kind: input, shape index: {}]
  %s1 = inlined_call_operand.vmem [shape: f32[32,96], index: 1, kind: input, shape index: {}]
  %s2 = inlined_call_operand.vmem [shape: f32[1,96], index: 2, kind: input, shape index: {}]
  %s3 = inlined_call_operand.vmem [shape: f32[32,32], index: 3, kind: input, shape index: {}]
  %s4 = inlined_call_operand.vmem [shape: f32[1,32], index: 4, kind: input, shape index: {}]
  %s5 = inlined_call_operand.vmem [shape: f32[1,32], index: 5, kind: input, shape index: {}]
  %s6 = inlined_call_operand.vmem [shape: f32[1,32], index: 6, kind: input, shape index: {}]
  %s7 = inlined_call_operand.vmem [shape: f32[32,64], index: 7, kind: input, shape index: {}]
  %s8 = inlined_call_operand.vmem [shape: f32[1,64], index: 8, kind: input, shape index: {}]
  %s9 = inlined_call_operand.vmem [shape: f32[64,32], index: 9, kind: input, shape index: {}]
  %s10 = inlined_call_operand.vmem [shape: f32[1,32], index: 10, kind: input, shape index: {}]
  %s11 = inlined_call_operand.vmem [shape: f32[1,32], index: 11, kind: input, shape index: {}]
  %s12 = inlined_call_operand.vmem [shape: f32[1,32], index: 12, kind: input, shape index: {}]
  %s13 = inlined_call_operand.hbm [shape: f32[2,8,32], index: 13, kind: output, shape index: {0}]
  %s14 = inlined_call_operand.hbm [shape: f32[2,8,8], index: 14, kind: output, shape index: {1}]
  %15 = xla_tuple %s13, %s14
  %s16 = sld [smem:[#allocation0]]
  $region97: #{tpu_custom_call.1} parent=0
    _
  %s18 = ssub.s32 1, %s16
  %s19 = scalar_select 0, %s18, %s16
  $region1: #{tpu_custom_call.1} parent=0
    #allocation4 [shape = 'u8[8192]{0}', space=vmem, size = 0x2000, scoped, tag = 'input window, operand 0']
    #allocation5 [shape = 's32[2]{0}', space=sflag, size = 0x8, scoped, tag = 'scoped memory for tpu_custom_call.1']
    #allocation6 [shape = 's32[2]{0}', space=sflag, size = 0x8, scoped, tag = 'scoped memory for tpu_custom_call.1']
    #allocation7 [shape = 'u8[8192]{0}', space=vmem, size = 0x2000, scoped, tag = 'output window, operand 0']
    #allocation8 [shape = 'u8[8192]{0}', space=vmem, size = 0x2000, scoped, tag = 'output window, operand 1']
    #allocation9 [shape = 's32[2]{0}', space=sflag, size = 0x8, scoped, tag = 'scoped memory for tpu_custom_call.1']
    %20 = vsyncpa [#allocation5], 0
    %s21 = scalar_lea.sflag [#allocation5], 1
    %22 = vsyncpa %s21, 0
    %23 = vsyncpa [#allocation6], 0
    %s24 = scalar_lea.sflag [#allocation6], 1
    %25 = vsyncpa %s24, 0
    %26 = vsyncpa [#allocation9], 0
    %s27 = scalar_lea.sflag [#allocation9], 1
    %28 = vsyncpa %s27, 0
    loop: start=0, step=1, limit=4
    $region2: #{tpu_custom_call.1} parent=1 // loop_pre_header
      _
    $region3: #{tpu_custom_call.1} parent=1 // loop_header
      %s30 = sphi 0, %s34
      %p31 = scmp.ge.s32.totalorder %s30, 4
      %s40 = sphi 0, %s42
      %s43 = sphi 0, %s40
      %s44 = sphi 0, %s43
      %s60 = sphi 0, %s44
      %s64 = sphi 0, %s64
      %s66 = sphi 0, %s64
      %s67 = sphi 0, %s66
      %s81 = sphi 0, %s67
      %s85 = sphi 0, %s85
      %s87 = sphi 0, %s85
      %s88 = sphi 0, %s87
      %s102 = sphi 0, %s88
      %s106 = sphi 0, %s106
      %s108 = sphi 0, %s106
      %s109 = sphi 0, %s108
      %s123 = sphi 0, %s109
      %s127 = sphi 0, %s127
      %s129 = sphi 0, %s127
      %s130 = sphi 0, %s129
      %s144 = sphi 0, %s130
      %s148 = sphi 0, %s148
      %s150 = sphi 0, %s148
      %s151 = sphi 0, %s150
      %s165 = sphi 0, %s151
      %s169 = sphi 0, %s169
      %s171 = sphi 0, %s169
      %s172 = sphi 0, %s171
      %s186 = sphi 0, %s172
      %s190 = sphi 0, %s190
      %s192 = sphi 0, %s190
      %s193 = sphi 0, %s192
      %s207 = sphi 0, %s193
      %s211 = sphi 0, %s211
      %s213 = sphi 0, %s211
      %s214 = sphi 0, %s213
      %s228 = sphi 0, %s214
      %s232 = sphi 0, %s232
      %s234 = sphi 0, %s232
      %s235 = sphi 0, %s234
      %s249 = sphi 0, %s235
      %s253 = sphi 0, %s253
      %s255 = sphi 0, %s253
      %s256 = sphi 0, %s255
      %s270 = sphi 0, %s256
      %s274 = sphi 0, %s274
      %s276 = sphi 0, %s274
      %s277 = sphi 0, %s276
      %s291 = sphi 0, %s277
      %s295 = sphi 0, %s295
      %s297 = sphi 0, %s295
      %s298 = sphi 0, %s297
      %s312 = sphi 0, %s298
      %s318 = sphi 0, %s320
      %s321 = sphi 0, %s318
      %s322 = sphi 0, %s321
      %s338 = sphi 0, %s322
      %s344 = sphi 0, %s346
      %s347 = sphi 0, %s344
      %s348 = sphi 0, %s347
      %s364 = sphi 0, %s348
    $region4: #{tpu_custom_call.1} parent=1 // loop_header_branch
      %33 = sbr.rel (%p31) target = $region8
    $region5: #{tpu_custom_call.1} parent=1 // loop_body
      %s35 = ssub.s32 %s30, 1
      %s36 = ssub.s32 %s30, 2
      %s37 = sadd.s32 %s30, 1
      %s38 = ssub.s32 %s30, %s37
      %p39 = scmp.eq.s32.totalorder %s38, 0
      %s41 = sadd.s32 %s40, 1
      %s42 = scalar_select %p39, %s40, %s41
      %p45 = pneg %p39
      %p46 = scmp.eq.s32.totalorder %s30, 1
      %p47 = por %p45, %p46
      %p48 = scmp.ne.s32.totalorder %s40, %s43
      %p49 = scmp.eq.s32.totalorder %s30, 0
      %p50 = por %p48, %p49
      %p51 = scmp.ne.s32.totalorder %s40, %s43
      %p52 = scmp.eq.s32.totalorder %s35, 1
      %p53 = por %p51, %p52
      %p54 = scmp.ne.s32.totalorder %s43, %s44
      %p55 = scmp.eq.s32.totalorder %s35, 0
      %p56 = por %p54, %p55
      %p57 = scmp.ne.s32.totalorder %s43, %s44
      %p58 = scmp.eq.s32.totalorder %s36, 1
      %p59 = por %p57, %p58
      %p61 = scmp.ne.s32.totalorder %s44, %s60
      %p62 = scmp.eq.s32.totalorder %s36, 0
      %p63 = por %p61, %p62
      %s65 = sadd.s32 %s64, 1
      %p68 = scmp.eq.s32.totalorder %s30, 1
      %p69 = scmp.ne.s32.totalorder %s64, %s66
      %p70 = scmp.eq.s32.totalorder %s30, 0
      %p71 = por %p69, %p70
      %p72 = scmp.ne.s32.totalorder %s64, %s66
      %p73 = scmp.eq.s32.totalorder %s35, 1
      %p74 = por %p72, %p73
      %p75 = scmp.ne.s32.totalorder %s66, %s67
      %p76 = scmp.eq.s32.totalorder %s35, 0
      %p77 = por %p75, %p76
      %p78 = scmp.ne.s32.totalorder %s66, %s67
      %p79 = scmp.eq.s32.totalorder %s36, 1
      %p80 = por %p78, %p79
      %p82 = scmp.ne.s32.totalorder %s67, %s81
      %p83 = scmp.eq.s32.totalorder %s36, 0
      %p84 = por %p82, %p83
      %s86 = sadd.s32 %s85, 1
      %p89 = scmp.eq.s32.totalorder %s30, 1
      %p90 = scmp.ne.s32.totalorder %s85, %s87
      %p91 = scmp.eq.s32.totalorder %s30, 0
      %p92 = por %p90, %p91
      %p93 = scmp.ne.s32.totalorder %s85, %s87
      %p94 = scmp.eq.s32.totalorder %s35, 1
      %p95 = por %p93, %p94
      %p96 = scmp.ne.s32.totalorder %s87, %s88
      %p97 = scmp.eq.s32.totalorder %s35, 0
      %p98 = por %p96, %p97
      %p99 = scmp.ne.s32.totalorder %s87, %s88
      %p100 = scmp.eq.s32.totalorder %s36, 1
      %p101 = por %p99, %p100
      %p103 = scmp.ne.s32.totalorder %s88, %s102
      %p104 = scmp.eq.s32.totalorder %s36, 0
      %p105 = por %p103, %p104
      %s107 = sadd.s32 %s106, 1
      %p110 = scmp.eq.s32.totalorder %s30, 1
      %p111 = scmp.ne.s32.totalorder %s106, %s108
      %p112 = scmp.eq.s32.totalorder %s30, 0
      %p113 = por %p111, %p112
      %p114 = scmp.ne.s32.totalorder %s106, %s108
      %p115 = scmp.eq.s32.totalorder %s35, 1
      %p116 = por %p114, %p115
      %p117 = scmp.ne.s32.totalorder %s108, %s109
      %p118 = scmp.eq.s32.totalorder %s35, 0
      %p119 = por %p117, %p118
      %p120 = scmp.ne.s32.totalorder %s108, %s109
      %p121 = scmp.eq.s32.totalorder %s36, 1
      %p122 = por %p120, %p121
      %p124 = scmp.ne.s32.totalorder %s109, %s123
      %p125 = scmp.eq.s32.totalorder %s36, 0
      %p126 = por %p124, %p125
      %s128 = sadd.s32 %s127, 1
      %p131 = scmp.eq.s32.totalorder %s30, 1
      %p132 = scmp.ne.s32.totalorder %s127, %s129
      %p133 = scmp.eq.s32.totalorder %s30, 0
      %p134 = por %p132, %p133
      %p135 = scmp.ne.s32.totalorder %s127, %s129
      %p136 = scmp.eq.s32.totalorder %s35, 1
      %p137 = por %p135, %p136
      %p138 = scmp.ne.s32.totalorder %s129, %s130
      %p139 = scmp.eq.s32.totalorder %s35, 0
      %p140 = por %p138, %p139
      %p141 = scmp.ne.s32.totalorder %s129, %s130
      %p142 = scmp.eq.s32.totalorder %s36, 1
      %p143 = por %p141, %p142
      %p145 = scmp.ne.s32.totalorder %s130, %s144
      %p146 = scmp.eq.s32.totalorder %s36, 0
      %p147 = por %p145, %p146
      %s149 = sadd.s32 %s148, 1
      %p152 = scmp.eq.s32.totalorder %s30, 1
      %p153 = scmp.ne.s32.totalorder %s148, %s150
      %p154 = scmp.eq.s32.totalorder %s30, 0
      %p155 = por %p153, %p154
      %p156 = scmp.ne.s32.totalorder %s148, %s150
      %p157 = scmp.eq.s32.totalorder %s35, 1
      %p158 = por %p156, %p157
      %p159 = scmp.ne.s32.totalorder %s150, %s151
      %p160 = scmp.eq.s32.totalorder %s35, 0
      %p161 = por %p159, %p160
      %p162 = scmp.ne.s32.totalorder %s150, %s151
      %p163 = scmp.eq.s32.totalorder %s36, 1
      %p164 = por %p162, %p163
      %p166 = scmp.ne.s32.totalorder %s151, %s165
      %p167 = scmp.eq.s32.totalorder %s36, 0
      %p168 = por %p166, %p167
      %s170 = sadd.s32 %s169, 1
      %p173 = scmp.eq.s32.totalorder %s30, 1
      %p174 = scmp.ne.s32.totalorder %s169, %s171
      %p175 = scmp.eq.s32.totalorder %s30, 0
      %p176 = por %p174, %p175
      %p177 = scmp.ne.s32.totalorder %s169, %s171
      %p178 = scmp.eq.s32.totalorder %s35, 1
      %p179 = por %p177, %p178
      %p180 = scmp.ne.s32.totalorder %s171, %s172
      %p181 = scmp.eq.s32.totalorder %s35, 0
      %p182 = por %p180, %p181
      %p183 = scmp.ne.s32.totalorder %s171, %s172
      %p184 = scmp.eq.s32.totalorder %s36, 1
      %p185 = por %p183, %p184
      %p187 = scmp.ne.s32.totalorder %s172, %s186
      %p188 = scmp.eq.s32.totalorder %s36, 0
      %p189 = por %p187, %p188
      %s191 = sadd.s32 %s190, 1
      %p194 = scmp.eq.s32.totalorder %s30, 1
      %p195 = scmp.ne.s32.totalorder %s190, %s192
      %p196 = scmp.eq.s32.totalorder %s30, 0
      %p197 = por %p195, %p196
      %p198 = scmp.ne.s32.totalorder %s190, %s192
      %p199 = scmp.eq.s32.totalorder %s35, 1
      %p200 = por %p198, %p199
      %p201 = scmp.ne.s32.totalorder %s192, %s193
      %p202 = scmp.eq.s32.totalorder %s35, 0
      %p203 = por %p201, %p202
      %p204 = scmp.ne.s32.totalorder %s192, %s193
      %p205 = scmp.eq.s32.totalorder %s36, 1
      %p206 = por %p204, %p205
      %p208 = scmp.ne.s32.totalorder %s193, %s207
      %p209 = scmp.eq.s32.totalorder %s36, 0
      %p210 = por %p208, %p209
      %s212 = sadd.s32 %s211, 1
      %p215 = scmp.eq.s32.totalorder %s30, 1
      %p216 = scmp.ne.s32.totalorder %s211, %s213
      %p217 = scmp.eq.s32.totalorder %s30, 0
      %p218 = por %p216, %p217
      %p219 = scmp.ne.s32.totalorder %s211, %s213
      %p220 = scmp.eq.s32.totalorder %s35, 1
      %p221 = por %p219, %p220
      %p222 = scmp.ne.s32.totalorder %s213, %s214
      %p223 = scmp.eq.s32.totalorder %s35, 0
      %p224 = por %p222, %p223
      %p225 = scmp.ne.s32.totalorder %s213, %s214
      %p226 = scmp.eq.s32.totalorder %s36, 1
      %p227 = por %p225, %p226
      %p229 = scmp.ne.s32.totalorder %s214, %s228
      %p230 = scmp.eq.s32.totalorder %s36, 0
      %p231 = por %p229, %p230
      %s233 = sadd.s32 %s232, 1
      %p236 = scmp.eq.s32.totalorder %s30, 1
      %p237 = scmp.ne.s32.totalorder %s232, %s234
      %p238 = scmp.eq.s32.totalorder %s30, 0
      %p239 = por %p237, %p238
      %p240 = scmp.ne.s32.totalorder %s232, %s234
      %p241 = scmp.eq.s32.totalorder %s35, 1
      %p242 = por %p240, %p241
      %p243 = scmp.ne.s32.totalorder %s234, %s235
      %p244 = scmp.eq.s32.totalorder %s35, 0
      %p245 = por %p243, %p244
      %p246 = scmp.ne.s32.totalorder %s234, %s235
      %p247 = scmp.eq.s32.totalorder %s36, 1
      %p248 = por %p246, %p247
      %p250 = scmp.ne.s32.totalorder %s235, %s249
      %p251 = scmp.eq.s32.totalorder %s36, 0
      %p252 = por %p250, %p251
      %s254 = sadd.s32 %s253, 1
      %p257 = scmp.eq.s32.totalorder %s30, 1
      %p258 = scmp.ne.s32.totalorder %s253, %s255
      %p259 = scmp.eq.s32.totalorder %s30, 0
      %p260 = por %p258, %p259
      %p261 = scmp.ne.s32.totalorder %s253, %s255
      %p262 = scmp.eq.s32.totalorder %s35, 1
      %p263 = por %p261, %p262
      %p264 = scmp.ne.s32.totalorder %s255, %s256
      %p265 = scmp.eq.s32.totalorder %s35, 0
      %p266 = por %p264, %p265
      %p267 = scmp.ne.s32.totalorder %s255, %s256
      %p268 = scmp.eq.s32.totalorder %s36, 1
      %p269 = por %p267, %p268
      %p271 = scmp.ne.s32.totalorder %s256, %s270
      %p272 = scmp.eq.s32.totalorder %s36, 0
      %p273 = por %p271, %p272
      %s275 = sadd.s32 %s274, 1
      %p278 = scmp.eq.s32.totalorder %s30, 1
      %p279 = scmp.ne.s32.totalorder %s274, %s276
      %p280 = scmp.eq.s32.totalorder %s30, 0
      %p281 = por %p279, %p280
      %p282 = scmp.ne.s32.totalorder %s274, %s276
      %p283 = scmp.eq.s32.totalorder %s35, 1
      %p284 = por %p282, %p283
      %p285 = scmp.ne.s32.totalorder %s276, %s277
      %p286 = scmp.eq.s32.totalorder %s35, 0
      %p287 = por %p285, %p286
      %p288 = scmp.ne.s32.totalorder %s276, %s277
      %p289 = scmp.eq.s32.totalorder %s36, 1
      %p290 = por %p288, %p289
      %p292 = scmp.ne.s32.totalorder %s277, %s291
      %p293 = scmp.eq.s32.totalorder %s36, 0
      %p294 = por %p292, %p293
      %s296 = sadd.s32 %s295, 1
      %p299 = scmp.eq.s32.totalorder %s30, 1
      %p300 = scmp.ne.s32.totalorder %s295, %s297
      %p301 = scmp.eq.s32.totalorder %s30, 0
      %p302 = por %p300, %p301
      %p303 = scmp.ne.s32.totalorder %s295, %s297
      %p304 = scmp.eq.s32.totalorder %s35, 1
      %p305 = por %p303, %p304
      %p306 = scmp.ne.s32.totalorder %s297, %s298
      %p307 = scmp.eq.s32.totalorder %s35, 0
      %p308 = por %p306, %p307
      %p309 = scmp.ne.s32.totalorder %s297, %s298
      %p310 = scmp.eq.s32.totalorder %s36, 1
      %p311 = por %p309, %p310
      %p313 = scmp.ne.s32.totalorder %s298, %s312
      %p314 = scmp.eq.s32.totalorder %s36, 0
      %p315 = por %p313, %p314
      %s316 = ssub.s32 %s30, %s37
      %p317 = scmp.eq.s32.totalorder %s316, 0
      %s319 = sadd.s32 %s318, 1
      %s320 = scalar_select %p317, %s318, %s319
      %p323 = pneg %p317
      %p324 = scmp.eq.s32.totalorder %s30, 1
      %p325 = por %p323, %p324
      %p326 = scmp.ne.s32.totalorder %s318, %s321
      %p327 = scmp.eq.s32.totalorder %s30, 0
      %p328 = por %p326, %p327
      %p329 = scmp.ne.s32.totalorder %s318, %s321
      %p330 = scmp.eq.s32.totalorder %s35, 1
      %p331 = por %p329, %p330
      %p332 = scmp.ne.s32.totalorder %s321, %s322
      %p333 = scmp.eq.s32.totalorder %s35, 0
      %p334 = por %p332, %p333
      %p335 = scmp.ne.s32.totalorder %s321, %s322
      %p336 = scmp.eq.s32.totalorder %s36, 1
      %p337 = por %p335, %p336
      %p339 = scmp.ne.s32.totalorder %s322, %s338
      %p340 = scmp.eq.s32.totalorder %s36, 0
      %p341 = por %p339, %p340
      %s342 = ssub.s32 %s30, %s37
      %p343 = scmp.eq.s32.totalorder %s342, 0
      %s345 = sadd.s32 %s344, 1
      %s346 = scalar_select %p343, %s344, %s345
      %p349 = pneg %p343
      %p350 = scmp.eq.s32.totalorder %s30, 1
      %p351 = por %p349, %p350
      %p352 = scmp.ne.s32.totalorder %s344, %s347
      %p353 = scmp.eq.s32.totalorder %s30, 0
      %p354 = por %p352, %p353
      %p355 = scmp.ne.s32.totalorder %s344, %s347
      %p356 = scmp.eq.s32.totalorder %s35, 1
      %p357 = por %p355, %p356
      %p358 = scmp.ne.s32.totalorder %s347, %s348
      %p359 = scmp.eq.s32.totalorder %s35, 0
      %p360 = por %p358, %p359
      %p361 = scmp.ne.s32.totalorder %s347, %s348
      %p362 = scmp.eq.s32.totalorder %s36, 1
      %p363 = por %p361, %p362
      %p365 = scmp.ne.s32.totalorder %s348, %s364
      %p366 = scmp.eq.s32.totalorder %s36, 0
      %p367 = por %p365, %p366
      %p368 = scmp.le.s32.totalorder 1, %s30
      %p369 = scmp.lt.s32.totalorder %s30, 3
      %p370 = pnand %p368, %p369
      %p371 = pneg %p370
      // Predicated region
      $region9: #{tpu_custom_call.1} parent=5 // pred_check
        _
      $region10: #{tpu_custom_call.1} parent=5 // pred_check_branch
        %373 = sbr.rel (%p370) target = $region12
      $region11: #{tpu_custom_call.1} parent=5 // pred_region
        %s374 = ssub.s32 %s30, 1
        // Predicated region
        $region13: #{tpu_custom_call.1} parent=11 // pred_check
          %p375 = pneg %p77
        $region14: #{tpu_custom_call.1} parent=11 // pred_check_branch
          %377 = sbr.rel (%p375) target = $region16
        $region15: #{tpu_custom_call.1} parent=11 // pred_region
          _
        $region16: #{tpu_custom_call.1} parent=11 // pred_fallthru
          _
        // Predicated region
        $region17: #{tpu_custom_call.1} parent=11 // pred_check
          %p378 = pneg %p98
        $region18: #{tpu_custom_call.1} parent=11 // pred_check_branch
          %380 = sbr.rel (%p378) target = $region20
        $region19: #{tpu_custom_call.1} parent=11 // pred_region
          _
        $region20: #{tpu_custom_call.1} parent=11 // pred_fallthru
          _
        // Predicated region
        $region21: #{tpu_custom_call.1} parent=11 // pred_check
          %p381 = pneg %p119
        $region22: #{tpu_custom_call.1} parent=11 // pred_check_branch
          %383 = sbr.rel (%p381) target = $region24
        $region23: #{tpu_custom_call.1} parent=11 // pred_region
          _
        $region24: #{tpu_custom_call.1} parent=11 // pred_fallthru
          _
        // Predicated region
        $region25: #{tpu_custom_call.1} parent=11 // pred_check
          %p384 = pneg %p140
        $region26: #{tpu_custom_call.1} parent=11 // pred_check_branch
          %386 = sbr.rel (%p384) target = $region28
        $region27: #{tpu_custom_call.1} parent=11 // pred_region
          _
        $region28: #{tpu_custom_call.1} parent=11 // pred_fallthru
          _
        // Predicated region
        $region29: #{tpu_custom_call.1} parent=11 // pred_check
          %p387 = pneg %p161
        $region30: #{tpu_custom_call.1} parent=11 // pred_check_branch
          %389 = sbr.rel (%p387) target = $region32
        $region31: #{tpu_custom_call.1} parent=11 // pred_region
          _
        $region32: #{tpu_custom_call.1} parent=11 // pred_fallthru
          _
        // Predicated region
        $region33: #{tpu_custom_call.1} parent=11 // pred_check
          %p390 = pneg %p182
        $region34: #{tpu_custom_call.1} parent=11 // pred_check_branch
          %392 = sbr.rel (%p390) target = $region36
        $region35: #{tpu_custom_call.1} parent=11 // pred_region
          _
        $region36: #{tpu_custom_call.1} parent=11 // pred_fallthru
          _
        // Predicated region
        $region37: #{tpu_custom_call.1} parent=11 // pred_check
          %p393 = pneg %p203
        $region38: #{tpu_custom_call.1} parent=11 // pred_check_branch
          %395 = sbr.rel (%p393) target = $region40
        $region39: #{tpu_custom_call.1} parent=11 // pred_region
          _
        $region40: #{tpu_custom_call.1} parent=11 // pred_fallthru
          _
        // Predicated region
        $region41: #{tpu_custom_call.1} parent=11 // pred_check
          %p396 = pneg %p224
        $region42: #{tpu_custom_call.1} parent=11 // pred_check_branch
          %398 = sbr.rel (%p396) target = $region44
        $region43: #{tpu_custom_call.1} parent=11 // pred_region
          _
        $region44: #{tpu_custom_call.1} parent=11 // pred_fallthru
          _
        // Predicated region
        $region45: #{tpu_custom_call.1} parent=11 // pred_check
          %p399 = pneg %p245
        $region46: #{tpu_custom_call.1} parent=11 // pred_check_branch
          %401 = sbr.rel (%p399) target = $region48
        $region47: #{tpu_custom_call.1} parent=11 // pred_region
          _
        $region48: #{tpu_custom_call.1} parent=11 // pred_fallthru
          _
        // Predicated region
        $region49: #{tpu_custom_call.1} parent=11 // pred_check
          %p402 = pneg %p266
        $region50: #{tpu_custom_call.1} parent=11 // pred_check_branch
          %404 = sbr.rel (%p402) target = $region52
        $region51: #{tpu_custom_call.1} parent=11 // pred_region
          _
        $region52: #{tpu_custom_call.1} parent=11 // pred_fallthru
          _
        // Predicated region
        $region53: #{tpu_custom_call.1} parent=11 // pred_check
          %p405 = pneg %p287
        $region54: #{tpu_custom_call.1} parent=11 // pred_check_branch
          %407 = sbr.rel (%p405) target = $region56
        $region55: #{tpu_custom_call.1} parent=11 // pred_region
          _
        $region56: #{tpu_custom_call.1} parent=11 // pred_fallthru
          _
        // Predicated region
        $region57: #{tpu_custom_call.1} parent=11 // pred_check
          %p408 = pneg %p308
        $region58: #{tpu_custom_call.1} parent=11 // pred_check_branch
          %410 = sbr.rel (%p408) target = $region60
        $region59: #{tpu_custom_call.1} parent=11 // pred_region
          _
        $region60: #{tpu_custom_call.1} parent=11 // pred_fallthru
          _
      $region12: #{tpu_custom_call.1} parent=5 // pred_fallthru
        _
      %p411 = scmp.lt.s32.totalorder %s30, 2
      // Predicated region
      $region61: #{tpu_custom_call.1} parent=5 // pred_check
        %p412 = pneg %p411
      $region62: #{tpu_custom_call.1} parent=5 // pred_check_branch
        %414 = sbr.rel (%p412) target = $region64
      $region63: #{tpu_custom_call.1} parent=5 // pred_region
        // Predicated region
        $region65: #{tpu_custom_call.1} parent=63 // pred_check
          %p415 = pneg %p50
        $region66: #{tpu_custom_call.1} parent=63 // pred_check_branch
          %417 = sbr.rel (%p415) target = $region68
        $region67: #{tpu_custom_call.1} parent=63 // pred_region
          %s418 = sand.u32 %s40, 1
          %s419 = scalar_lea.sflag [#allocation5], %s418
          %s420 = sand.u32 %s40, 1
          %s421 = smul.addr %s420, 8
          %s422 = scalar_lea.vmem [#allocation4], %s421
          %s424 = ssub.s32 128, 128
          %425 = vsyncadd %s419, %s424
          %s426 = smul.addr %s30, 128
          %s427 = scalar_lea.hbm %s0, %s426
          %s429 = sshll.u32 %s422, 4
          %s430 = int_to_ptr.vmem [resolvable:$true] %s429
          %432 = dma.hbm_to_vmem [thread:$0]  %s427, 128, %s430, %s419
        $region68: #{tpu_custom_call.1} parent=63 // pred_fallthru
          _
      $region64: #{tpu_custom_call.1} parent=5 // pred_fallthru
        _
      %p433 = scmp.le.s32.totalorder 1, %s30
      %p434 = scmp.lt.s32.totalorder %s30, 3
      %p435 = pnand %p433, %p434
      %p436 = pneg %p435
      // Predicated region
      $region69: #{tpu_custom_call.1} parent=5 // pred_check
        _
      $region70: #{tpu_custom_call.1} parent=5 // pred_check_branch
        %438 = sbr.rel (%p435) target = $region72
      $region71: #{tpu_custom_call.1} parent=5 // pred_region
        %s439 = ssub.s32 %s30, 1
        %s440 = sand.u32 %s43, 1
        %s441 = scalar_lea.sflag [#allocation5], %s440
        %s442 = sand.u32 %s43, 1
        %s443 = smul.addr %s442, 8
        %s444 = scalar_lea.vmem [#allocation4], %s443
        // Predicated region
        $region73: #{tpu_custom_call.1} parent=71 // pred_check
          %p445 = pneg %p56
        $region74: #{tpu_custom_call.1} parent=71 // pred_check_branch
          %447 = sbr.rel (%p445) target = $region76
        $region75: #{tpu_custom_call.1} parent=71 // pred_region
          %448 = dma.done %s441, 128
        $region76: #{tpu_custom_call.1} parent=71 // pred_fallthru
          _
        %s449 = sand.u32 %s43, 1
        %s450 = scalar_lea.sflag [#allocation5], %s449
        %s451 = sand.u32 %s43, 1
        %s452 = smul.addr %s451, 8
        %s453 = scalar_lea.vmem [#allocation4], %s452
        %p454 = pneg %p56
        %p455 = pneg %p53
        %p456 = pneg %p77
        %p457 = pneg %p74
        %p458 = pneg %p98
        %p459 = pneg %p95
        %p460 = pneg %p119
        %p461 = pneg %p116
        %p462 = pneg %p140
        %p463 = pneg %p137
        %p464 = pneg %p161
        %p465 = pneg %p158
        %p466 = pneg %p182
        %p467 = pneg %p179
        %p468 = pneg %p203
        %p469 = pneg %p200
        %p470 = pneg %p224
        %p471 = pneg %p221
        %p472 = pneg %p245
        %p473 = pneg %p242
        %p474 = pneg %p266
        %p475 = pneg %p263
        %p476 = pneg %p287
        %p477 = pneg %p284
        %p478 = pneg %p308
        %p479 = pneg %p305
        %p480 = pneg %p334
        %p481 = pneg %p331
        %s482 = sand.u32 %s321, 1
        %s483 = scalar_lea.sflag [#allocation6], %s482
        %s484 = sand.u32 %s321, 1
        %s485 = smul.addr %s484, 8
        %s486 = scalar_lea.vmem [#allocation7], %s485
        %p487 = pneg %p360
        %p488 = pneg %p357
        %s489 = sand.u32 %s347, 1
        %s490 = scalar_lea.sflag [#allocation9], %s489
        %s491 = sand.u32 %s347, 1
        %s492 = smul.addr %s491, 8
        %s493 = scalar_lea.vmem [#allocation8], %s492
        %v494 = vld [vmem:[%s444] sm:$0xff]
        %v495 = vld [vmem:[%s1] sm:$0xff]
        %v496 = vld [vmem:[%s1 + $0x8] sm:$0xff]
        %v497 = vld [vmem:[%s1 + $0x10] sm:$0xff]
        %v498 = vld [vmem:[%s1 + $0x18] sm:$0xff]
        %v499 = vld [vmem:[%s2] sm:$0x1]
        %v501 = vlaneseq
        %v502 = vshrl.u32 %v501, 7
        %v503 = vsub.s32 0, %v502
        %v504 = vrot.slane %v499, %v503
        %vm506 = vcmask 261120
        %v508 = vsel %vm506, %v494, 0
        %510 = vmatprep.subr.mxu0 0.0
        %511 = vmatpush1.msra.mxu0 0.0
        %512 = vmatprep.subr.mxu0 0.0
        %513 = vmatpush1.msra.mxu0 0.0
        %514 = vmatprep.subr.mxu0 0.0
        %515 = vmatpush1.msra.mxu0 0.0
        %516 = vmatprep.subr.mxu0 0.0
        %517 = vmatpush1.msra.mxu0 0.0
        %518 = vmatprep.subr.mxu0 0.0
        %519 = vmatpush1.msra.mxu0 0.0
        %520 = vmatprep.subr.mxu0 0.0
        %521 = vmatpush1.msra.mxu0 0.0
        %522 = vmatprep.subr.mxu0 0.0
        %523 = vmatpush1.msra.mxu0 0.0
        %524 = vmatprep.subr.mxu0 0.0
        %525 = vmatpush1.msra.mxu0 0.0
        %526 = vmatprep.subr.mxu0 0.0
        %527 = vmatpush1.msra.mxu0 0.0
        %528 = vmatprep.subr.mxu0 0.0
        %529 = vmatpush1.msra.mxu0 0.0
        %530 = vmatprep.subr.mxu0 0.0
        %531 = vmatpush1.msra.mxu0 0.0
        %532 = vmatprep.subr.mxu0 0.0
        %533 = vmatpush1.msra.mxu0 0.0
        %534 = vmatprep.subr.mxu0 0.0
        %535 = vmatpush1.msra.mxu0 %v498
        %536 = vmatprep.subr.mxu0 0.0
        %537 = vmatpush1.msra.mxu0 %v497
        %538 = vmatprep.subr.mxu0 0.0
        %539 = vmatpush1.msra.mxu0 %v496
        %540 = vmatprep.subr.mxu0 0.0
        %541 = vmatpush1.msra.mxu0 %v495
        %542 = vmatprep.subr.mxu0 0.0
        %543 = vmatpush2.msra.mxu0 0.0
        %544 = vmatprep.subr.mxu0 0.0
        %545 = vmatpush2.msra.mxu0 0.0
        %546 = vmatprep.subr.mxu0 0.0
        %547 = vmatpush2.msra.mxu0 0.0
        %548 = vmatprep.subr.mxu0 0.0
        %549 = vmatpush2.msra.mxu0 0.0
        %550 = vmatprep.subr.mxu0 0.0
        %551 = vmatpush2.msra.mxu0 0.0
        %552 = vmatprep.subr.mxu0 0.0
        %553 = vmatpush2.msra.mxu0 0.0
        %554 = vmatprep.subr.mxu0 0.0
        %555 = vmatpush2.msra.mxu0 0.0
        %556 = vmatprep.subr.mxu0 0.0
        %557 = vmatpush2.msra.mxu0 0.0
        %558 = vmatprep.subr.mxu0 0.0
        %559 = vmatpush2.msra.mxu0 0.0
        %560 = vmatprep.subr.mxu0 0.0
        %561 = vmatpush2.msra.mxu0 0.0
        %562 = vmatprep.subr.mxu0 0.0
        %563 = vmatpush2.msra.mxu0 0.0
        %564 = vmatprep.subr.mxu0 0.0
        %565 = vmatpush2.msra.mxu0 0.0
        %566 = vmatprep.subr.mxu0 0.0
        %567 = vmatpush2.msra.mxu0 0.0
        %568 = vmatprep.subr.mxu0 0.0
        %569 = vmatpush2.msra.mxu0 0.0
        %570 = vmatprep.subr.mxu0 0.0
        %571 = vmatpush2.msra.mxu0 0.0
        %572 = vmatprep.subr.mxu0 0.0
        %573 = vmatpush2.msra.mxu0 0.0
        %574 = vmatprep.mubr.f32.mxu0 0.0
        %575 = vmatmul.mubr.f32.gmra.mxu0 %v508
        %v576 = vpop.f32.mrf.mxu0
        %v577 = vadd.f32 %v504, %v576
        %v578 = vpop.f32.mrf.mxu0
        %579 = vdwg.mxu0
        %vm580 = vcmask 64512
        %581 = vst.msk [vmem:[#allocation3] sm:$0xff] %vm580, 0.0
        %583 = vrot.lane.b32.xlu0 %v577, 120
        %v584 = vpop.permute.xlu0 %583
        %v585 = vsel %vm580, %v577, 0
        %v587 = vsel %vm580, %v584, 0
        %589 = vmatprep.subr.mxu0 0.0
        %590 = vmatpush1.xpose.msra.mxu0 0.0
        %591 = vmatprep.subr.mxu0 0.0
        %592 = vmatpush1.xpose.msra.mxu0 0.0
        %593 = vmatprep.subr.mxu0 0.0
        %594 = vmatpush1.xpose.msra.mxu0 0.0
        %595 = vmatprep.subr.mxu0 0.0
        %596 = vmatpush1.xpose.msra.mxu0 0.0
        %597 = vmatprep.subr.mxu0 0.0
        %598 = vmatpush1.xpose.msra.mxu0 0.0
        %599 = vmatprep.subr.mxu0 0.0
        %600 = vmatpush1.xpose.msra.mxu0 0.0
        %601 = vmatprep.subr.mxu0 0.0
        %602 = vmatpush1.xpose.msra.mxu0 0.0
        %603 = vmatprep.subr.mxu0 0.0
        %604 = vmatpush1.xpose.msra.mxu0 0.0
        %605 = vmatprep.subr.mxu0 0.0
        %606 = vmatpush1.xpose.msra.mxu0 0.0
        %607 = vmatprep.subr.mxu0 0.0
        %608 = vmatpush1.xpose.msra.mxu0 0.0
        %609 = vmatprep.subr.mxu0 0.0
        %610 = vmatpush1.xpose.msra.mxu0 0.0
        %611 = vmatprep.subr.mxu0 0.0
        %612 = vmatpush1.xpose.msra.mxu0 0.0
        %613 = vmatprep.subr.mxu0 0.0
        %614 = vmatpush1.xpose.msra.mxu0 0.0
        %615 = vmatprep.subr.mxu0 0.0
        %616 = vmatpush1.xpose.msra.mxu0 0.0
        %617 = vmatprep.subr.mxu0 0.0
        %618 = vmatpush1.xpose.msra.mxu0 0.0
        %619 = vmatprep.subr.mxu0 0.0
        %620 = vmatpush1.xpose.msra.mxu0 %v587
        %621 = vmatprep.subr.mxu0 0.0
        %622 = vmatpush2.xpose.msra.mxu0 0.0
        %623 = vmatprep.subr.mxu0 0.0
        %624 = vmatpush2.xpose.msra.mxu0 0.0
        %625 = vmatprep.subr.mxu0 0.0
        %626 = vmatpush2.xpose.msra.mxu0 0.0
        %627 = vmatprep.subr.mxu0 0.0
        %628 = vmatpush2.xpose.msra.mxu0 0.0
        %629 = vmatprep.subr.mxu0 0.0
        %630 = vmatpush2.xpose.msra.mxu0 0.0
        %631 = vmatprep.subr.mxu0 0.0
        %632 = vmatpush2.xpose.msra.mxu0 0.0
        %633 = vmatprep.subr.mxu0 0.0
        %634 = vmatpush2.xpose.msra.mxu0 0.0
        %635 = vmatprep.subr.mxu0 0.0
        %636 = vmatpush2.xpose.msra.mxu0 0.0
        %637 = vmatprep.subr.mxu0 0.0
        %638 = vmatpush2.xpose.msra.mxu0 0.0
        %639 = vmatprep.subr.mxu0 0.0
        %640 = vmatpush2.xpose.msra.mxu0 0.0
        %641 = vmatprep.subr.mxu0 0.0
        %642 = vmatpush2.xpose.msra.mxu0 0.0
        %643 = vmatprep.subr.mxu0 0.0
        %644 = vmatpush2.xpose.msra.mxu0 0.0
        %645 = vmatprep.subr.mxu0 0.0
        %646 = vmatpush2.xpose.msra.mxu0 0.0
        %647 = vmatprep.subr.mxu0 0.0
        %648 = vmatpush2.xpose.msra.mxu0 0.0
        %649 = vmatprep.subr.mxu0 0.0
        %650 = vmatpush2.xpose.msra.mxu0 0.0
        %651 = vmatprep.subr.mxu0 0.0
        %652 = vmatpush2.xpose.msra.mxu0 0.0
        %653 = vmatprep.mubr.f32.mxu0 0.0
        %654 = vmatmul.mubr.f32.gmra.mxu0 %v585
        %v655 = vpop.f32.mrf.mxu0
        %v656 = vadd.f32 0.0, %v655
        %v657 = vpop.f32.mrf.mxu0
        %658 = vdwg.mxu0
        %v659 = vsel %vm580, %v656, -inf
        %660 = vmax.xlane.f32.xlu0 %v659
        %v661 = vpop.xlane.xlu0 %660
        %v662 = vsub.f32 %v656, %v661
        %v663 = vmul.f32 %v662, 1.442695
        %v664 = vpow.pop %v663
        %v665 = vsel %vm580, %v664, 0.0
        %666 = vadd.xlane.f32.xlu0 %v665
        %v667 = vpop.xlane.xlu0 %666
        %v668 = vrcp.pop %v667
        %v669 = vmul.f32 %v664, %v668
        %v670 = vld [vmem:[#allocation3] sm:$0xff]
        %v671 = vadd.f32 %v670, %v669
        %672 = vst.msk [vmem:[#allocation3] sm:$0xff] %vm580, %v671
        %673 = vrot.lane.b32.xlu0 %v577, 112
        %v674 = vpop.permute.xlu0 %673
        %v677 = vsel %vm580, %v669, 0
        %679 = vmatprep.subr.mxu0 0.0
        %680 = vmatpush1.msra.mxu0 0.0
        %681 = vmatprep.subr.mxu0 0.0
        %682 = vmatpush1.msra.mxu0 0.0
        %683 = vmatprep.subr.mxu0 0.0
        %684 = vmatpush1.msra.mxu0 0.0
        %685 = vmatprep.subr.mxu0 0.0
        %686 = vmatpush1.msra.mxu0 0.0
        %687 = vmatprep.subr.mxu0 0.0
        %688 = vmatpush1.msra.mxu0 0.0
        %689 = vmatprep.subr.mxu0 0.0
        %690 = vmatpush1.msra.mxu0 0.0
        %691 = vmatprep.subr.mxu0 0.0
        %692 = vmatpush1.msra.mxu0 0.0
        %693 = vmatprep.subr.mxu0 0.0
        %694 = vmatpush1.msra.mxu0 0.0
        %695 = vmatprep.subr.mxu0 0.0
        %696 = vmatpush1.msra.mxu0 0.0
        %697 = vmatprep.subr.mxu0 0.0
        %698 = vmatpush1.msra.mxu0 0.0
        %699 = vmatprep.subr.mxu0 0.0
        %700 = vmatpush1.msra.mxu0 0.0
        %701 = vmatprep.subr.mxu0 0.0
        %702 = vmatpush1.msra.mxu0 0.0
        %703 = vmatprep.subr.mxu0 0.0
        %704 = vmatpush1.msra.mxu0 0.0
        %705 = vmatprep.subr.mxu0 0.0
        %706 = vmatpush1.msra.mxu0 0.0
        %707 = vmatprep.subr.mxu0 0.0
        %708 = vmatpush1.msra.mxu0 0.0
        %709 = vmatprep.subr.mxu0 0.0
        %710 = vmatpush1.msra.mxu0 %v674
        %711 = vmatprep.subr.mxu0 0.0
        %712 = vmatpush2.msra.mxu0 0.0
        %713 = vmatprep.subr.mxu0 0.0
        %714 = vmatpush2.msra.mxu0 0.0
        %715 = vmatprep.subr.mxu0 0.0
        %716 = vmatpush2.msra.mxu0 0.0
        %717 = vmatprep.subr.mxu0 0.0
        %718 = vmatpush2.msra.mxu0 0.0
        %719 = vmatprep.subr.mxu0 0.0
        %720 = vmatpush2.msra.mxu0 0.0
        %721 = vmatprep.subr.mxu0 0.0
        %722 = vmatpush2.msra.mxu0 0.0
        %723 = vmatprep.subr.mxu0 0.0
        %724 = vmatpush2.msra.mxu0 0.0
        %725 = vmatprep.subr.mxu0 0.0
        %726 = vmatpush2.msra.mxu0 0.0
        %727 = vmatprep.subr.mxu0 0.0
        %728 = vmatpush2.msra.mxu0 0.0
        %729 = vmatprep.subr.mxu0 0.0
        %730 = vmatpush2.msra.mxu0 0.0
        %731 = vmatprep.subr.mxu0 0.0
        %732 = vmatpush2.msra.mxu0 0.0
        %733 = vmatprep.subr.mxu0 0.0
        %734 = vmatpush2.msra.mxu0 0.0
        %735 = vmatprep.subr.mxu0 0.0
        %736 = vmatpush2.msra.mxu0 0.0
        %737 = vmatprep.subr.mxu0 0.0
        %738 = vmatpush2.msra.mxu0 0.0
        %739 = vmatprep.subr.mxu0 0.0
        %740 = vmatpush2.msra.mxu0 0.0
        %741 = vmatprep.subr.mxu0 0.0
        %742 = vmatpush2.msra.mxu0 0.0
        %743 = vmatprep.mubr.f32.mxu0 0.0
        %744 = vmatmul.mubr.f32.gmra.mxu0 %v677
        %v745 = vpop.f32.mrf.mxu0
        %v746 = vadd.f32 0.0, %v745
        %v747 = vpop.f32.mrf.mxu0
        %748 = vdwg.mxu0
        %749 = vst.msk [vmem:[#allocation2] sm:$0xff] %vm580, %v746
        %750 = vrot.lane.b32.xlu0 %v577, 104
        %v751 = vpop.permute.xlu0 %750
        %752 = vrot.lane.b32.xlu0 %v577, 96
        %v753 = vpop.permute.xlu0 %752
        %v754 = vsel %vm580, %v751, 0
        %v756 = vsel %vm580, %v753, 0
        %758 = vmatprep.subr.mxu0 0.0
        %759 = vmatpush1.xpose.msra.mxu0 0.0
        %760 = vmatprep.subr.mxu0 0.0
        %761 = vmatpush1.xpose.msra.mxu0 0.0
        %762 = vmatprep.subr.mxu0 0.0
        %763 = vmatpush1.xpose.msra.mxu0 0.0
        %764 = vmatprep.subr.mxu0 0.0
        %765 = vmatpush1.xpose.msra.mxu0 0.0
        %766 = vmatprep.subr.mxu0 0.0
        %767 = vmatpush1.xpose.msra.mxu0 0.0
        %768 = vmatprep.subr.mxu0 0.0
        %769 = vmatpush1.xpose.msra.mxu0 0.0
        %770 = vmatprep.subr.mxu0 0.0
        %771 = vmatpush1.xpose.msra.mxu0 0.0
        %772 = vmatprep.subr.mxu0 0.0
        %773 = vmatpush1.xpose.msra.mxu0 0.0
        %774 = vmatprep.subr.mxu0 0.0
        %775 = vmatpush1.xpose.msra.mxu0 0.0
        %776 = vmatprep.subr.mxu0 0.0
        %777 = vmatpush1.xpose.msra.mxu0 0.0
        %778 = vmatprep.subr.mxu0 0.0
        %779 = vmatpush1.xpose.msra.mxu0 0.0
        %780 = vmatprep.subr.mxu0 0.0
        %781 = vmatpush1.xpose.msra.mxu0 0.0
        %782 = vmatprep.subr.mxu0 0.0
        %783 = vmatpush1.xpose.msra.mxu0 0.0
        %784 = vmatprep.subr.mxu0 0.0
        %785 = vmatpush1.xpose.msra.mxu0 0.0
        %786 = vmatprep.subr.mxu0 0.0
        %787 = vmatpush1.xpose.msra.mxu0 0.0
        %788 = vmatprep.subr.mxu0 0.0
        %789 = vmatpush1.xpose.msra.mxu0 %v756
        %790 = vmatprep.subr.mxu0 0.0
        %791 = vmatpush2.xpose.msra.mxu0 0.0
        %792 = vmatprep.subr.mxu0 0.0
        %793 = vmatpush2.xpose.msra.mxu0 0.0
        %794 = vmatprep.subr.mxu0 0.0
        %795 = vmatpush2.xpose.msra.mxu0 0.0
        %796 = vmatprep.subr.mxu0 0.0
        %797 = vmatpush2.xpose.msra.mxu0 0.0
        %798 = vmatprep.subr.mxu0 0.0
        %799 = vmatpush2.xpose.msra.mxu0 0.0
        %800 = vmatprep.subr.mxu0 0.0
        %801 = vmatpush2.xpose.msra.mxu0 0.0
        %802 = vmatprep.subr.mxu0 0.0
        %803 = vmatpush2.xpose.msra.mxu0 0.0
        %804 = vmatprep.subr.mxu0 0.0
        %805 = vmatpush2.xpose.msra.mxu0 0.0
        %806 = vmatprep.subr.mxu0 0.0
        %807 = vmatpush2.xpose.msra.mxu0 0.0
        %808 = vmatprep.subr.mxu0 0.0
        %809 = vmatpush2.xpose.msra.mxu0 0.0
        %810 = vmatprep.subr.mxu0 0.0
        %811 = vmatpush2.xpose.msra.mxu0 0.0
        %812 = vmatprep.subr.mxu0 0.0
        %813 = vmatpush2.xpose.msra.mxu0 0.0
        %814 = vmatprep.subr.mxu0 0.0
        %815 = vmatpush2.xpose.msra.mxu0 0.0
        %816 = vmatprep.subr.mxu0 0.0
        %817 = vmatpush2.xpose.msra.mxu0 0.0
        %818 = vmatprep.subr.mxu0 0.0
        %819 = vmatpush2.xpose.msra.mxu0 0.0
        %820 = vmatprep.subr.mxu0 0.0
        %821 = vmatpush2.xpose.msra.mxu0 0.0
        %822 = vmatprep.mubr.f32.mxu0 0.0
        %823 = vmatmul.mubr.f32.gmra.mxu0 %v754
        %v824 = vpop.f32.mrf.mxu0
        %v825 = vadd.f32 0.0, %v824
        %v826 = vpop.f32.mrf.mxu0
        %827 = vdwg.mxu0
        %v828 = vsel %vm580, %v825, -inf
        %829 = vmax.xlane.f32.xlu0 %v828
        %v830 = vpop.xlane.xlu0 %829
        %v831 = vsub.f32 %v825, %v830
        %v832 = vmul.f32 %v831, 1.442695
        %v833 = vpow.pop %v832
        %v834 = vsel %vm580, %v833, 0.0
        %835 = vadd.xlane.f32.xlu0 %v834
        %v836 = vpop.xlane.xlu0 %835
        %v837 = vrcp.pop %v836
        %v838 = vmul.f32 %v833, %v837
        %v839 = vld [vmem:[#allocation3] sm:$0xff]
        %v840 = vadd.f32 %v839, %v838
        %841 = vst.msk [vmem:[#allocation3] sm:$0xff] %vm580, %v840
        %842 = vrot.lane.b32.xlu0 %v577, 88
        %v843 = vpop.permute.xlu0 %842
        %v846 = vsel %vm580, %v838, 0
        %848 = vmatprep.subr.mxu0 0.0
        %849 = vmatpush1.msra.mxu0 0.0
        %850 = vmatprep.subr.mxu0 0.0
        %851 = vmatpush1.msra.mxu0 0.0
        %852 = vmatprep.subr.mxu0 0.0
        %853 = vmatpush1.msra.mxu0 0.0
        %854 = vmatprep.subr.mxu0 0.0
        %855 = vmatpush1.msra.mxu0 0.0
        %856 = vmatprep.subr.mxu0 0.0
        %857 = vmatpush1.msra.mxu0 0.0
        %858 = vmatprep.subr.mxu0 0.0
        %859 = vmatpush1.msra.mxu0 0.0
        %860 = vmatprep.subr.mxu0 0.0
        %861 = vmatpush1.msra.mxu0 0.0
        %862 = vmatprep.subr.mxu0 0.0
        %863 = vmatpush1.msra.mxu0 0.0
        %864 = vmatprep.subr.mxu0 0.0
        %865 = vmatpush1.msra.mxu0 0.0
        %866 = vmatprep.subr.mxu0 0.0
        %867 = vmatpush1.msra.mxu0 0.0
        %868 = vmatprep.subr.mxu0 0.0
        %869 = vmatpush1.msra.mxu0 0.0
        %870 = vmatprep.subr.mxu0 0.0
        %871 = vmatpush1.msra.mxu0 0.0
        %872 = vmatprep.subr.mxu0 0.0
        %873 = vmatpush1.msra.mxu0 0.0
        %874 = vmatprep.subr.mxu0 0.0
        %875 = vmatpush1.msra.mxu0 0.0
        %876 = vmatprep.subr.mxu0 0.0
        %877 = vmatpush1.msra.mxu0 0.0
        %878 = vmatprep.subr.mxu0 0.0
        %879 = vmatpush1.msra.mxu0 %v843
        %880 = vmatprep.subr.mxu0 0.0
        %881 = vmatpush2.msra.mxu0 0.0
        %882 = vmatprep.subr.mxu0 0.0
        %883 = vmatpush2.msra.mxu0 0.0
        %884 = vmatprep.subr.mxu0 0.0
        %885 = vmatpush2.msra.mxu0 0.0
        %886 = vmatprep.subr.mxu0 0.0
        %887 = vmatpush2.msra.mxu0 0.0
        %888 = vmatprep.subr.mxu0 0.0
        %889 = vmatpush2.msra.mxu0 0.0
        %890 = vmatprep.subr.mxu0 0.0
        %891 = vmatpush2.msra.mxu0 0.0
        %892 = vmatprep.subr.mxu0 0.0
        %893 = vmatpush2.msra.mxu0 0.0
        %894 = vmatprep.subr.mxu0 0.0
        %895 = vmatpush2.msra.mxu0 0.0
        %896 = vmatprep.subr.mxu0 0.0
        %897 = vmatpush2.msra.mxu0 0.0
        %898 = vmatprep.subr.mxu0 0.0
        %899 = vmatpush2.msra.mxu0 0.0
        %900 = vmatprep.subr.mxu0 0.0
        %901 = vmatpush2.msra.mxu0 0.0
        %902 = vmatprep.subr.mxu0 0.0
        %903 = vmatpush2.msra.mxu0 0.0
        %904 = vmatprep.subr.mxu0 0.0
        %905 = vmatpush2.msra.mxu0 0.0
        %906 = vmatprep.subr.mxu0 0.0
        %907 = vmatpush2.msra.mxu0 0.0
        %908 = vmatprep.subr.mxu0 0.0
        %909 = vmatpush2.msra.mxu0 0.0
        %910 = vmatprep.subr.mxu0 0.0
        %911 = vmatpush2.msra.mxu0 0.0
        %912 = vmatprep.mubr.f32.mxu0 0.0
        %913 = vmatmul.mubr.f32.gmra.mxu0 %v846
        %v914 = vpop.f32.mrf.mxu0
        %v915 = vadd.f32 0.0, %v914
        %v916 = vpop.f32.mrf.mxu0
        %917 = vdwg.mxu0
        %918 = vst.msk [vmem:[#allocation2 + $0x8] sm:$0xff] %vm580, %v915
        %919 = vrot.lane.b32.xlu0 %v577, 80
        %v920 = vpop.permute.xlu0 %919
        %921 = vrot.lane.b32.xlu0 %v577, 72
        %v922 = vpop.permute.xlu0 %921
        %v923 = vsel %vm580, %v920, 0
        %v925 = vsel %vm580, %v922, 0
        %927 = vmatprep.subr.mxu0 0.0
        %928 = vmatpush1.xpose.msra.mxu0 0.0
        %929 = vmatprep.subr.mxu0 0.0
        %930 = vmatpush1.xpose.msra.mxu0 0.0
        %931 = vmatprep.subr.mxu0 0.0
        %932 = vmatpush1.xpose.msra.mxu0 0.0
        %933 = vmatprep.subr.mxu0 0.0
        %934 = vmatpush1.xpose.msra.mxu0 0.0
        %935 = vmatprep.subr.mxu0 0.0
        %936 = vmatpush1.xpose.msra.mxu0 0.0
        %937 = vmatprep.subr.mxu0 0.0
        %938 = vmatpush1.xpose.msra.mxu0 0.0
        %939 = vmatprep.subr.mxu0 0.0
        %940 = vmatpush1.xpose.msra.mxu0 0.0
        %941 = vmatprep.subr.mxu0 0.0
        %942 = vmatpush1.xpose.msra.mxu0 0.0
        %943 = vmatprep.subr.mxu0 0.0
        %944 = vmatpush1.xpose.msra.mxu0 0.0
        %945 = vmatprep.subr.mxu0 0.0
        %946 = vmatpush1.xpose.msra.mxu0 0.0
        %947 = vmatprep.subr.mxu0 0.0
        %948 = vmatpush1.xpose.msra.mxu0 0.0
        %949 = vmatprep.subr.mxu0 0.0
        %950 = vmatpush1.xpose.msra.mxu0 0.0
        %951 = vmatprep.subr.mxu0 0.0
        %952 = vmatpush1.xpose.msra.mxu0 0.0
        %953 = vmatprep.subr.mxu0 0.0
        %954 = vmatpush1.xpose.msra.mxu0 0.0
        %955 = vmatprep.subr.mxu0 0.0
        %956 = vmatpush1.xpose.msra.mxu0 0.0
        %957 = vmatprep.subr.mxu0 0.0
        %958 = vmatpush1.xpose.msra.mxu0 %v925
        %959 = vmatprep.subr.mxu0 0.0
        %960 = vmatpush2.xpose.msra.mxu0 0.0
        %961 = vmatprep.subr.mxu0 0.0
        %962 = vmatpush2.xpose.msra.mxu0 0.0
        %963 = vmatprep.subr.mxu0 0.0
        %964 = vmatpush2.xpose.msra.mxu0 0.0
        %965 = vmatprep.subr.mxu0 0.0
        %966 = vmatpush2.xpose.msra.mxu0 0.0
        %967 = vmatprep.subr.mxu0 0.0
        %968 = vmatpush2.xpose.msra.mxu0 0.0
        %969 = vmatprep.subr.mxu0 0.0
        %970 = vmatpush2.xpose.msra.mxu0 0.0
        %971 = vmatprep.subr.mxu0 0.0
        %972 = vmatpush2.xpose.msra.mxu0 0.0
        %973 = vmatprep.subr.mxu0 0.0
        %974 = vmatpush2.xpose.msra.mxu0 0.0
        %975 = vmatprep.subr.mxu0 0.0
        %976 = vmatpush2.xpose.msra.mxu0 0.0
        %977 = vmatprep.subr.mxu0 0.0
        %978 = vmatpush2.xpose.msra.mxu0 0.0
        %979 = vmatprep.subr.mxu0 0.0
        %980 = vmatpush2.xpose.msra.mxu0 0.0
        %981 = vmatprep.subr.mxu0 0.0
        %982 = vmatpush2.xpose.msra.mxu0 0.0
        %983 = vmatprep.subr.mxu0 0.0
        %984 = vmatpush2.xpose.msra.mxu0 0.0
        %985 = vmatprep.subr.mxu0 0.0
        %986 = vmatpush2.xpose.msra.mxu0 0.0
        %987 = vmatprep.subr.mxu0 0.0
        %988 = vmatpush2.xpose.msra.mxu0 0.0
        %989 = vmatprep.subr.mxu0 0.0
        %990 = vmatpush2.xpose.msra.mxu0 0.0
        %991 = vmatprep.mubr.f32.mxu0 0.0
        %992 = vmatmul.mubr.f32.gmra.mxu0 %v923
        %v993 = vpop.f32.mrf.mxu0
        %v994 = vadd.f32 0.0, %v993
        %v995 = vpop.f32.mrf.mxu0
        %996 = vdwg.mxu0
        %v997 = vsel %vm580, %v994, -inf
        %998 = vmax.xlane.f32.xlu0 %v997
        %v999 = vpop.xlane.xlu0 %998
        %v1000 = vsub.f32 %v994, %v999
        %v1001 = vmul.f32 %v1000, 1.442695
        %v1002 = vpow.pop %v1001
        %v1003 = vsel %vm580, %v1002, 0.0
        %1004 = vadd.xlane.f32.xlu0 %v1003
        %v1005 = vpop.xlane.xlu0 %1004
        %v1006 = vrcp.pop %v1005
        %v1007 = vmul.f32 %v1002, %v1006
        %v1008 = vld [vmem:[#allocation3] sm:$0xff]
        %v1009 = vadd.f32 %v1008, %v1007
        %1010 = vst.msk [vmem:[#allocation3] sm:$0xff] %vm580, %v1009
        %1011 = vrot.lane.b32.xlu0 %v577, 64
        %v1012 = vpop.permute.xlu0 %1011
        %v1015 = vsel %vm580, %v1007, 0
        %1017 = vmatprep.subr.mxu0 0.0
        %1018 = vmatpush1.msra.mxu0 0.0
        %1019 = vmatprep.subr.mxu0 0.0
        %1020 = vmatpush1.msra.mxu0 0.0
        %1021 = vmatprep.subr.mxu0 0.0
        %1022 = vmatpush1.msra.mxu0 0.0
        %1023 = vmatprep.subr.mxu0 0.0
        %1024 = vmatpush1.msra.mxu0 0.0
        %1025 = vmatprep.subr.mxu0 0.0
        %1026 = vmatpush1.msra.mxu0 0.0
        %1027 = vmatprep.subr.mxu0 0.0
        %1028 = vmatpush1.msra.mxu0 0.0
        %1029 = vmatprep.subr.mxu0 0.0
        %1030 = vmatpush1.msra.mxu0 0.0
        %1031 = vmatprep.subr.mxu0 0.0
        %1032 = vmatpush1.msra.mxu0 0.0
        %1033 = vmatprep.subr.mxu0 0.0
        %1034 = vmatpush1.msra.mxu0 0.0
        %1035 = vmatprep.subr.mxu0 0.0
        %1036 = vmatpush1.msra.mxu0 0.0
        %1037 = vmatprep.subr.mxu0 0.0
        %1038 = vmatpush1.msra.mxu0 0.0
        %1039 = vmatprep.subr.mxu0 0.0
        %1040 = vmatpush1.msra.mxu0 0.0
        %1041 = vmatprep.subr.mxu0 0.0
        %1042 = vmatpush1.msra.mxu0 0.0
        %1043 = vmatprep.subr.mxu0 0.0
        %1044 = vmatpush1.msra.mxu0 0.0
        %1045 = vmatprep.subr.mxu0 0.0
        %1046 = vmatpush1.msra.mxu0 0.0
        %1047 = vmatprep.subr.mxu0 0.0
        %1048 = vmatpush1.msra.mxu0 %v1012
        %1049 = vmatprep.subr.mxu0 0.0
        %1050 = vmatpush2.msra.mxu0 0.0
        %1051 = vmatprep.subr.mxu0 0.0
        %1052 = vmatpush2.msra.mxu0 0.0
        %1053 = vmatprep.subr.mxu0 0.0
        %1054 = vmatpush2.msra.mxu0 0.0
        %1055 = vmatprep.subr.mxu0 0.0
        %1056 = vmatpush2.msra.mxu0 0.0
        %1057 = vmatprep.subr.mxu0 0.0
        %1058 = vmatpush2.msra.mxu0 0.0
        %1059 = vmatprep.subr.mxu0 0.0
        %1060 = vmatpush2.msra.mxu0 0.0
        %1061 = vmatprep.subr.mxu0 0.0
        %1062 = vmatpush2.msra.mxu0 0.0
        %1063 = vmatprep.subr.mxu0 0.0
        %1064 = vmatpush2.msra.mxu0 0.0
        %1065 = vmatprep.subr.mxu0 0.0
        %1066 = vmatpush2.msra.mxu0 0.0
        %1067 = vmatprep.subr.mxu0 0.0
        %1068 = vmatpush2.msra.mxu0 0.0
        %1069 = vmatprep.subr.mxu0 0.0
        %1070 = vmatpush2.msra.mxu0 0.0
        %1071 = vmatprep.subr.mxu0 0.0
        %1072 = vmatpush2.msra.mxu0 0.0
        %1073 = vmatprep.subr.mxu0 0.0
        %1074 = vmatpush2.msra.mxu0 0.0
        %1075 = vmatprep.subr.mxu0 0.0
        %1076 = vmatpush2.msra.mxu0 0.0
        %1077 = vmatprep.subr.mxu0 0.0
        %1078 = vmatpush2.msra.mxu0 0.0
        %1079 = vmatprep.subr.mxu0 0.0
        %1080 = vmatpush2.msra.mxu0 0.0
        %1081 = vmatprep.mubr.f32.mxu0 0.0
        %1082 = vmatmul.mubr.f32.gmra.mxu0 %v1015
        %v1083 = vpop.f32.mrf.mxu0
        %v1084 = vadd.f32 0.0, %v1083
        %v1085 = vpop.f32.mrf.mxu0
        %1086 = vdwg.mxu0
        %1087 = vst.msk [vmem:[#allocation2 + $0x10] sm:$0xff] %vm580, %v1084
        %1088 = vrot.lane.b32.xlu0 %v577, 56
        %v1089 = vpop.permute.xlu0 %1088
        %1090 = vrot.lane.b32.xlu0 %v577, 48
        %v1091 = vpop.permute.xlu0 %1090
        %v1092 = vsel %vm580, %v1089, 0
        %v1094 = vsel %vm580, %v1091, 0
        %1096 = vmatprep.subr.mxu0 0.0
        %1097 = vmatpush1.xpose.msra.mxu0 0.0
        %1098 = vmatprep.subr.mxu0 0.0
        %1099 = vmatpush1.xpose.msra.mxu0 0.0
        %1100 = vmatprep.subr.mxu0 0.0
        %1101 = vmatpush1.xpose.msra.mxu0 0.0
        %1102 = vmatprep.subr.mxu0 0.0
        %1103 = vmatpush1.xpose.msra.mxu0 0.0
        %1104 = vmatprep.subr.mxu0 0.0
        %1105 = vmatpush1.xpose.msra.mxu0 0.0
        %1106 = vmatprep.subr.mxu0 0.0
        %1107 = vmatpush1.xpose.msra.mxu0 0.0
        %1108 = vmatprep.subr.mxu0 0.0
        %1109 = vmatpush1.xpose.msra.mxu0 0.0
        %1110 = vmatprep.subr.mxu0 0.0
        %1111 = vmatpush1.xpose.msra.mxu0 0.0
        %1112 = vmatprep.subr.mxu0 0.0
        %1113 = vmatpush1.xpose.msra.mxu0 0.0
        %1114 = vmatprep.subr.mxu0 0.0
        %1115 = vmatpush1.xpose.msra.mxu0 0.0
        %1116 = vmatprep.subr.mxu0 0.0
        %1117 = vmatpush1.xpose.msra.mxu0 0.0
        %1118 = vmatprep.subr.mxu0 0.0
        %1119 = vmatpush1.xpose.msra.mxu0 0.0
        %1120 = vmatprep.subr.mxu0 0.0
        %1121 = vmatpush1.xpose.msra.mxu0 0.0
        %1122 = vmatprep.subr.mxu0 0.0
        %1123 = vmatpush1.xpose.msra.mxu0 0.0
        %1124 = vmatprep.subr.mxu0 0.0
        %1125 = vmatpush1.xpose.msra.mxu0 0.0
        %1126 = vmatprep.subr.mxu0 0.0
        %1127 = vmatpush1.xpose.msra.mxu0 %v1094
        %1128 = vmatprep.subr.mxu0 0.0
        %1129 = vmatpush2.xpose.msra.mxu0 0.0
        %1130 = vmatprep.subr.mxu0 0.0
        %1131 = vmatpush2.xpose.msra.mxu0 0.0
        %1132 = vmatprep.subr.mxu0 0.0
        %1133 = vmatpush2.xpose.msra.mxu0 0.0
        %1134 = vmatprep.subr.mxu0 0.0
        %1135 = vmatpush2.xpose.msra.mxu0 0.0
        %1136 = vmatprep.subr.mxu0 0.0
        %1137 = vmatpush2.xpose.msra.mxu0 0.0
        %1138 = vmatprep.subr.mxu0 0.0
        %1139 = vmatpush2.xpose.msra.mxu0 0.0
        %1140 = vmatprep.subr.mxu0 0.0
        %1141 = vmatpush2.xpose.msra.mxu0 0.0
        %1142 = vmatprep.subr.mxu0 0.0
        %1143 = vmatpush2.xpose.msra.mxu0 0.0
        %1144 = vmatprep.subr.mxu0 0.0
        %1145 = vmatpush2.xpose.msra.mxu0 0.0
        %1146 = vmatprep.subr.mxu0 0.0
        %1147 = vmatpush2.xpose.msra.mxu0 0.0
        %1148 = vmatprep.subr.mxu0 0.0
        %1149 = vmatpush2.xpose.msra.mxu0 0.0
        %1150 = vmatprep.subr.mxu0 0.0
        %1151 = vmatpush2.xpose.msra.mxu0 0.0
        %1152 = vmatprep.subr.mxu0 0.0
        %1153 = vmatpush2.xpose.msra.mxu0 0.0
        %1154 = vmatprep.subr.mxu0 0.0
        %1155 = vmatpush2.xpose.msra.mxu0 0.0
        %1156 = vmatprep.subr.mxu0 0.0
        %1157 = vmatpush2.xpose.msra.mxu0 0.0
        %1158 = vmatprep.subr.mxu0 0.0
        %1159 = vmatpush2.xpose.msra.mxu0 0.0
        %1160 = vmatprep.mubr.f32.mxu0 0.0
        %1161 = vmatmul.mubr.f32.gmra.mxu0 %v1092
        %v1162 = vpop.f32.mrf.mxu0
        %v1163 = vadd.f32 0.0, %v1162
        %v1164 = vpop.f32.mrf.mxu0
        %1165 = vdwg.mxu0
        %v1166 = vsel %vm580, %v1163, -inf
        %1167 = vmax.xlane.f32.xlu0 %v1166
        %v1168 = vpop.xlane.xlu0 %1167
        %v1169 = vsub.f32 %v1163, %v1168
        %v1170 = vmul.f32 %v1169, 1.442695
        %v1171 = vpow.pop %v1170
        %v1172 = vsel %vm580, %v1171, 0.0
        %1173 = vadd.xlane.f32.xlu0 %v1172
        %v1174 = vpop.xlane.xlu0 %1173
        %v1175 = vrcp.pop %v1174
        %v1176 = vmul.f32 %v1171, %v1175
        %v1177 = vld [vmem:[#allocation3] sm:$0xff]
        %v1178 = vadd.f32 %v1177, %v1176
        %1179 = vst.msk [vmem:[#allocation3] sm:$0xff] %vm580, %v1178
        %1180 = vrot.lane.b32.xlu0 %v577, 40
        %v1181 = vpop.permute.xlu0 %1180
        %v1184 = vsel %vm580, %v1176, 0
        %1186 = vmatprep.subr.mxu0 0.0
        %1187 = vmatpush1.msra.mxu0 0.0
        %1188 = vmatprep.subr.mxu0 0.0
        %1189 = vmatpush1.msra.mxu0 0.0
        %1190 = vmatprep.subr.mxu0 0.0
        %1191 = vmatpush1.msra.mxu0 0.0
        %1192 = vmatprep.subr.mxu0 0.0
        %1193 = vmatpush1.msra.mxu0 0.0
        %1194 = vmatprep.subr.mxu0 0.0
        %1195 = vmatpush1.msra.mxu0 0.0
        %1196 = vmatprep.subr.mxu0 0.0
        %1197 = vmatpush1.msra.mxu0 0.0
        %1198 = vmatprep.subr.mxu0 0.0
        %1199 = vmatpush1.msra.mxu0 0.0
        %1200 = vmatprep.subr.mxu0 0.0
        %1201 = vmatpush1.msra.mxu0 0.0
        %1202 = vmatprep.subr.mxu0 0.0
        %1203 = vmatpush1.msra.mxu0 0.0
        %1204 = vmatprep.subr.mxu0 0.0
        %1205 = vmatpush1.msra.mxu0 0.0
        %1206 = vmatprep.subr.mxu0 0.0
        %1207 = vmatpush1.msra.mxu0 0.0
        %1208 = vmatprep.subr.mxu0 0.0
        %1209 = vmatpush1.msra.mxu0 0.0
        %1210 = vmatprep.subr.mxu0 0.0
        %1211 = vmatpush1.msra.mxu0 0.0
        %1212 = vmatprep.subr.mxu0 0.0
        %1213 = vmatpush1.msra.mxu0 0.0
        %1214 = vmatprep.subr.mxu0 0.0
        %1215 = vmatpush1.msra.mxu0 0.0
        %1216 = vmatprep.subr.mxu0 0.0
        %1217 = vmatpush1.msra.mxu0 %v1181
        %1218 = vmatprep.subr.mxu0 0.0
        %1219 = vmatpush2.msra.mxu0 0.0
        %1220 = vmatprep.subr.mxu0 0.0
        %1221 = vmatpush2.msra.mxu0 0.0
        %1222 = vmatprep.subr.mxu0 0.0
        %1223 = vmatpush2.msra.mxu0 0.0
        %1224 = vmatprep.subr.mxu0 0.0
        %1225 = vmatpush2.msra.mxu0 0.0
        %1226 = vmatprep.subr.mxu0 0.0
        %1227 = vmatpush2.msra.mxu0 0.0
        %1228 = vmatprep.subr.mxu0 0.0
        %1229 = vmatpush2.msra.mxu0 0.0
        %1230 = vmatprep.subr.mxu0 0.0
        %1231 = vmatpush2.msra.mxu0 0.0
        %1232 = vmatprep.subr.mxu0 0.0
        %1233 = vmatpush2.msra.mxu0 0.0
        %1234 = vmatprep.subr.mxu0 0.0
        %1235 = vmatpush2.msra.mxu0 0.0
        %1236 = vmatprep.subr.mxu0 0.0
        %1237 = vmatpush2.msra.mxu0 0.0
        %1238 = vmatprep.subr.mxu0 0.0
        %1239 = vmatpush2.msra.mxu0 0.0
        %1240 = vmatprep.subr.mxu0 0.0
        %1241 = vmatpush2.msra.mxu0 0.0
        %1242 = vmatprep.subr.mxu0 0.0
        %1243 = vmatpush2.msra.mxu0 0.0
        %1244 = vmatprep.subr.mxu0 0.0
        %1245 = vmatpush2.msra.mxu0 0.0
        %1246 = vmatprep.subr.mxu0 0.0
        %1247 = vmatpush2.msra.mxu0 0.0
        %1248 = vmatprep.subr.mxu0 0.0
        %1249 = vmatpush2.msra.mxu0 0.0
        %1250 = vmatprep.mubr.f32.mxu0 0.0
        %1251 = vmatmul.mubr.f32.gmra.mxu0 %v1184
        %v1252 = vpop.f32.mrf.mxu0
        %v1253 = vadd.f32 0.0, %v1252
        %v1254 = vpop.f32.mrf.mxu0
        %1255 = vdwg.mxu0
        %1256 = vst.msk [vmem:[#allocation2 + $0x18] sm:$0xff] %vm580, %v1253
        %v1257 = vld [vmem:[#allocation3] sm:$0xff]
        %v1258 = vmul.f32 %v1257, 0.25
        %1259 = vst.msk [vmem:[%s493] sm:$0xff] %vm580, %v1258
        %v1260 = vld [vmem:[#allocation2] ss:$4 sm:$0xff]
        %s1261 = scalar_lea.vmem [#allocation2], 1
        %v1262 = vld [vmem:[%s1261] ss:$4 sm:$0xff]
        %s1263 = scalar_lea.vmem [#allocation2], 2
        %v1264 = vld [vmem:[%s1263] ss:$4 sm:$0xff]
        %s1265 = scalar_lea.vmem [#allocation2], 3
        %v1266 = vld [vmem:[%s1265] ss:$4 sm:$0xff]
        %1268 = vrot.lane.b32.xlu0 %v1262, 8
        %v1269 = vpop.permute.xlu0 %1268
        %1272 = vrot.lane.b32.xlu0 %v1264, 16
        %v1273 = vpop.permute.xlu0 %1272
        %1276 = vrot.lane.b32.xlu0 %v1266, 24
        %v1277 = vpop.permute.xlu0 %1276
        %v1279 = vsel %vm580, %v1260, %v1269
        %vm1280 = vcmask 130048
        %v1281 = vsel %vm1280, %v1279, %v1273
        %vm1282 = vcmask 195584
        %v1283 = vsel %vm1282, %v1281, %v1277
        %v1284 = vld [vmem:[%s3] sm:$0xff]
        %v1285 = vld [vmem:[%s3 + $0x8] sm:$0xff]
        %v1286 = vld [vmem:[%s3 + $0x10] sm:$0xff]
        %v1287 = vld [vmem:[%s3 + $0x18] sm:$0xff]
        %v1288 = vld [vmem:[%s4] sm:$0x1]
        %v1290 = vlaneseq
        %v1291 = vshrl.u32 %v1290, 7
        %v1292 = vsub.s32 0, %v1291
        %v1293 = vrot.slane %v1288, %v1292
        %v1296 = vsel %vm506, %v1283, 0
        %1298 = vmatprep.subr.mxu0 0.0
        %1299 = vmatpush1.msra.mxu0 0.0
        %1300 = vmatprep.subr.mxu0 0.0
        %1301 = vmatpush1.msra.mxu0 0.0
        %1302 = vmatprep.subr.mxu0 0.0
        %1303 = vmatpush1.msra.mxu0 0.0
        %1304 = vmatprep.subr.mxu0 0.0
        %1305 = vmatpush1.msra.mxu0 0.0
        %1306 = vmatprep.subr.mxu0 0.0
        %1307 = vmatpush1.msra.mxu0 0.0
        %1308 = vmatprep.subr.mxu0 0.0
        %1309 = vmatpush1.msra.mxu0 0.0
        %1310 = vmatprep.subr.mxu0 0.0
        %1311 = vmatpush1.msra.mxu0 0.0
        %1312 = vmatprep.subr.mxu0 0.0
        %1313 = vmatpush1.msra.mxu0 0.0
        %1314 = vmatprep.subr.mxu0 0.0
        %1315 = vmatpush1.msra.mxu0 0.0
        %1316 = vmatprep.subr.mxu0 0.0
        %1317 = vmatpush1.msra.mxu0 0.0
        %1318 = vmatprep.subr.mxu0 0.0
        %1319 = vmatpush1.msra.mxu0 0.0
        %1320 = vmatprep.subr.mxu0 0.0
        %1321 = vmatpush1.msra.mxu0 0.0
        %1322 = vmatprep.subr.mxu0 0.0
        %1323 = vmatpush1.msra.mxu0 %v1287
        %1324 = vmatprep.subr.mxu0 0.0
        %1325 = vmatpush1.msra.mxu0 %v1286
        %1326 = vmatprep.subr.mxu0 0.0
        %1327 = vmatpush1.msra.mxu0 %v1285
        %1328 = vmatprep.subr.mxu0 0.0
        %1329 = vmatpush1.msra.mxu0 %v1284
        %1330 = vmatprep.subr.mxu0 0.0
        %1331 = vmatpush2.msra.mxu0 0.0
        %1332 = vmatprep.subr.mxu0 0.0
        %1333 = vmatpush2.msra.mxu0 0.0
        %1334 = vmatprep.subr.mxu0 0.0
        %1335 = vmatpush2.msra.mxu0 0.0
        %1336 = vmatprep.subr.mxu0 0.0
        %1337 = vmatpush2.msra.mxu0 0.0
        %1338 = vmatprep.subr.mxu0 0.0
        %1339 = vmatpush2.msra.mxu0 0.0
        %1340 = vmatprep.subr.mxu0 0.0
        %1341 = vmatpush2.msra.mxu0 0.0
        %1342 = vmatprep.subr.mxu0 0.0
        %1343 = vmatpush2.msra.mxu0 0.0
        %1344 = vmatprep.subr.mxu0 0.0
        %1345 = vmatpush2.msra.mxu0 0.0
        %1346 = vmatprep.subr.mxu0 0.0
        %1347 = vmatpush2.msra.mxu0 0.0
        %1348 = vmatprep.subr.mxu0 0.0
        %1349 = vmatpush2.msra.mxu0 0.0
        %1350 = vmatprep.subr.mxu0 0.0
        %1351 = vmatpush2.msra.mxu0 0.0
        %1352 = vmatprep.subr.mxu0 0.0
        %1353 = vmatpush2.msra.mxu0 0.0
        %1354 = vmatprep.subr.mxu0 0.0
        %1355 = vmatpush2.msra.mxu0 0.0
        %1356 = vmatprep.subr.mxu0 0.0
        %1357 = vmatpush2.msra.mxu0 0.0
        %1358 = vmatprep.subr.mxu0 0.0
        %1359 = vmatpush2.msra.mxu0 0.0
        %1360 = vmatprep.subr.mxu0 0.0
        %1361 = vmatpush2.msra.mxu0 0.0
        %1362 = vmatprep.mubr.f32.mxu0 0.0
        %1363 = vmatmul.mubr.f32.gmra.mxu0 %v1296
        %v1364 = vpop.f32.mrf.mxu0
        %v1365 = vadd.f32 %v1293, %v1364
        %v1366 = vpop.f32.mrf.mxu0
        %1367 = vdwg.mxu0
        %v1368 = vadd.f32 %v1365, %v494
        %v1369 = vld [vmem:[%s5] sm:$0x1]
        %v1370 = vld [vmem:[%s6] sm:$0x1]
        %v1371 = vsel %vm506, %v1368, 0.0
        %1372 = vadd.xlane.f32.xlu0 %v1371
        %v1373 = vpop.xlane.xlu0 %1372
        %v1374 = vrcp.pop 32.0
        %v1375 = vmul.f32 %v1373, %v1374
        %v1376 = vsub.f32 %v1368, %v1375
        %v1377 = vmul.f32 %v1376, %v1376
        %v1378 = vsel %vm506, %v1377, 0.0
        %1379 = vadd.xlane.f32.xlu0 %v1378
        %v1380 = vpop.xlane.xlu0 %1379
        %v1381 = vmul.f32 %v1380, %v1374
        %v1382 = vadd.f32 %v1381, 1e-08
        %v1383 = vrsqrt.pop %v1382
        %v1384 = vmul.f32 %v1376, %v1383
        %v1386 = vlaneseq
        %v1387 = vshrl.u32 %v1386, 7
        %v1388 = vsub.s32 0, %v1387
        %v1389 = vrot.slane %v1369, %v1388
        %v1391 = vmul.f32 %v1389, %v1384
        %v1393 = vlaneseq
        %v1394 = vshrl.u32 %v1393, 7
        %v1395 = vsub.s32 0, %v1394
        %v1396 = vrot.slane %v1370, %v1395
        %v1398 = vadd.f32 %v1391, %v1396
        %v1399 = vmax.f32 %v1398, 0.0
        %v1400 = vld [vmem:[%s7] sm:$0xff]
        %v1401 = vld [vmem:[%s7 + $0x8] sm:$0xff]
        %v1402 = vld [vmem:[%s7 + $0x10] sm:$0xff]
        %v1403 = vld [vmem:[%s7 + $0x18] sm:$0xff]
        %v1404 = vld [vmem:[%s8] sm:$0x1]
        %v1406 = vlaneseq
        %v1407 = vshrl.u32 %v1406, 7
        %v1408 = vsub.s32 0, %v1407
        %v1409 = vrot.slane %v1404, %v1408
        %v1412 = vsel %vm506, %v1399, 0
        %1414 = vmatprep.subr.mxu0 0.0
        %1415 = vmatpush1.msra.mxu0 0.0
        %1416 = vmatprep.subr.mxu0 0.0
        %1417 = vmatpush1.msra.mxu0 0.0
        %1418 = vmatprep.subr.mxu0 0.0
        %1419 = vmatpush1.msra.mxu0 0.0
        %1420 = vmatprep.subr.mxu0 0.0
        %1421 = vmatpush1.msra.mxu0 0.0
        %1422 = vmatprep.subr.mxu0 0.0
        %1423 = vmatpush1.msra.mxu0 0.0
        %1424 = vmatprep.subr.mxu0 0.0
        %1425 = vmatpush1.msra.mxu0 0.0
        %1426 = vmatprep.subr.mxu0 0.0
        %1427 = vmatpush1.msra.mxu0 0.0
        %1428 = vmatprep.subr.mxu0 0.0
        %1429 = vmatpush1.msra.mxu0 0.0
        %1430 = vmatprep.subr.mxu0 0.0
        %1431 = vmatpush1.msra.mxu0 0.0
        %1432 = vmatprep.subr.mxu0 0.0
        %1433 = vmatpush1.msra.mxu0 0.0
        %1434 = vmatprep.subr.mxu0 0.0
        %1435 = vmatpush1.msra.mxu0 0.0
        %1436 = vmatprep.subr.mxu0 0.0
        %1437 = vmatpush1.msra.mxu0 0.0
        %1438 = vmatprep.subr.mxu0 0.0
        %1439 = vmatpush1.msra.mxu0 %v1403
        %1440 = vmatprep.subr.mxu0 0.0
        %1441 = vmatpush1.msra.mxu0 %v1402
        %1442 = vmatprep.subr.mxu0 0.0
        %1443 = vmatpush1.msra.mxu0 %v1401
        %1444 = vmatprep.subr.mxu0 0.0
        %1445 = vmatpush1.msra.mxu0 %v1400
        %1446 = vmatprep.subr.mxu0 0.0
        %1447 = vmatpush2.msra.mxu0 0.0
        %1448 = vmatprep.subr.mxu0 0.0
        %1449 = vmatpush2.msra.mxu0 0.0
        %1450 = vmatprep.subr.mxu0 0.0
        %1451 = vmatpush2.msra.mxu0 0.0
        %1452 = vmatprep.subr.mxu0 0.0
        %1453 = vmatpush2.msra.mxu0 0.0
        %1454 = vmatprep.subr.mxu0 0.0
        %1455 = vmatpush2.msra.mxu0 0.0
        %1456 = vmatprep.subr.mxu0 0.0
        %1457 = vmatpush2.msra.mxu0 0.0
        %1458 = vmatprep.subr.mxu0 0.0
        %1459 = vmatpush2.msra.mxu0 0.0
        %1460 = vmatprep.subr.mxu0 0.0
        %1461 = vmatpush2.msra.mxu0 0.0
        %1462 = vmatprep.subr.mxu0 0.0
        %1463 = vmatpush2.msra.mxu0 0.0
        %1464 = vmatprep.subr.mxu0 0.0
        %1465 = vmatpush2.msra.mxu0 0.0
        %1466 = vmatprep.subr.mxu0 0.0
        %1467 = vmatpush2.msra.mxu0 0.0
        %1468 = vmatprep.subr.mxu0 0.0
        %1469 = vmatpush2.msra.mxu0 0.0
        %1470 = vmatprep.subr.mxu0 0.0
        %1471 = vmatpush2.msra.mxu0 0.0
        %1472 = vmatprep.subr.mxu0 0.0
        %1473 = vmatpush2.msra.mxu0 0.0
        %1474 = vmatprep.subr.mxu0 0.0
        %1475 = vmatpush2.msra.mxu0 0.0
        %1476 = vmatprep.subr.mxu0 0.0
        %1477 = vmatpush2.msra.mxu0 0.0
        %1478 = vmatprep.mubr.f32.mxu0 0.0
        %1479 = vmatmul.mubr.f32.gmra.mxu0 %v1412
        %v1480 = vpop.f32.mrf.mxu0
        %v1481 = vadd.f32 %v1409, %v1480
        %v1482 = vpop.f32.mrf.mxu0
        %1483 = vdwg.mxu0
        %v1484 = vmax.f32 %v1481, 0.0
        %v1485 = vld [vmem:[%s9] sm:$0xff]
        %v1486 = vld [vmem:[%s9 + $0x8] sm:$0xff]
        %v1487 = vld [vmem:[%s9 + $0x10] sm:$0xff]
        %v1488 = vld [vmem:[%s9 + $0x18] sm:$0xff]
        %v1489 = vld [vmem:[%s9 + $0x20] sm:$0xff]
        %v1490 = vld [vmem:[%s9 + $0x28] sm:$0xff]
        %v1491 = vld [vmem:[%s9 + $0x30] sm:$0xff]
        %v1492 = vld [vmem:[%s9 + $0x38] sm:$0xff]
        %v1493 = vld [vmem:[%s10] sm:$0x1]
        %v1495 = vlaneseq
        %v1496 = vshrl.u32 %v1495, 7
        %v1497 = vsub.s32 0, %v1496
        %v1498 = vrot.slane %v1493, %v1497
        %vm1500 = vcmask 523264
        %v1502 = vsel %vm1500, %v1484, 0
        %1504 = vmatprep.subr.mxu0 0.0
        %1505 = vmatpush1.msra.mxu0 0.0
        %1506 = vmatprep.subr.mxu0 0.0
        %1507 = vmatpush1.msra.mxu0 0.0
        %1508 = vmatprep.subr.mxu0 0.0
        %1509 = vmatpush1.msra.mxu0 0.0
        %1510 = vmatprep.subr.mxu0 0.0
        %1511 = vmatpush1.msra.mxu0 0.0
        %1512 = vmatprep.subr.mxu0 0.0
        %1513 = vmatpush1.msra.mxu0 0.0
        %1514 = vmatprep.subr.mxu0 0.0
        %1515 = vmatpush1.msra.mxu0 0.0
        %1516 = vmatprep.subr.mxu0 0.0
        %1517 = vmatpush1.msra.mxu0 0.0
        %1518 = vmatprep.subr.mxu0 0.0
        %1519 = vmatpush1.msra.mxu0 0.0
        %1520 = vmatprep.subr.mxu0 0.0
        %1521 = vmatpush1.msra.mxu0 %v1492
        %1522 = vmatprep.subr.mxu0 0.0
        %1523 = vmatpush1.msra.mxu0 %v1491
        %1524 = vmatprep.subr.mxu0 0.0
        %1525 = vmatpush1.msra.mxu0 %v1490
        %1526 = vmatprep.subr.mxu0 0.0
        %1527 = vmatpush1.msra.mxu0 %v1489
        %1528 = vmatprep.subr.mxu0 0.0
        %1529 = vmatpush1.msra.mxu0 %v1488
        %1530 = vmatprep.subr.mxu0 0.0
        %1531 = vmatpush1.msra.mxu0 %v1487
        %1532 = vmatprep.subr.mxu0 0.0
        %1533 = vmatpush1.msra.mxu0 %v1486
        %1534 = vmatprep.subr.mxu0 0.0
        %1535 = vmatpush1.msra.mxu0 %v1485
        %1536 = vmatprep.subr.mxu0 0.0
        %1537 = vmatpush2.msra.mxu0 0.0
        %1538 = vmatprep.subr.mxu0 0.0
        %1539 = vmatpush2.msra.mxu0 0.0
        %1540 = vmatprep.subr.mxu0 0.0
        %1541 = vmatpush2.msra.mxu0 0.0
        %1542 = vmatprep.subr.mxu0 0.0
        %1543 = vmatpush2.msra.mxu0 0.0
        %1544 = vmatprep.subr.mxu0 0.0
        %1545 = vmatpush2.msra.mxu0 0.0
        %1546 = vmatprep.subr.mxu0 0.0
        %1547 = vmatpush2.msra.mxu0 0.0
        %1548 = vmatprep.subr.mxu0 0.0
        %1549 = vmatpush2.msra.mxu0 0.0
        %1550 = vmatprep.subr.mxu0 0.0
        %1551 = vmatpush2.msra.mxu0 0.0
        %1552 = vmatprep.subr.mxu0 0.0
        %1553 = vmatpush2.msra.mxu0 0.0
        %1554 = vmatprep.subr.mxu0 0.0
        %1555 = vmatpush2.msra.mxu0 0.0
        %1556 = vmatprep.subr.mxu0 0.0
        %1557 = vmatpush2.msra.mxu0 0.0
        %1558 = vmatprep.subr.mxu0 0.0
        %1559 = vmatpush2.msra.mxu0 0.0
        %1560 = vmatprep.subr.mxu0 0.0
        %1561 = vmatpush2.msra.mxu0 0.0
        %1562 = vmatprep.subr.mxu0 0.0
        %1563 = vmatpush2.msra.mxu0 0.0
        %1564 = vmatprep.subr.mxu0 0.0
        %1565 = vmatpush2.msra.mxu0 0.0
        %1566 = vmatprep.subr.mxu0 0.0
        %1567 = vmatpush2.msra.mxu0 0.0
        %1568 = vmatprep.mubr.f32.mxu0 0.0
        %1569 = vmatmul.mubr.f32.gmra.mxu0 %v1502
        %v1570 = vpop.f32.mrf.mxu0
        %v1571 = vadd.f32 %v1498, %v1570
        %v1572 = vpop.f32.mrf.mxu0
        %1573 = vdwg.mxu0
        %v1574 = vadd.f32 %v1571, %v1398
        %v1575 = vld [vmem:[%s11] sm:$0x1]
        %v1576 = vld [vmem:[%s12] sm:$0x1]
        %v1577 = vsel %vm506, %v1574, 0.0
        %1578 = vadd.xlane.f32.xlu0 %v1577
        %v1579 = vpop.xlane.xlu0 %1578
        %v1580 = vmul.f32 %v1579, %v1374
        %v1581 = vsub.f32 %v1574, %v1580
        %v1582 = vmul.f32 %v1581, %v1581
        %v1583 = vsel %vm506, %v1582, 0.0
        %1584 = vadd.xlane.f32.xlu0 %v1583
        %v1585 = vpop.xlane.xlu0 %1584
        %v1586 = vmul.f32 %v1585, %v1374
        %v1587 = vadd.f32 %v1586, 1e-08
        %v1588 = vrsqrt.pop %v1587
        %v1589 = vmul.f32 %v1581, %v1588
        %v1591 = vlaneseq
        %v1592 = vshrl.u32 %v1591, 7
        %v1593 = vsub.s32 0, %v1592
        %v1594 = vrot.slane %v1575, %v1593
        %v1596 = vmul.f32 %v1594, %v1589
        %v1598 = vlaneseq
        %v1599 = vshrl.u32 %v1598, 7
        %v1600 = vsub.s32 0, %v1599
        %v1601 = vrot.slane %v1576, %v1600
        %v1603 = vadd.f32 %v1596, %v1601
        %1604 = vst.msk [vmem:[%s486] sm:$0xff] %vm506, %v1603
        %s1605 = sand.u32 %s321, 1
        %s1606 = scalar_lea.sflag [#allocation6], %s1605
        %s1607 = sand.u32 %s321, 1
        %s1608 = smul.addr %s1607, 8
        %s1609 = scalar_lea.vmem [#allocation7], %s1608
        %s1610 = sand.u32 %s347, 1
        %s1611 = scalar_lea.sflag [#allocation9], %s1610
        %s1612 = sand.u32 %s347, 1
        %s1613 = smul.addr %s1612, 8
        %s1614 = scalar_lea.vmem [#allocation8], %s1613
        // Predicated region
        $region77: #{tpu_custom_call.1} parent=71 // pred_check
          %p1615 = pneg %p331
        $region78: #{tpu_custom_call.1} parent=71 // pred_check_branch
          %1617 = sbr.rel (%p1615) target = $region80
        $region79: #{tpu_custom_call.1} parent=71 // pred_region
          %s1619 = ssub.s32 128, 128
          %1620 = vsyncadd %s1606, %s1619
          %s1621 = smul.addr %s35, 128
          %s1622 = scalar_lea.hbm %s13, %s1621
          %s1624 = sshll.u32 %s1609, 4
          %s1625 = int_to_ptr.vmem [resolvable:$true] %s1624
          %1627 = dma.vmem_to_hbm [thread:$0]  %s1625, 128, %s1622, %s1606
        $region80: #{tpu_custom_call.1} parent=71 // pred_fallthru
          _
        // Predicated region
        $region81: #{tpu_custom_call.1} parent=71 // pred_check
          %p1628 = pneg %p357
        $region82: #{tpu_custom_call.1} parent=71 // pred_check_branch
          %1630 = sbr.rel (%p1628) target = $region84
        $region83: #{tpu_custom_call.1} parent=71 // pred_region
          %s1632 = ssub.s32 128, 128
          %1633 = vsyncadd %s1611, %s1632
          %s1634 = smul.addr %s35, 128
          %s1635 = scalar_lea.hbm %s14, %s1634
          %s1637 = sshll.u32 %s1614, 4
          %s1638 = int_to_ptr.vmem [resolvable:$true] %s1637
          %1640 = dma.vmem_to_hbm [thread:$0]  %s1638, 128, %s1635, %s1611
        $region84: #{tpu_custom_call.1} parent=71 // pred_fallthru
          _
      $region72: #{tpu_custom_call.1} parent=5 // pred_fallthru
        _
      %p1641 = scmp.le.s32.totalorder 2, %s30
      // Predicated region
      $region85: #{tpu_custom_call.1} parent=5 // pred_check
        %p1642 = pneg %p1641
      $region86: #{tpu_custom_call.1} parent=5 // pred_check_branch
        %1644 = sbr.rel (%p1642) target = $region88
      $region87: #{tpu_custom_call.1} parent=5 // pred_region
        %s1645 = ssub.s32 %s30, 2
        // Predicated region
        $region89: #{tpu_custom_call.1} parent=87 // pred_check
          %p1646 = pneg %p337
        $region90: #{tpu_custom_call.1} parent=87 // pred_check_branch
          %1648 = sbr.rel (%p1646) target = $region92
        $region91: #{tpu_custom_call.1} parent=87 // pred_region
          %s1649 = sand.u32 %s322, 1
          %s1650 = scalar_lea.sflag [#allocation6], %s1649
          %s1651 = sand.u32 %s322, 1
          %s1652 = smul.addr %s1651, 8
          %s1653 = scalar_lea.vmem [#allocation7], %s1652
          %1654 = dma.done %s1650, 128
        $region92: #{tpu_custom_call.1} parent=87 // pred_fallthru
          _
        // Predicated region
        $region93: #{tpu_custom_call.1} parent=87 // pred_check
          %p1655 = pneg %p363
        $region94: #{tpu_custom_call.1} parent=87 // pred_check_branch
          %1657 = sbr.rel (%p1655) target = $region96
        $region95: #{tpu_custom_call.1} parent=87 // pred_region
          %s1658 = sand.u32 %s348, 1
          %s1659 = scalar_lea.sflag [#allocation9], %s1658
          %s1660 = sand.u32 %s348, 1
          %s1661 = smul.addr %s1660, 8
          %s1662 = scalar_lea.vmem [#allocation8], %s1661
          %1663 = dma.done %s1659, 128
        $region96: #{tpu_custom_call.1} parent=87 // pred_fallthru
          _
      $region88: #{tpu_custom_call.1} parent=5 // pred_fallthru
        _
    $region6: #{tpu_custom_call.1} parent=1 // loop_footer
      %s34 = sadd.s32 1, %s30
    $region7: #{tpu_custom_call.1} parent=1 // loop_footer_branch
      %29 = sbr.rel target = $region3
    $region8: #{tpu_custom_call.1} parent=1 // loop_exit
      _
    %1664 = vsyncpa [#allocation5], 1
    %s1665 = scalar_lea.sflag [#allocation5], 1
    %1666 = vsyncpa %s1665, 1
    %1667 = vsyncpa [#allocation6], 1
    %s1668 = scalar_lea.sflag [#allocation6], 1
    %1669 = vsyncpa %s1668, 1
    %1670 = vsyncpa [#allocation9], 1
    %s1671 = scalar_lea.sflag [#allocation9], 1
    %1672 = vsyncpa %s1671, 1

// kernel: tpu_custom_call.1
$region0: #{tpu_custom_call.1}
  #allocation0 [shape = 'u32[]', space=smem, size = 0x4, offset = 0x4, fixed_abs, tag = 'smem constant byte address 0x4 - core index']
  #allocation1 [shape = 'u32[144,128]{1,0:T(1,128)}', space=vmem, size = 0x12000, scoped, tag = 'internal scratch']
  #allocation2 [shape = 'f32[32,8]{1,0:T(8,128)}', space=vmem, size = 0x4000, scoped, tag = 'scratch operand']
  #allocation3 [shape = 'f32[8,8]{1,0:T(8,128)}', space=vmem, size = 0x1000, scoped, tag = 'scratch operand']
  %s0 = inlined_call_operand.hbm [shape: f32[2,8,32], index: 0, kind: input, shape index: {}]
  %s1 = inlined_call_operand.vmem [shape: f32[32,96], index: 1, kind: input, shape index: {}]
  %s2 = inlined_call_operand.vmem [shape: f32[1,96], index: 2, kind: input, shape index: {}]
  %s3 = inlined_call_operand.vmem [shape: f32[32,32], index: 3, kind: input, shape index: {}]
  %s4 = inlined_call_operand.vmem [shape: f32[1,32], index: 4, kind: input, shape index: {}]
  %s5 = inlined_call_operand.vmem [shape: f32[1,32], index: 5, kind: input, shape index: {}]
  %s6 = inlined_call_operand.vmem [shape: f32[1,32], index: 6, kind: input, shape index: {}]
  %s7 = inlined_call_operand.vmem [shape: f32[32,64], index: 7, kind: input, shape index: {}]
  %s8 = inlined_call_operand.vmem [shape: f32[1,64], index: 8, kind: input, shape index: {}]
  %s9 = inlined_call_operand.vmem [shape: f32[64,32], index: 9, kind: input, shape index: {}]
  %s10 = inlined_call_operand.vmem [shape: f32[1,32], index: 10, kind: input, shape index: {}]
  %s11 = inlined_call_operand.vmem [shape: f32[1,32], index: 11, kind: input, shape index: {}]
  %s12 = inlined_call_operand.vmem [shape: f32[1,32], index: 12, kind: input, shape index: {}]
  %s13 = inlined_call_operand.hbm [shape: f32[2,8,32], index: 13, kind: output, shape index: {0}]
  %s14 = inlined_call_operand.hbm [shape: f32[2,8,8], index: 14, kind: output, shape index: {1}]
  %15 = xla_tuple %s13, %s14
  %s16 = sld [smem:[#allocation0]]
  $region97: #{tpu_custom_call.1} parent=0
    _
  %s18 = ssub.s32 1, %s16
  %s19 = scalar_select 0, %s18, %s16
  $region1: #{tpu_custom_call.1} parent=0
    #allocation4 [shape = 'u8[8192]{0}', space=vmem, size = 0x2000, scoped, tag = 'input window, operand 0']
    #allocation5 [shape = 's32[2]{0}', space=sflag, size = 0x8, scoped, tag = 'scoped memory for tpu_custom_call.1']
    #allocation6 [shape = 's32[2]{0}', space=sflag, size = 0x8, scoped, tag = 'scoped memory for tpu_custom_call.1']
    #allocation7 [shape = 'u8[8192]{0}', space=vmem, size = 0x2000, scoped, tag = 'output window, operand 0']
    #allocation8 [shape = 'u8[8192]{0}', space=vmem, size = 0x2000, scoped, tag = 'output window, operand 1']
    #allocation9 [shape = 's32[2]{0}', space=sflag, size = 0x8, scoped, tag = 'scoped memory for tpu_custom_call.1']
    %20 = vsyncpa [#allocation5], 0
    %s21 = scalar_lea.sflag [#allocation5], 1
    %22 = vsyncpa %s21, 0
    %23 = vsyncpa [#allocation6], 0
    %s24 = scalar_lea.sflag [#allocation6], 1
    %25 = vsyncpa %s24, 0
    %26 = vsyncpa [#allocation9], 0
    %s27 = scalar_lea.sflag [#allocation9], 1
    %28 = vsyncpa %s27, 0
    loop: start=0, step=1, limit=4
    $region2: #{tpu_custom_call.1} parent=1 // loop_pre_header
      _
    $region3: #{tpu_custom_call.1} parent=1 // loop_header
      %s30 = sphi 0, %s34
      %p31 = scmp.ge.s32.totalorder %s30, 4
      %s40 = sphi 0, %s42
      %s43 = sphi 0, %s40
      %s44 = sphi 0, %s43
      %s60 = sphi 0, %s44
      %s64 = sphi 0, %s64
      %s66 = sphi 0, %s64
      %s67 = sphi 0, %s66
      %s81 = sphi 0, %s67
      %s85 = sphi 0, %s85
      %s87 = sphi 0, %s85
      %s88 = sphi 0, %s87
      %s102 = sphi 0, %s88
      %s106 = sphi 0, %s106
      %s108 = sphi 0, %s106
      %s109 = sphi 0, %s108
      %s123 = sphi 0, %s109
      %s127 = sphi 0, %s127
      %s129 = sphi 0, %s127
      %s130 = sphi 0, %s129
      %s144 = sphi 0, %s130
      %s148 = sphi 0, %s148
      %s150 = sphi 0, %s148
      %s151 = sphi 0, %s150
      %s165 = sphi 0, %s151
      %s169 = sphi 0, %s169
      %s171 = sphi 0, %s169
      %s172 = sphi 0, %s171
      %s186 = sphi 0, %s172
      %s190 = sphi 0, %s190
      %s192 = sphi 0, %s190
      %s193 = sphi 0, %s192
      %s207 = sphi 0, %s193
      %s211 = sphi 0, %s211
      %s213 = sphi 0, %s211
      %s214 = sphi 0, %s213
      %s228 = sphi 0, %s214
      %s232 = sphi 0, %s232
      %s234 = sphi 0, %s232
      %s235 = sphi 0, %s234
      %s249 = sphi 0, %s235
      %s253 = sphi 0, %s253
      %s255 = sphi 0, %s253
      %s256 = sphi 0, %s255
      %s270 = sphi 0, %s256
      %s274 = sphi 0, %s274
      %s276 = sphi 0, %s274
      %s277 = sphi 0, %s276
      %s291 = sphi 0, %s277
      %s295 = sphi 0, %s295
      %s297 = sphi 0, %s295
      %s298 = sphi 0, %s297
      %s312 = sphi 0, %s298
      %s318 = sphi 0, %s320
      %s321 = sphi 0, %s318
      %s322 = sphi 0, %s321
      %s338 = sphi 0, %s322
      %s344 = sphi 0, %s346
      %s347 = sphi 0, %s344
      %s348 = sphi 0, %s347
      %s364 = sphi 0, %s348
    $region4: #{tpu_custom_call.1} parent=1 // loop_header_branch
      %33 = sbr.rel (%p31) target = $region8
    $region5: #{tpu_custom_call.1} parent=1 // loop_body
      %s35 = ssub.s32 %s30, 1
      %s36 = ssub.s32 %s30, 2
      %s37 = sadd.s32 %s30, 1
      %s38 = ssub.s32 %s30, %s37
      %p39 = scmp.eq.s32.totalorder %s38, 0
      %s41 = sadd.s32 %s40, 1
      %s42 = scalar_select %p39, %s40, %s41
      %p45 = pneg %p39
      %p46 = scmp.eq.s32.totalorder %s30, 1
      %p47 = por %p45, %p46
      %p48 = scmp.ne.s32.totalorder %s40, %s43
      %p49 = scmp.eq.s32.totalorder %s30, 0
      %p50 = por %p48, %p49
      %p51 = scmp.ne.s32.totalorder %s40, %s43
      %p52 = scmp.eq.s32.totalorder %s35, 1
      %p53 = por %p51, %p52
      %p54 = scmp.ne.s32.totalorder %s43, %s44
      %p55 = scmp.eq.s32.totalorder %s35, 0
      %p56 = por %p54, %p55
      %p57 = scmp.ne.s32.totalorder %s43, %s44
      %p58 = scmp.eq.s32.totalorder %s36, 1
      %p59 = por %p57, %p58
      %p61 = scmp.ne.s32.totalorder %s44, %s60
      %p62 = scmp.eq.s32.totalorder %s36, 0
      %p63 = por %p61, %p62
      %s65 = sadd.s32 %s64, 1
      %p68 = scmp.eq.s32.totalorder %s30, 1
      %p69 = scmp.ne.s32.totalorder %s64, %s66
      %p70 = scmp.eq.s32.totalorder %s30, 0
      %p71 = por %p69, %p70
      %p72 = scmp.ne.s32.totalorder %s64, %s66
      %p73 = scmp.eq.s32.totalorder %s35, 1
      %p74 = por %p72, %p73
      %p75 = scmp.ne.s32.totalorder %s66, %s67
      %p76 = scmp.eq.s32.totalorder %s35, 0
      %p77 = por %p75, %p76
      %p78 = scmp.ne.s32.totalorder %s66, %s67
      %p79 = scmp.eq.s32.totalorder %s36, 1
      %p80 = por %p78, %p79
      %p82 = scmp.ne.s32.totalorder %s67, %s81
      %p83 = scmp.eq.s32.totalorder %s36, 0
      %p84 = por %p82, %p83
      %s86 = sadd.s32 %s85, 1
      %p89 = scmp.eq.s32.totalorder %s30, 1
      %p90 = scmp.ne.s32.totalorder %s85, %s87
      %p91 = scmp.eq.s32.totalorder %s30, 0
      %p92 = por %p90, %p91
      %p93 = scmp.ne.s32.totalorder %s85, %s87
      %p94 = scmp.eq.s32.totalorder %s35, 1
      %p95 = por %p93, %p94
      %p96 = scmp.ne.s32.totalorder %s87, %s88
      %p97 = scmp.eq.s32.totalorder %s35, 0
      %p98 = por %p96, %p97
      %p99 = scmp.ne.s32.totalorder %s87, %s88
      %p100 = scmp.eq.s32.totalorder %s36, 1
      %p101 = por %p99, %p100
      %p103 = scmp.ne.s32.totalorder %s88, %s102
      %p104 = scmp.eq.s32.totalorder %s36, 0
      %p105 = por %p103, %p104
      %s107 = sadd.s32 %s106, 1
      %p110 = scmp.eq.s32.totalorder %s30, 1
      %p111 = scmp.ne.s32.totalorder %s106, %s108
      %p112 = scmp.eq.s32.totalorder %s30, 0
      %p113 = por %p111, %p112
      %p114 = scmp.ne.s32.totalorder %s106, %s108
      %p115 = scmp.eq.s32.totalorder %s35, 1
      %p116 = por %p114, %p115
      %p117 = scmp.ne.s32.totalorder %s108, %s109
      %p118 = scmp.eq.s32.totalorder %s35, 0
      %p119 = por %p117, %p118
      %p120 = scmp.ne.s32.totalorder %s108, %s109
      %p121 = scmp.eq.s32.totalorder %s36, 1
      %p122 = por %p120, %p121
      %p124 = scmp.ne.s32.totalorder %s109, %s123
      %p125 = scmp.eq.s32.totalorder %s36, 0
      %p126 = por %p124, %p125
      %s128 = sadd.s32 %s127, 1
      %p131 = scmp.eq.s32.totalorder %s30, 1
      %p132 = scmp.ne.s32.totalorder %s127, %s129
      %p133 = scmp.eq.s32.totalorder %s30, 0
      %p134 = por %p132, %p133
      %p135 = scmp.ne.s32.totalorder %s127, %s129
      %p136 = scmp.eq.s32.totalorder %s35, 1
      %p137 = por %p135, %p136
      %p138 = scmp.ne.s32.totalorder %s129, %s130
      %p139 = scmp.eq.s32.totalorder %s35, 0
      %p140 = por %p138, %p139
      %p141 = scmp.ne.s32.totalorder %s129, %s130
      %p142 = scmp.eq.s32.totalorder %s36, 1
      %p143 = por %p141, %p142
      %p145 = scmp.ne.s32.totalorder %s130, %s144
      %p146 = scmp.eq.s32.totalorder %s36, 0
      %p147 = por %p145, %p146
      %s149 = sadd.s32 %s148, 1
      %p152 = scmp.eq.s32.totalorder %s30, 1
      %p153 = scmp.ne.s32.totalorder %s148, %s150
      %p154 = scmp.eq.s32.totalorder %s30, 0
      %p155 = por %p153, %p154
      %p156 = scmp.ne.s32.totalorder %s148, %s150
      %p157 = scmp.eq.s32.totalorder %s35, 1
      %p158 = por %p156, %p157
      %p159 = scmp.ne.s32.totalorder %s150, %s151
      %p160 = scmp.eq.s32.totalorder %s35, 0
      %p161 = por %p159, %p160
      %p162 = scmp.ne.s32.totalorder %s150, %s151
      %p163 = scmp.eq.s32.totalorder %s36, 1
      %p164 = por %p162, %p163
      %p166 = scmp.ne.s32.totalorder %s151, %s165
      %p167 = scmp.eq.s32.totalorder %s36, 0
      %p168 = por %p166, %p167
      %s170 = sadd.s32 %s169, 1
      %p173 = scmp.eq.s32.totalorder %s30, 1
      %p174 = scmp.ne.s32.totalorder %s169, %s171
      %p175 = scmp.eq.s32.totalorder %s30, 0
      %p176 = por %p174, %p175
      %p177 = scmp.ne.s32.totalorder %s169, %s171
      %p178 = scmp.eq.s32.totalorder %s35, 1
      %p179 = por %p177, %p178
      %p180 = scmp.ne.s32.totalorder %s171, %s172
      %p181 = scmp.eq.s32.totalorder %s35, 0
      %p182 = por %p180, %p181
      %p183 = scmp.ne.s32.totalorder %s171, %s172
      %p184 = scmp.eq.s32.totalorder %s36, 1
      %p185 = por %p183, %p184
      %p187 = scmp.ne.s32.totalorder %s172, %s186
      %p188 = scmp.eq.s32.totalorder %s36, 0
      %p189 = por %p187, %p188
      %s191 = sadd.s32 %s190, 1
      %p194 = scmp.eq.s32.totalorder %s30, 1
      %p195 = scmp.ne.s32.totalorder %s190, %s192
      %p196 = scmp.eq.s32.totalorder %s30, 0
      %p197 = por %p195, %p196
      %p198 = scmp.ne.s32.totalorder %s190, %s192
      %p199 = scmp.eq.s32.totalorder %s35, 1
      %p200 = por %p198, %p199
      %p201 = scmp.ne.s32.totalorder %s192, %s193
      %p202 = scmp.eq.s32.totalorder %s35, 0
      %p203 = por %p201, %p202
      %p204 = scmp.ne.s32.totalorder %s192, %s193
      %p205 = scmp.eq.s32.totalorder %s36, 1
      %p206 = por %p204, %p205
      %p208 = scmp.ne.s32.totalorder %s193, %s207
      %p209 = scmp.eq.s32.totalorder %s36, 0
      %p210 = por %p208, %p209
      %s212 = sadd.s32 %s211, 1
      %p215 = scmp.eq.s32.totalorder %s30, 1
      %p216 = scmp.ne.s32.totalorder %s211, %s213
      %p217 = scmp.eq.s32.totalorder %s30, 0
      %p218 = por %p216, %p217
      %p219 = scmp.ne.s32.totalorder %s211, %s213
      %p220 = scmp.eq.s32.totalorder %s35, 1
      %p221 = por %p219, %p220
      %p222 = scmp.ne.s32.totalorder %s213, %s214
      %p223 = scmp.eq.s32.totalorder %s35, 0
      %p224 = por %p222, %p223
      %p225 = scmp.ne.s32.totalorder %s213, %s214
      %p226 = scmp.eq.s32.totalorder %s36, 1
      %p227 = por %p225, %p226
      %p229 = scmp.ne.s32.totalorder %s214, %s228
      %p230 = scmp.eq.s32.totalorder %s36, 0
      %p231 = por %p229, %p230
      %s233 = sadd.s32 %s232, 1
      %p236 = scmp.eq.s32.totalorder %s30, 1
      %p237 = scmp.ne.s32.totalorder %s232, %s234
      %p238 = scmp.eq.s32.totalorder %s30, 0
      %p239 = por %p237, %p238
      %p240 = scmp.ne.s32.totalorder %s232, %s234
      %p241 = scmp.eq.s32.totalorder %s35, 1
      %p242 = por %p240, %p241
      %p243 = scmp.ne.s32.totalorder %s234, %s235
      %p244 = scmp.eq.s32.totalorder %s35, 0
      %p245 = por %p243, %p244
      %p246 = scmp.ne.s32.totalorder %s234, %s235
      %p247 = scmp.eq.s32.totalorder %s36, 1
      %p248 = por %p246, %p247
      %p250 = scmp.ne.s32.totalorder %s235, %s249
      %p251 = scmp.eq.s32.totalorder %s36, 0
      %p252 = por %p250, %p251
      %s254 = sadd.s32 %s253, 1
      %p257 = scmp.eq.s32.totalorder %s30, 1
      %p258 = scmp.ne.s32.totalorder %s253, %s255
      %p259 = scmp.eq.s32.totalorder %s30, 0
      %p260 = por %p258, %p259
      %p261 = scmp.ne.s32.totalorder %s253, %s255
      %p262 = scmp.eq.s32.totalorder %s35, 1
      %p263 = por %p261, %p262
      %p264 = scmp.ne.s32.totalorder %s255, %s256
      %p265 = scmp.eq.s32.totalorder %s35, 0
      %p266 = por %p264, %p265
      %p267 = scmp.ne.s32.totalorder %s255, %s256
      %p268 = scmp.eq.s32.totalorder %s36, 1
      %p269 = por %p267, %p268
      %p271 = scmp.ne.s32.totalorder %s256, %s270
      %p272 = scmp.eq.s32.totalorder %s36, 0
      %p273 = por %p271, %p272
      %s275 = sadd.s32 %s274, 1
      %p278 = scmp.eq.s32.totalorder %s30, 1
      %p279 = scmp.ne.s32.totalorder %s274, %s276
      %p280 = scmp.eq.s32.totalorder %s30, 0
      %p281 = por %p279, %p280
      %p282 = scmp.ne.s32.totalorder %s274, %s276
      %p283 = scmp.eq.s32.totalorder %s35, 1
      %p284 = por %p282, %p283
      %p285 = scmp.ne.s32.totalorder %s276, %s277
      %p286 = scmp.eq.s32.totalorder %s35, 0
      %p287 = por %p285, %p286
      %p288 = scmp.ne.s32.totalorder %s276, %s277
      %p289 = scmp.eq.s32.totalorder %s36, 1
      %p290 = por %p288, %p289
      %p292 = scmp.ne.s32.totalorder %s277, %s291
      %p293 = scmp.eq.s32.totalorder %s36, 0
      %p294 = por %p292, %p293
      %s296 = sadd.s32 %s295, 1
      %p299 = scmp.eq.s32.totalorder %s30, 1
      %p300 = scmp.ne.s32.totalorder %s295, %s297
      %p301 = scmp.eq.s32.totalorder %s30, 0
      %p302 = por %p300, %p301
      %p303 = scmp.ne.s32.totalorder %s295, %s297
      %p304 = scmp.eq.s32.totalorder %s35, 1
      %p305 = por %p303, %p304
      %p306 = scmp.ne.s32.totalorder %s297, %s298
      %p307 = scmp.eq.s32.totalorder %s35, 0
      %p308 = por %p306, %p307
      %p309 = scmp.ne.s32.totalorder %s297, %s298
      %p310 = scmp.eq.s32.totalorder %s36, 1
      %p311 = por %p309, %p310
      %p313 = scmp.ne.s32.totalorder %s298, %s312
      %p314 = scmp.eq.s32.totalorder %s36, 0
      %p315 = por %p313, %p314
      %s316 = ssub.s32 %s30, %s37
      %p317 = scmp.eq.s32.totalorder %s316, 0
      %s319 = sadd.s32 %s318, 1
      %s320 = scalar_select %p317, %s318, %s319
      %p323 = pneg %p317
      %p324 = scmp.eq.s32.totalorder %s30, 1
      %p325 = por %p323, %p324
      %p326 = scmp.ne.s32.totalorder %s318, %s321
      %p327 = scmp.eq.s32.totalorder %s30, 0
      %p328 = por %p326, %p327
      %p329 = scmp.ne.s32.totalorder %s318, %s321
      %p330 = scmp.eq.s32.totalorder %s35, 1
      %p331 = por %p329, %p330
      %p332 = scmp.ne.s32.totalorder %s321, %s322
      %p333 = scmp.eq.s32.totalorder %s35, 0
      %p334 = por %p332, %p333
      %p335 = scmp.ne.s32.totalorder %s321, %s322
      %p336 = scmp.eq.s32.totalorder %s36, 1
      %p337 = por %p335, %p336
      %p339 = scmp.ne.s32.totalorder %s322, %s338
      %p340 = scmp.eq.s32.totalorder %s36, 0
      %p341 = por %p339, %p340
      %s342 = ssub.s32 %s30, %s37
      %p343 = scmp.eq.s32.totalorder %s342, 0
      %s345 = sadd.s32 %s344, 1
      %s346 = scalar_select %p343, %s344, %s345
      %p349 = pneg %p343
      %p350 = scmp.eq.s32.totalorder %s30, 1
      %p351 = por %p349, %p350
      %p352 = scmp.ne.s32.totalorder %s344, %s347
      %p353 = scmp.eq.s32.totalorder %s30, 0
      %p354 = por %p352, %p353
      %p355 = scmp.ne.s32.totalorder %s344, %s347
      %p356 = scmp.eq.s32.totalorder %s35, 1
      %p357 = por %p355, %p356
      %p358 = scmp.ne.s32.totalorder %s347, %s348
      %p359 = scmp.eq.s32.totalorder %s35, 0
      %p360 = por %p358, %p359
      %p361 = scmp.ne.s32.totalorder %s347, %s348
      %p362 = scmp.eq.s32.totalorder %s36, 1
      %p363 = por %p361, %p362
      %p365 = scmp.ne.s32.totalorder %s348, %s364
      %p366 = scmp.eq.s32.totalorder %s36, 0
      %p367 = por %p365, %p366
      %p368 = scmp.le.s32.totalorder 1, %s30
      %p369 = scmp.lt.s32.totalorder %s30, 3
      %p370 = pnand %p368, %p369
      %p371 = pneg %p370
      // Predicated region
      $region9: #{tpu_custom_call.1} parent=5 // pred_check
        _
      $region10: #{tpu_custom_call.1} parent=5 // pred_check_branch
        %373 = sbr.rel (%p370) target = $region12
      $region11: #{tpu_custom_call.1} parent=5 // pred_region
        %s374 = ssub.s32 %s30, 1
        // Predicated region
        $region13: #{tpu_custom_call.1} parent=11 // pred_check
          %p375 = pneg %p77
        $region14: #{tpu_custom_call.1} parent=11 // pred_check_branch
          %377 = sbr.rel (%p375) target = $region16
        $region15: #{tpu_custom_call.1} parent=11 // pred_region
          _
        $region16: #{tpu_custom_call.1} parent=11 // pred_fallthru
          _
        // Predicated region
        $region17: #{tpu_custom_call.1} parent=11 // pred_check
          %p378 = pneg %p98
        $region18: #{tpu_custom_call.1} parent=11 // pred_check_branch
          %380 = sbr.rel (%p378) target = $region20
        $region19: #{tpu_custom_call.1} parent=11 // pred_region
          _
        $region20: #{tpu_custom_call.1} parent=11 // pred_fallthru
          _
        // Predicated region
        $region21: #{tpu_custom_call.1} parent=11 // pred_check
          %p381 = pneg %p119
        $region22: #{tpu_custom_call.1} parent=11 // pred_check_branch
          %383 = sbr.rel (%p381) target = $region24
        $region23: #{tpu_custom_call.1} parent=11 // pred_region
          _
        $region24: #{tpu_custom_call.1} parent=11 // pred_fallthru
          _
        // Predicated region
        $region25: #{tpu_custom_call.1} parent=11 // pred_check
          %p384 = pneg %p140
        $region26: #{tpu_custom_call.1} parent=11 // pred_check_branch
          %386 = sbr.rel (%p384) target = $region28
        $region27: #{tpu_custom_call.1} parent=11 // pred_region
          _
        $region28: #{tpu_custom_call.1} parent=11 // pred_fallthru
          _
        // Predicated region
        $region29: #{tpu_custom_call.1} parent=11 // pred_check
          %p387 = pneg %p161
        $region30: #{tpu_custom_call.1} parent=11 // pred_check_branch
          %389 = sbr.rel (%p387) target = $region32
        $region31: #{tpu_custom_call.1} parent=11 // pred_region
          _
        $region32: #{tpu_custom_call.1} parent=11 // pred_fallthru
          _
        // Predicated region
        $region33: #{tpu_custom_call.1} parent=11 // pred_check
          %p390 = pneg %p182
        $region34: #{tpu_custom_call.1} parent=11 // pred_check_branch
          %392 = sbr.rel (%p390) target = $region36
        $region35: #{tpu_custom_call.1} parent=11 // pred_region
          _
        $region36: #{tpu_custom_call.1} parent=11 // pred_fallthru
          _
        // Predicated region
        $region37: #{tpu_custom_call.1} parent=11 // pred_check
          %p393 = pneg %p203
        $region38: #{tpu_custom_call.1} parent=11 // pred_check_branch
          %395 = sbr.rel (%p393) target = $region40
        $region39: #{tpu_custom_call.1} parent=11 // pred_region
          _
        $region40: #{tpu_custom_call.1} parent=11 // pred_fallthru
          _
        // Predicated region
        $region41: #{tpu_custom_call.1} parent=11 // pred_check
          %p396 = pneg %p224
        $region42: #{tpu_custom_call.1} parent=11 // pred_check_branch
          %398 = sbr.rel (%p396) target = $region44
        $region43: #{tpu_custom_call.1} parent=11 // pred_region
          _
        $region44: #{tpu_custom_call.1} parent=11 // pred_fallthru
          _
        // Predicated region
        $region45: #{tpu_custom_call.1} parent=11 // pred_check
          %p399 = pneg %p245
        $region46: #{tpu_custom_call.1} parent=11 // pred_check_branch
          %401 = sbr.rel (%p399) target = $region48
        $region47: #{tpu_custom_call.1} parent=11 // pred_region
          _
        $region48: #{tpu_custom_call.1} parent=11 // pred_fallthru
          _
        // Predicated region
        $region49: #{tpu_custom_call.1} parent=11 // pred_check
          %p402 = pneg %p266
        $region50: #{tpu_custom_call.1} parent=11 // pred_check_branch
          %404 = sbr.rel (%p402) target = $region52
        $region51: #{tpu_custom_call.1} parent=11 // pred_region
          _
        $region52: #{tpu_custom_call.1} parent=11 // pred_fallthru
          _
        // Predicated region
        $region53: #{tpu_custom_call.1} parent=11 // pred_check
          %p405 = pneg %p287
        $region54: #{tpu_custom_call.1} parent=11 // pred_check_branch
          %407 = sbr.rel (%p405) target = $region56
        $region55: #{tpu_custom_call.1} parent=11 // pred_region
          _
        $region56: #{tpu_custom_call.1} parent=11 // pred_fallthru
          _
        // Predicated region
        $region57: #{tpu_custom_call.1} parent=11 // pred_check
          %p408 = pneg %p308
        $region58: #{tpu_custom_call.1} parent=11 // pred_check_branch
          %410 = sbr.rel (%p408) target = $region60
        $region59: #{tpu_custom_call.1} parent=11 // pred_region
          _
        $region60: #{tpu_custom_call.1} parent=11 // pred_fallthru
          _
      $region12: #{tpu_custom_call.1} parent=5 // pred_fallthru
        _
      %p411 = scmp.lt.s32.totalorder %s30, 2
      // Predicated region
      $region61: #{tpu_custom_call.1} parent=5 // pred_check
        %p412 = pneg %p411
      $region62: #{tpu_custom_call.1} parent=5 // pred_check_branch
        %414 = sbr.rel (%p412) target = $region64
      $region63: #{tpu_custom_call.1} parent=5 // pred_region
        // Predicated region
        $region65: #{tpu_custom_call.1} parent=63 // pred_check
          %p415 = pneg %p50
        $region66: #{tpu_custom_call.1} parent=63 // pred_check_branch
          %417 = sbr.rel (%p415) target = $region68
        $region67: #{tpu_custom_call.1} parent=63 // pred_region
          %s418 = sand.u32 %s40, 1
          %s419 = scalar_lea.sflag [#allocation5], %s418
          %s420 = sand.u32 %s40, 1
          %s421 = smul.addr %s420, 8
          %s422 = scalar_lea.vmem [#allocation4], %s421
          %s424 = ssub.s32 128, 128
          %425 = vsyncadd %s419, %s424
          %s426 = smul.addr %s30, 128
          %s427 = scalar_lea.hbm %s0, %s426
          %s429 = sshll.u32 %s422, 4
          %s430 = int_to_ptr.vmem [resolvable:$true] %s429
          %432 = dma.hbm_to_vmem [thread:$0]  %s427, 128, %s430, %s419
        $region68: #{tpu_custom_call.1} parent=63 // pred_fallthru
          _
      $region64: #{tpu_custom_call.1} parent=5 // pred_fallthru
        _
      %p433 = scmp.le.s32.totalorder 1, %s30
      %p434 = scmp.lt.s32.totalorder %s30, 3
      %p435 = pnand %p433, %p434
      %p436 = pneg %p435
      // Predicated region
      $region69: #{tpu_custom_call.1} parent=5 // pred_check
        _
      $region70: #{tpu_custom_call.1} parent=5 // pred_check_branch
        %438 = sbr.rel (%p435) target = $region72
      $region71: #{tpu_custom_call.1} parent=5 // pred_region
        %s439 = ssub.s32 %s30, 1
        %s440 = sand.u32 %s43, 1
        %s441 = scalar_lea.sflag [#allocation5], %s440
        %s442 = sand.u32 %s43, 1
        %s443 = smul.addr %s442, 8
        %s444 = scalar_lea.vmem [#allocation4], %s443
        // Predicated region
        $region73: #{tpu_custom_call.1} parent=71 // pred_check
          %p445 = pneg %p56
        $region74: #{tpu_custom_call.1} parent=71 // pred_check_branch
          %447 = sbr.rel (%p445) target = $region76
        $region75: #{tpu_custom_call.1} parent=71 // pred_region
          %448 = dma.done %s441, 128
        $region76: #{tpu_custom_call.1} parent=71 // pred_fallthru
          _
        %s449 = sand.u32 %s43, 1
        %s450 = scalar_lea.sflag [#allocation5], %s449
        %s451 = sand.u32 %s43, 1
        %s452 = smul.addr %s451, 8
        %s453 = scalar_lea.vmem [#allocation4], %s452
        %p454 = pneg %p56
        %p455 = pneg %p53
        %p456 = pneg %p77
        %p457 = pneg %p74
        %p458 = pneg %p98
        %p459 = pneg %p95
        %p460 = pneg %p119
        %p461 = pneg %p116
        %p462 = pneg %p140
        %p463 = pneg %p137
        %p464 = pneg %p161
        %p465 = pneg %p158
        %p466 = pneg %p182
        %p467 = pneg %p179
        %p468 = pneg %p203
        %p469 = pneg %p200
        %p470 = pneg %p224
        %p471 = pneg %p221
        %p472 = pneg %p245
        %p473 = pneg %p242
        %p474 = pneg %p266
        %p475 = pneg %p263
        %p476 = pneg %p287
        %p477 = pneg %p284
        %p478 = pneg %p308
        %p479 = pneg %p305
        %p480 = pneg %p334
        %p481 = pneg %p331
        %s482 = sand.u32 %s321, 1
        %s483 = scalar_lea.sflag [#allocation6], %s482
        %s484 = sand.u32 %s321, 1
        %s485 = smul.addr %s484, 8
        %s486 = scalar_lea.vmem [#allocation7], %s485
        %p487 = pneg %p360
        %p488 = pneg %p357
        %s489 = sand.u32 %s347, 1
        %s490 = scalar_lea.sflag [#allocation9], %s489
        %s491 = sand.u32 %s347, 1
        %s492 = smul.addr %s491, 8
        %s493 = scalar_lea.vmem [#allocation8], %s492
        %v494 = vld [vmem:[%s444] sm:$0xff]
        %v495 = vld [vmem:[%s1] sm:$0xff]
        %v496 = vld [vmem:[%s1 + $0x8] sm:$0xff]
        %v497 = vld [vmem:[%s1 + $0x10] sm:$0xff]
        %v498 = vld [vmem:[%s1 + $0x18] sm:$0xff]
        %v499 = vld [vmem:[%s2] sm:$0x1]
        %v501 = vlaneseq
        %v502 = vshrl.u32 %v501, 7
        %v503 = vsub.s32 0, %v502
        %v504 = vrot.slane %v499, %v503
        %vm506 = vcmask 261120
        %v508 = vsel %vm506, %v494, 0
        %510 = vmatprep.subr.mxu0 0.0
        %511 = vmatpush1.msra.mxu0 0.0
        %512 = vmatprep.subr.mxu0 0.0
        %513 = vmatpush1.msra.mxu0 0.0
        %514 = vmatprep.subr.mxu0 0.0
        %515 = vmatpush1.msra.mxu0 0.0
        %516 = vmatprep.subr.mxu0 0.0
        %517 = vmatpush1.msra.mxu0 0.0
        %518 = vmatprep.subr.mxu0 0.0
        %519 = vmatpush1.msra.mxu0 0.0
        %520 = vmatprep.subr.mxu0 0.0
        %521 = vmatpush1.msra.mxu0 0.0
        %522 = vmatprep.subr.mxu0 0.0
        %523 = vmatpush1.msra.mxu0 0.0
        %524 = vmatprep.subr.mxu0 0.0
        %525 = vmatpush1.msra.mxu0 0.0
        %526 = vmatprep.subr.mxu0 0.0
        %527 = vmatpush1.msra.mxu0 0.0
        %528 = vmatprep.subr.mxu0 0.0
        %529 = vmatpush1.msra.mxu0 0.0
        %530 = vmatprep.subr.mxu0 0.0
        %531 = vmatpush1.msra.mxu0 0.0
        %532 = vmatprep.subr.mxu0 0.0
        %533 = vmatpush1.msra.mxu0 0.0
        %534 = vmatprep.subr.mxu0 0.0
        %535 = vmatpush1.msra.mxu0 %v498
        %536 = vmatprep.subr.mxu0 0.0
        %537 = vmatpush1.msra.mxu0 %v497
        %538 = vmatprep.subr.mxu0 0.0
        %539 = vmatpush1.msra.mxu0 %v496
        %540 = vmatprep.subr.mxu0 0.0
        %541 = vmatpush1.msra.mxu0 %v495
        %542 = vmatprep.subr.mxu0 0.0
        %543 = vmatpush2.msra.mxu0 0.0
        %544 = vmatprep.subr.mxu0 0.0
        %545 = vmatpush2.msra.mxu0 0.0
        %546 = vmatprep.subr.mxu0 0.0
        %547 = vmatpush2.msra.mxu0 0.0
        %548 = vmatprep.subr.mxu0 0.0
        %549 = vmatpush2.msra.mxu0 0.0
        %550 = vmatprep.subr.mxu0 0.0
        %551 = vmatpush2.msra.mxu0 0.0
        %552 = vmatprep.subr.mxu0 0.0
        %553 = vmatpush2.msra.mxu0 0.0
        %554 = vmatprep.subr.mxu0 0.0
        %555 = vmatpush2.msra.mxu0 0.0
        %556 = vmatprep.subr.mxu0 0.0
        %557 = vmatpush2.msra.mxu0 0.0
        %558 = vmatprep.subr.mxu0 0.0
        %559 = vmatpush2.msra.mxu0 0.0
        %560 = vmatprep.subr.mxu0 0.0
        %561 = vmatpush2.msra.mxu0 0.0
        %562 = vmatprep.subr.mxu0 0.0
        %563 = vmatpush2.msra.mxu0 0.0
        %564 = vmatprep.subr.mxu0 0.0
        %565 = vmatpush2.msra.mxu0 0.0
        %566 = vmatprep.subr.mxu0 0.0
        %567 = vmatpush2.msra.mxu0 0.0
        %568 = vmatprep.subr.mxu0 0.0
        %569 = vmatpush2.msra.mxu0 0.0
        %570 = vmatprep.subr.mxu0 0.0
        %571 = vmatpush2.msra.mxu0 0.0
        %572 = vmatprep.subr.mxu0 0.0
        %573 = vmatpush2.msra.mxu0 0.0
        %574 = vmatprep.mubr.f32.mxu0 0.0
        %575 = vmatmul.mubr.f32.gmra.mxu0 %v508
        %v576 = vpop.f32.mrf.mxu0
        %v577 = vadd.f32 %v504, %v576
        %v578 = vpop.f32.mrf.mxu0
        %579 = vdwg.mxu0
        %vm580 = vcmask 64512
        %581 = vst.msk [vmem:[#allocation3] sm:$0xff] %vm580, 0.0
        %583 = vrot.lane.b32.xlu0 %v577, 120
        %v584 = vpop.permute.xlu0 %583
        %v585 = vsel %vm580, %v577, 0
        %v587 = vsel %vm580, %v584, 0
        %589 = vmatprep.subr.mxu0 0.0
        %590 = vmatpush1.xpose.msra.mxu0 0.0
        %591 = vmatprep.subr.mxu0 0.0
        %592 = vmatpush1.xpose.msra.mxu0 0.0
        %593 = vmatprep.subr.mxu0 0.0
        %594 = vmatpush1.xpose.msra.mxu0 0.0
        %595 = vmatprep.subr.mxu0 0.0
        %596 = vmatpush1.xpose.msra.mxu0 0.0
        %597 = vmatprep.subr.mxu0 0.0
        %598 = vmatpush1.xpose.msra.mxu0 0.0
        %599 = vmatprep.subr.mxu0 0.0
        %600 = vmatpush1.xpose.msra.mxu0 0.0
        %601 = vmatprep.subr.mxu0 0.0
        %602 = vmatpush1.xpose.msra.mxu0 0.0
        %603 = vmatprep.subr.mxu0 0.0
        %604 = vmatpush1.xpose.msra.mxu0 0.0
        %605 = vmatprep.subr.mxu0 0.0
        %606 = vmatpush1.xpose.msra.mxu0 0.0
        %607 = vmatprep.subr.mxu0 0.0
        %608 = vmatpush1.xpose.msra.mxu0 0.0
        %609 = vmatprep.subr.mxu0 0.0
        %610 = vmatpush1.xpose.msra.mxu0 0.0
        %611 = vmatprep.subr.mxu0 0.0
        %612 = vmatpush1.xpose.msra.mxu0 0.0
        %613 = vmatprep.subr.mxu0 0.0
        %614 = vmatpush1.xpose.msra.mxu0 0.0
        %615 = vmatprep.subr.mxu0 0.0
        %616 = vmatpush1.xpose.msra.mxu0 0.0
        %617 = vmatprep.subr.mxu0 0.0
        %618 = vmatpush1.xpose.msra.mxu0 0.0
        %619 = vmatprep.subr.mxu0 0.0
        %620 = vmatpush1.xpose.msra.mxu0 %v587
        %621 = vmatprep.subr.mxu0 0.0
        %622 = vmatpush2.xpose.msra.mxu0 0.0
        %623 = vmatprep.subr.mxu0 0.0
        %624 = vmatpush2.xpose.msra.mxu0 0.0
        %625 = vmatprep.subr.mxu0 0.0
        %626 = vmatpush2.xpose.msra.mxu0 0.0
        %627 = vmatprep.subr.mxu0 0.0
        %628 = vmatpush2.xpose.msra.mxu0 0.0
        %629 = vmatprep.subr.mxu0 0.0
        %630 = vmatpush2.xpose.msra.mxu0 0.0
        %631 = vmatprep.subr.mxu0 0.0
        %632 = vmatpush2.xpose.msra.mxu0 0.0
        %633 = vmatprep.subr.mxu0 0.0
        %634 = vmatpush2.xpose.msra.mxu0 0.0
        %635 = vmatprep.subr.mxu0 0.0
        %636 = vmatpush2.xpose.msra.mxu0 0.0
        %637 = vmatprep.subr.mxu0 0.0
        %638 = vmatpush2.xpose.msra.mxu0 0.0
        %639 = vmatprep.subr.mxu0 0.0
        %640 = vmatpush2.xpose.msra.mxu0 0.0
        %641 = vmatprep.subr.mxu0 0.0
        %642 = vmatpush2.xpose.msra.mxu0 0.0
        %643 = vmatprep.subr.mxu0 0.0
        %644 = vmatpush2.xpose.msra.mxu0 0.0
        %645 = vmatprep.subr.mxu0 0.0
        %646 = vmatpush2.xpose.msra.mxu0 0.0
        %647 = vmatprep.subr.mxu0 0.0
        %648 = vmatpush2.xpose.msra.mxu0 0.0
        %649 = vmatprep.subr.mxu0 0.0
        %650 = vmatpush2.xpose.msra.mxu0 0.0
        %651 = vmatprep.subr.mxu0 0.0
        %652 = vmatpush2.xpose.msra.mxu0 0.0
        %653 = vmatprep.mubr.f32.mxu0 0.0
        %654 = vmatmul.mubr.f32.gmra.mxu0 %v585
        %v655 = vpop.f32.mrf.mxu0
        %v656 = vadd.f32 0.0, %v655
        %v657 = vpop.f32.mrf.mxu0
        %658 = vdwg.mxu0
        %v659 = vsel %vm580, %v656, -inf
        %660 = vmax.xlane.f32.xlu0 %v659
        %v661 = vpop.xlane.xlu0 %660
        %v662 = vsub.f32 %v656, %v661
        %v663 = vmul.f32 %v662, 1.442695
        %v664 = vpow.pop %v663
        %v665 = vsel %vm580, %v664, 0.0
        %666 = vadd.xlane.f32.xlu0 %v665
        %v667 = vpop.xlane.xlu0 %666
        %v668 = vrcp.pop %v667
        %v669 = vmul.f32 %v664, %v668
        %v670 = vld [vmem:[#allocation3] sm:$0xff]
        %v671 = vadd.f32 %v670, %v669
        %672 = vst.msk [vmem:[#allocation3] sm:$0xff] %vm580, %v671
        %673 = vrot.lane.b32.xlu0 %v577, 112
        %v674 = vpop.permute.xlu0 %673
        %v677 = vsel %vm580, %v669, 0
        %679 = vmatprep.subr.mxu0 0.0
        %680 = vmatpush1.msra.mxu0 0.0
        %681 = vmatprep.subr.mxu0 0.0
        %682 = vmatpush1.msra.mxu0 0.0
        %683 = vmatprep.subr.mxu0 0.0
        %684 = vmatpush1.msra.mxu0 0.0
        %685 = vmatprep.subr.mxu0 0.0
        %686 = vmatpush1.msra.mxu0 0.0
        %687 = vmatprep.subr.mxu0 0.0
        %688 = vmatpush1.msra.mxu0 0.0
        %689 = vmatprep.subr.mxu0 0.0
        %690 = vmatpush1.msra.mxu0 0.0
        %691 = vmatprep.subr.mxu0 0.0
        %692 = vmatpush1.msra.mxu0 0.0
        %693 = vmatprep.subr.mxu0 0.0
        %694 = vmatpush1.msra.mxu0 0.0
        %695 = vmatprep.subr.mxu0 0.0
        %696 = vmatpush1.msra.mxu0 0.0
        %697 = vmatprep.subr.mxu0 0.0
        %698 = vmatpush1.msra.mxu0 0.0
        %699 = vmatprep.subr.mxu0 0.0
        %700 = vmatpush1.msra.mxu0 0.0
        %701 = vmatprep.subr.mxu0 0.0
        %702 = vmatpush1.msra.mxu0 0.0
        %703 = vmatprep.subr.mxu0 0.0
        %704 = vmatpush1.msra.mxu0 0.0
        %705 = vmatprep.subr.mxu0 0.0
        %706 = vmatpush1.msra.mxu0 0.0
        %707 = vmatprep.subr.mxu0 0.0
        %708 = vmatpush1.msra.mxu0 0.0
        %709 = vmatprep.subr.mxu0 0.0
        %710 = vmatpush1.msra.mxu0 %v674
        %711 = vmatprep.subr.mxu0 0.0
        %712 = vmatpush2.msra.mxu0 0.0
        %713 = vmatprep.subr.mxu0 0.0
        %714 = vmatpush2.msra.mxu0 0.0
        %715 = vmatprep.subr.mxu0 0.0
        %716 = vmatpush2.msra.mxu0 0.0
        %717 = vmatprep.subr.mxu0 0.0
        %718 = vmatpush2.msra.mxu0 0.0
        %719 = vmatprep.subr.mxu0 0.0
        %720 = vmatpush2.msra.mxu0 0.0
        %721 = vmatprep.subr.mxu0 0.0
        %722 = vmatpush2.msra.mxu0 0.0
        %723 = vmatprep.subr.mxu0 0.0
        %724 = vmatpush2.msra.mxu0 0.0
        %725 = vmatprep.subr.mxu0 0.0
        %726 = vmatpush2.msra.mxu0 0.0
        %727 = vmatprep.subr.mxu0 0.0
        %728 = vmatpush2.msra.mxu0 0.0
        %729 = vmatprep.subr.mxu0 0.0
        %730 = vmatpush2.msra.mxu0 0.0
        %731 = vmatprep.subr.mxu0 0.0
        %732 = vmatpush2.msra.mxu0 0.0
        %733 = vmatprep.subr.mxu0 0.0
        %734 = vmatpush2.msra.mxu0 0.0
        %735 = vmatprep.subr.mxu0 0.0
        %736 = vmatpush2.msra.mxu0 0.0
        %737 = vmatprep.subr.mxu0 0.0
        %738 = vmatpush2.msra.mxu0 0.0
        %739 = vmatprep.subr.mxu0 0.0
        %740 = vmatpush2.msra.mxu0 0.0
        %741 = vmatprep.subr.mxu0 0.0
        %742 = vmatpush2.msra.mxu0 0.0
        %743 = vmatprep.mubr.f32.mxu0 0.0
        %744 = vmatmul.mubr.f32.gmra.mxu0 %v677
        %v745 = vpop.f32.mrf.mxu0
        %v746 = vadd.f32 0.0, %v745
        %v747 = vpop.f32.mrf.mxu0
        %748 = vdwg.mxu0
        %749 = vst.msk [vmem:[#allocation2] sm:$0xff] %vm580, %v746
        %750 = vrot.lane.b32.xlu0 %v577, 104
        %v751 = vpop.permute.xlu0 %750
        %752 = vrot.lane.b32.xlu0 %v577, 96
        %v753 = vpop.permute.xlu0 %752
        %v754 = vsel %vm580, %v751, 0
        %v756 = vsel %vm580, %v753, 0
        %758 = vmatprep.subr.mxu0 0.0
        %759 = vmatpush1.xpose.msra.mxu0 0.0
        %760 = vmatprep.subr.mxu0 0.0
        %761 = vmatpush1.xpose.msra.mxu0 0.0
        %762 = vmatprep.subr.mxu0 0.0
        %763 = vmatpush1.xpose.msra.mxu0 0.0
        %764 = vmatprep.subr.mxu0 0.0
        %765 = vmatpush1.xpose.msra.mxu0 0.0
        %766 = vmatprep.subr.mxu0 0.0
        %767 = vmatpush1.xpose.msra.mxu0 0.0
        %768 = vmatprep.subr.mxu0 0.0
        %769 = vmatpush1.xpose.msra.mxu0 0.0
        %770 = vmatprep.subr.mxu0 0.0
        %771 = vmatpush1.xpose.msra.mxu0 0.0
        %772 = vmatprep.subr.mxu0 0.0
        %773 = vmatpush1.xpose.msra.mxu0 0.0
        %774 = vmatprep.subr.mxu0 0.0
        %775 = vmatpush1.xpose.msra.mxu0 0.0
        %776 = vmatprep.subr.mxu0 0.0
        %777 = vmatpush1.xpose.msra.mxu0 0.0
        %778 = vmatprep.subr.mxu0 0.0
        %779 = vmatpush1.xpose.msra.mxu0 0.0
        %780 = vmatprep.subr.mxu0 0.0
        %781 = vmatpush1.xpose.msra.mxu0 0.0
        %782 = vmatprep.subr.mxu0 0.0
        %783 = vmatpush1.xpose.msra.mxu0 0.0
        %784 = vmatprep.subr.mxu0 0.0
        %785 = vmatpush1.xpose.msra.mxu0 0.0
        %786 = vmatprep.subr.mxu0 0.0
        %787 = vmatpush1.xpose.msra.mxu0 0.0
        %788 = vmatprep.subr.mxu0 0.0
        %789 = vmatpush1.xpose.msra.mxu0 %v756
        %790 = vmatprep.subr.mxu0 0.0
        %791 = vmatpush2.xpose.msra.mxu0 0.0
        %792 = vmatprep.subr.mxu0 0.0
        %793 = vmatpush2.xpose.msra.mxu0 0.0
        %794 = vmatprep.subr.mxu0 0.0
        %795 = vmatpush2.xpose.msra.mxu0 0.0
        %796 = vmatprep.subr.mxu0 0.0
        %797 = vmatpush2.xpose.msra.mxu0 0.0
        %798 = vmatprep.subr.mxu0 0.0
        %799 = vmatpush2.xpose.msra.mxu0 0.0
        %800 = vmatprep.subr.mxu0 0.0
        %801 = vmatpush2.xpose.msra.mxu0 0.0
        %802 = vmatprep.subr.mxu0 0.0
        %803 = vmatpush2.xpose.msra.mxu0 0.0
        %804 = vmatprep.subr.mxu0 0.0
        %805 = vmatpush2.xpose.msra.mxu0 0.0
        %806 = vmatprep.subr.mxu0 0.0
        %807 = vmatpush2.xpose.msra.mxu0 0.0
        %808 = vmatprep.subr.mxu0 0.0
        %809 = vmatpush2.xpose.msra.mxu0 0.0
        %810 = vmatprep.subr.mxu0 0.0
        %811 = vmatpush2.xpose.msra.mxu0 0.0
        %812 = vmatprep.subr.mxu0 0.0
        %813 = vmatpush2.xpose.msra.mxu0 0.0
        %814 = vmatprep.subr.mxu0 0.0
        %815 = vmatpush2.xpose.msra.mxu0 0.0
        %816 = vmatprep.subr.mxu0 0.0
        %817 = vmatpush2.xpose.msra.mxu0 0.0
        %818 = vmatprep.subr.mxu0 0.0
        %819 = vmatpush2.xpose.msra.mxu0 0.0
        %820 = vmatprep.subr.mxu0 0.0
        %821 = vmatpush2.xpose.msra.mxu0 0.0
        %822 = vmatprep.mubr.f32.mxu0 0.0
        %823 = vmatmul.mubr.f32.gmra.mxu0 %v754
        %v824 = vpop.f32.mrf.mxu0
        %v825 = vadd.f32 0.0, %v824
        %v826 = vpop.f32.mrf.mxu0
        %827 = vdwg.mxu0
        %v828 = vsel %vm580, %v825, -inf
        %829 = vmax.xlane.f32.xlu0 %v828
        %v830 = vpop.xlane.xlu0 %829
        %v831 = vsub.f32 %v825, %v830
        %v832 = vmul.f32 %v831, 1.442695
        %v833 = vpow.pop %v832
        %v834 = vsel %vm580, %v833, 0.0
        %835 = vadd.xlane.f32.xlu0 %v834
        %v836 = vpop.xlane.xlu0 %835
        %v837 = vrcp.pop %v836
        %v838 = vmul.f32 %v833, %v837
        %v839 = vld [vmem:[#allocation3] sm:$0xff]
        %v840 = vadd.f32 %v839, %v838
        %841 = vst.msk [vmem:[#allocation3] sm:$0xff] %vm580, %v840
        %842 = vrot.lane.b32.xlu0 %v577, 88
        %v843 = vpop.permute.xlu0 %842
        %v846 = vsel %vm580, %v838, 0
        %848 = vmatprep.subr.mxu0 0.0
        %849 = vmatpush1.msra.mxu0 0.0
        %850 = vmatprep.subr.mxu0 0.0
        %851 = vmatpush1.msra.mxu0 0.0
        %852 = vmatprep.subr.mxu0 0.0
        %853 = vmatpush1.msra.mxu0 0.0
        %854 = vmatprep.subr.mxu0 0.0
        %855 = vmatpush1.msra.mxu0 0.0
        %856 = vmatprep.subr.mxu0 0.0
        %857 = vmatpush1.msra.mxu0 0.0
        %858 = vmatprep.subr.mxu0 0.0
        %859 = vmatpush1.msra.mxu0 0.0
        %860 = vmatprep.subr.mxu0 0.0
        %861 = vmatpush1.msra.mxu0 0.0
        %862 = vmatprep.subr.mxu0 0.0
        %863 = vmatpush1.msra.mxu0 0.0
        %864 = vmatprep.subr.mxu0 0.0
        %865 = vmatpush1.msra.mxu0 0.0
        %866 = vmatprep.subr.mxu0 0.0
        %867 = vmatpush1.msra.mxu0 0.0
        %868 = vmatprep.subr.mxu0 0.0
        %869 = vmatpush1.msra.mxu0 0.0
        %870 = vmatprep.subr.mxu0 0.0
        %871 = vmatpush1.msra.mxu0 0.0
        %872 = vmatprep.subr.mxu0 0.0
        %873 = vmatpush1.msra.mxu0 0.0
        %874 = vmatprep.subr.mxu0 0.0
        %875 = vmatpush1.msra.mxu0 0.0
        %876 = vmatprep.subr.mxu0 0.0
        %877 = vmatpush1.msra.mxu0 0.0
        %878 = vmatprep.subr.mxu0 0.0
        %879 = vmatpush1.msra.mxu0 %v843
        %880 = vmatprep.subr.mxu0 0.0
        %881 = vmatpush2.msra.mxu0 0.0
        %882 = vmatprep.subr.mxu0 0.0
        %883 = vmatpush2.msra.mxu0 0.0
        %884 = vmatprep.subr.mxu0 0.0
        %885 = vmatpush2.msra.mxu0 0.0
        %886 = vmatprep.subr.mxu0 0.0
        %887 = vmatpush2.msra.mxu0 0.0
        %888 = vmatprep.subr.mxu0 0.0
        %889 = vmatpush2.msra.mxu0 0.0
        %890 = vmatprep.subr.mxu0 0.0
        %891 = vmatpush2.msra.mxu0 0.0
        %892 = vmatprep.subr.mxu0 0.0
        %893 = vmatpush2.msra.mxu0 0.0
        %894 = vmatprep.subr.mxu0 0.0
        %895 = vmatpush2.msra.mxu0 0.0
        %896 = vmatprep.subr.mxu0 0.0
        %897 = vmatpush2.msra.mxu0 0.0
        %898 = vmatprep.subr.mxu0 0.0
        %899 = vmatpush2.msra.mxu0 0.0
        %900 = vmatprep.subr.mxu0 0.0
        %901 = vmatpush2.msra.mxu0 0.0
        %902 = vmatprep.subr.mxu0 0.0
        %903 = vmatpush2.msra.mxu0 0.0
        %904 = vmatprep.subr.mxu0 0.0
        %905 = vmatpush2.msra.mxu0 0.0
        %906 = vmatprep.subr.mxu0 0.0
        %907 = vmatpush2.msra.mxu0 0.0
        %908 = vmatprep.subr.mxu0 0.0
        %909 = vmatpush2.msra.mxu0 0.0
        %910 = vmatprep.subr.mxu0 0.0
        %911 = vmatpush2.msra.mxu0 0.0
        %912 = vmatprep.mubr.f32.mxu0 0.0
        %913 = vmatmul.mubr.f32.gmra.mxu0 %v846
        %v914 = vpop.f32.mrf.mxu0
        %v915 = vadd.f32 0.0, %v914
        %v916 = vpop.f32.mrf.mxu0
        %917 = vdwg.mxu0
        %918 = vst.msk [vmem:[#allocation2 + $0x8] sm:$0xff] %vm580, %v915
        %919 = vrot.lane.b32.xlu0 %v577, 80
        %v920 = vpop.permute.xlu0 %919
        %921 = vrot.lane.b32.xlu0 %v577, 72
        %v922 = vpop.permute.xlu0 %921
        %v923 = vsel %vm580, %v920, 0
        %v925 = vsel %vm580, %v922, 0
        %927 = vmatprep.subr.mxu0 0.0
        %928 = vmatpush1.xpose.msra.mxu0 0.0
        %929 = vmatprep.subr.mxu0 0.0
        %930 = vmatpush1.xpose.msra.mxu0 0.0
        %931 = vmatprep.subr.mxu0 0.0
        %932 = vmatpush1.xpose.msra.mxu0 0.0
        %933 = vmatprep.subr.mxu0 0.0
        %934 = vmatpush1.xpose.msra.mxu0 0.0
        %935 = vmatprep.subr.mxu0 0.0
        %936 = vmatpush1.xpose.msra.mxu0 0.0
        %937 = vmatprep.subr.mxu0 0.0
        %938 = vmatpush1.xpose.msra.mxu0 0.0
        %939 = vmatprep.subr.mxu0 0.0
        %940 = vmatpush1.xpose.msra.mxu0 0.0
        %941 = vmatprep.subr.mxu0 0.0
        %942 = vmatpush1.xpose.msra.mxu0 0.0
        %943 = vmatprep.subr.mxu0 0.0
        %944 = vmatpush1.xpose.msra.mxu0 0.0
        %945 = vmatprep.subr.mxu0 0.0
        %946 = vmatpush1.xpose.msra.mxu0 0.0
        %947 = vmatprep.subr.mxu0 0.0
        %948 = vmatpush1.xpose.msra.mxu0 0.0
        %949 = vmatprep.subr.mxu0 0.0
        %950 = vmatpush1.xpose.msra.mxu0 0.0
        %951 = vmatprep.subr.mxu0 0.0
        %952 = vmatpush1.xpose.msra.mxu0 0.0
        %953 = vmatprep.subr.mxu0 0.0
        %954 = vmatpush1.xpose.msra.mxu0 0.0
        %955 = vmatprep.subr.mxu0 0.0
        %956 = vmatpush1.xpose.msra.mxu0 0.0
        %957 = vmatprep.subr.mxu0 0.0
        %958 = vmatpush1.xpose.msra.mxu0 %v925
        %959 = vmatprep.subr.mxu0 0.0
        %960 = vmatpush2.xpose.msra.mxu0 0.0
        %961 = vmatprep.subr.mxu0 0.0
        %962 = vmatpush2.xpose.msra.mxu0 0.0
        %963 = vmatprep.subr.mxu0 0.0
        %964 = vmatpush2.xpose.msra.mxu0 0.0
        %965 = vmatprep.subr.mxu0 0.0
        %966 = vmatpush2.xpose.msra.mxu0 0.0
        %967 = vmatprep.subr.mxu0 0.0
        %968 = vmatpush2.xpose.msra.mxu0 0.0
        %969 = vmatprep.subr.mxu0 0.0
        %970 = vmatpush2.xpose.msra.mxu0 0.0
        %971 = vmatprep.subr.mxu0 0.0
        %972 = vmatpush2.xpose.msra.mxu0 0.0
        %973 = vmatprep.subr.mxu0 0.0
        %974 = vmatpush2.xpose.msra.mxu0 0.0
        %975 = vmatprep.subr.mxu0 0.0
        %976 = vmatpush2.xpose.msra.mxu0 0.0
        %977 = vmatprep.subr.mxu0 0.0
        %978 = vmatpush2.xpose.msra.mxu0 0.0
        %979 = vmatprep.subr.mxu0 0.0
        %980 = vmatpush2.xpose.msra.mxu0 0.0
        %981 = vmatprep.subr.mxu0 0.0
        %982 = vmatpush2.xpose.msra.mxu0 0.0
        %983 = vmatprep.subr.mxu0 0.0
        %984 = vmatpush2.xpose.msra.mxu0 0.0
        %985 = vmatprep.subr.mxu0 0.0
        %986 = vmatpush2.xpose.msra.mxu0 0.0
        %987 = vmatprep.subr.mxu0 0.0
        %988 = vmatpush2.xpose.msra.mxu0 0.0
        %989 = vmatprep.subr.mxu0 0.0
        %990 = vmatpush2.xpose.msra.mxu0 0.0
        %991 = vmatprep.mubr.f32.mxu0 0.0
        %992 = vmatmul.mubr.f32.gmra.mxu0 %v923
        %v993 = vpop.f32.mrf.mxu0
        %v994 = vadd.f32 0.0, %v993
        %v995 = vpop.f32.mrf.mxu0
        %996 = vdwg.mxu0
        %v997 = vsel %vm580, %v994, -inf
        %998 = vmax.xlane.f32.xlu0 %v997
        %v999 = vpop.xlane.xlu0 %998
        %v1000 = vsub.f32 %v994, %v999
        %v1001 = vmul.f32 %v1000, 1.442695
        %v1002 = vpow.pop %v1001
        %v1003 = vsel %vm580, %v1002, 0.0
        %1004 = vadd.xlane.f32.xlu0 %v1003
        %v1005 = vpop.xlane.xlu0 %1004
        %v1006 = vrcp.pop %v1005
        %v1007 = vmul.f32 %v1002, %v1006
        %v1008 = vld [vmem:[#allocation3] sm:$0xff]
        %v1009 = vadd.f32 %v1008, %v1007
        %1010 = vst.msk [vmem:[#allocation3] sm:$0xff] %vm580, %v1009
        %1011 = vrot.lane.b32.xlu0 %v577, 64
        %v1012 = vpop.permute.xlu0 %1011
        %v1015 = vsel %vm580, %v1007, 0
        %1017 = vmatprep.subr.mxu0 0.0
        %1018 = vmatpush1.msra.mxu0 0.0
        %1019 = vmatprep.subr.mxu0 0.0
        %1020 = vmatpush1.msra.mxu0 0.0
        %1021 = vmatprep.subr.mxu0 0.0
        %1022 = vmatpush1.msra.mxu0 0.0
        %1023 = vmatprep.subr.mxu0 0.0
        %1024 = vmatpush1.msra.mxu0 0.0
        %1025 = vmatprep.subr.mxu0 0.0
        %1026 = vmatpush1.msra.mxu0 0.0
        %1027 = vmatprep.subr.mxu0 0.0
        %1028 = vmatpush1.msra.mxu0 0.0
        %1029 = vmatprep.subr.mxu0 0.0
        %1030 = vmatpush1.msra.mxu0 0.0
        %1031 = vmatprep.subr.mxu0 0.0
        %1032 = vmatpush1.msra.mxu0 0.0
        %1033 = vmatprep.subr.mxu0 0.0
        %1034 = vmatpush1.msra.mxu0 0.0
        %1035 = vmatprep.subr.mxu0 0.0
        %1036 = vmatpush1.msra.mxu0 0.0
        %1037 = vmatprep.subr.mxu0 0.0
        %1038 = vmatpush1.msra.mxu0 0.0
        %1039 = vmatprep.subr.mxu0 0.0
        %1040 = vmatpush1.msra.mxu0 0.0
        %1041 = vmatprep.subr.mxu0 0.0
        %1042 = vmatpush1.msra.mxu0 0.0
        %1043 = vmatprep.subr.mxu0 0.0
        %1044 = vmatpush1.msra.mxu0 0.0
        %1045 = vmatprep.subr.mxu0 0.0
        %1046 = vmatpush1.msra.mxu0 0.0
        %1047 = vmatprep.subr.mxu0 0.0
        %1048 = vmatpush1.msra.mxu0 %v1012
        %1049 = vmatprep.subr.mxu0 0.0
        %1050 = vmatpush2.msra.mxu0 0.0
        %1051 = vmatprep.subr.mxu0 0.0
        %1052 = vmatpush2.msra.mxu0 0.0
        %1053 = vmatprep.subr.mxu0 0.0
        %1054 = vmatpush2.msra.mxu0 0.0
        %1055 = vmatprep.subr.mxu0 0.0
        %1056 = vmatpush2.msra.mxu0 0.0
        %1057 = vmatprep.subr.mxu0 0.0
        %1058 = vmatpush2.msra.mxu0 0.0
        %1059 = vmatprep.subr.mxu0 0.0
        %1060 = vmatpush2.msra.mxu0 0.0
        %1061 = vmatprep.subr.mxu0 0.0
        %1062 = vmatpush2.msra.mxu0 0.0
        %1063 = vmatprep.subr.mxu0 0.0
        %1064 = vmatpush2.msra.mxu0 0.0
        %1065 = vmatprep.subr.mxu0 0.0
        %1066 = vmatpush2.msra.mxu0 0.0
        %1067 = vmatprep.subr.mxu0 0.0
        %1068 = vmatpush2.msra.mxu0 0.0
        %1069 = vmatprep.subr.mxu0 0.0
        %1070 = vmatpush2.msra.mxu0 0.0
        %1071 = vmatprep.subr.mxu0 0.0
        %1072 = vmatpush2.msra.mxu0 0.0
        %1073 = vmatprep.subr.mxu0 0.0
        %1074 = vmatpush2.msra.mxu0 0.0
        %1075 = vmatprep.subr.mxu0 0.0
        %1076 = vmatpush2.msra.mxu0 0.0
        %1077 = vmatprep.subr.mxu0 0.0
        %1078 = vmatpush2.msra.mxu0 0.0
        %1079 = vmatprep.subr.mxu0 0.0
        %1080 = vmatpush2.msra.mxu0 0.0
        %1081 = vmatprep.mubr.f32.mxu0 0.0
        %1082 = vmatmul.mubr.f32.gmra.mxu0 %v1015
        %v1083 = vpop.f32.mrf.mxu0
        %v1084 = vadd.f32 0.0, %v1083
        %v1085 = vpop.f32.mrf.mxu0
        %1086 = vdwg.mxu0
        %1087 = vst.msk [vmem:[#allocation2 + $0x10] sm:$0xff] %vm580, %v1084
        %1088 = vrot.lane.b32.xlu0 %v577, 56
        %v1089 = vpop.permute.xlu0 %1088
        %1090 = vrot.lane.b32.xlu0 %v577, 48
        %v1091 = vpop.permute.xlu0 %1090
        %v1092 = vsel %vm580, %v1089, 0
        %v1094 = vsel %vm580, %v1091, 0
        %1096 = vmatprep.subr.mxu0 0.0
        %1097 = vmatpush1.xpose.msra.mxu0 0.0
        %1098 = vmatprep.subr.mxu0 0.0
        %1099 = vmatpush1.xpose.msra.mxu0 0.0
        %1100 = vmatprep.subr.mxu0 0.0
        %1101 = vmatpush1.xpose.msra.mxu0 0.0
        %1102 = vmatprep.subr.mxu0 0.0
        %1103 = vmatpush1.xpose.msra.mxu0 0.0
        %1104 = vmatprep.subr.mxu0 0.0
        %1105 = vmatpush1.xpose.msra.mxu0 0.0
        %1106 = vmatprep.subr.mxu0 0.0
        %1107 = vmatpush1.xpose.msra.mxu0 0.0
        %1108 = vmatprep.subr.mxu0 0.0
        %1109 = vmatpush1.xpose.msra.mxu0 0.0
        %1110 = vmatprep.subr.mxu0 0.0
        %1111 = vmatpush1.xpose.msra.mxu0 0.0
        %1112 = vmatprep.subr.mxu0 0.0
        %1113 = vmatpush1.xpose.msra.mxu0 0.0
        %1114 = vmatprep.subr.mxu0 0.0
        %1115 = vmatpush1.xpose.msra.mxu0 0.0
        %1116 = vmatprep.subr.mxu0 0.0
        %1117 = vmatpush1.xpose.msra.mxu0 0.0
        %1118 = vmatprep.subr.mxu0 0.0
        %1119 = vmatpush1.xpose.msra.mxu0 0.0
        %1120 = vmatprep.subr.mxu0 0.0
        %1121 = vmatpush1.xpose.msra.mxu0 0.0
        %1122 = vmatprep.subr.mxu0 0.0
        %1123 = vmatpush1.xpose.msra.mxu0 0.0
        %1124 = vmatprep.subr.mxu0 0.0
        %1125 = vmatpush1.xpose.msra.mxu0 0.0
        %1126 = vmatprep.subr.mxu0 0.0
        %1127 = vmatpush1.xpose.msra.mxu0 %v1094
        %1128 = vmatprep.subr.mxu0 0.0
        %1129 = vmatpush2.xpose.msra.mxu0 0.0
        %1130 = vmatprep.subr.mxu0 0.0
        %1131 = vmatpush2.xpose.msra.mxu0 0.0
        %1132 = vmatprep.subr.mxu0 0.0
        %1133 = vmatpush2.xpose.msra.mxu0 0.0
        %1134 = vmatprep.subr.mxu0 0.0
        %1135 = vmatpush2.xpose.msra.mxu0 0.0
        %1136 = vmatprep.subr.mxu0 0.0
        %1137 = vmatpush2.xpose.msra.mxu0 0.0
        %1138 = vmatprep.subr.mxu0 0.0
        %1139 = vmatpush2.xpose.msra.mxu0 0.0
        %1140 = vmatprep.subr.mxu0 0.0
        %1141 = vmatpush2.xpose.msra.mxu0 0.0
        %1142 = vmatprep.subr.mxu0 0.0
        %1143 = vmatpush2.xpose.msra.mxu0 0.0
        %1144 = vmatprep.subr.mxu0 0.0
        %1145 = vmatpush2.xpose.msra.mxu0 0.0
        %1146 = vmatprep.subr.mxu0 0.0
        %1147 = vmatpush2.xpose.msra.mxu0 0.0
        %1148 = vmatprep.subr.mxu0 0.0
        %1149 = vmatpush2.xpose.msra.mxu0 0.0
        %1150 = vmatprep.subr.mxu0 0.0
        %1151 = vmatpush2.xpose.msra.mxu0 0.0
        %1152 = vmatprep.subr.mxu0 0.0
        %1153 = vmatpush2.xpose.msra.mxu0 0.0
        %1154 = vmatprep.subr.mxu0 0.0
        %1155 = vmatpush2.xpose.msra.mxu0 0.0
        %1156 = vmatprep.subr.mxu0 0.0
        %1157 = vmatpush2.xpose.msra.mxu0 0.0
        %1158 = vmatprep.subr.mxu0 0.0
        %1159 = vmatpush2.xpose.msra.mxu0 0.0
        %1160 = vmatprep.mubr.f32.mxu0 0.0
        %1161 = vmatmul.mubr.f32.gmra.mxu0 %v1092
        %v1162 = vpop.f32.mrf.mxu0
        %v1163 = vadd.f32 0.0, %v1162
        %v1164 = vpop.f32.mrf.mxu0
        %1165 = vdwg.mxu0
        %v1166 = vsel %vm580, %v1163, -inf
        %1167 = vmax.xlane.f32.xlu0 %v1166
        %v1168 = vpop.xlane.xlu0 %1167
        %v1169 = vsub.f32 %v1163, %v1168
        %v1170 = vmul.f32 %v1169, 1.442695
        %v1171 = vpow.pop %v1170
        %v1172 = vsel %vm580, %v1171, 0.0
        %1173 = vadd.xlane.f32.xlu0 %v1172
        %v1174 = vpop.xlane.xlu0 %1173
        %v1175 = vrcp.pop %v1174
        %v1176 = vmul.f32 %v1171, %v1175
        %v1177 = vld [vmem:[#allocation3] sm:$0xff]
        %v1178 = vadd.f32 %v1177, %v1176
        %1179 = vst.msk [vmem:[#allocation3] sm:$0xff] %vm580, %v1178
        %1180 = vrot.lane.b32.xlu0 %v577, 40
        %v1181 = vpop.permute.xlu0 %1180
        %v1184 = vsel %vm580, %v1176, 0
        %1186 = vmatprep.subr.mxu0 0.0
        %1187 = vmatpush1.msra.mxu0 0.0
        %1188 = vmatprep.subr.mxu0 0.0
        %1189 = vmatpush1.msra.mxu0 0.0
        %1190 = vmatprep.subr.mxu0 0.0
        %1191 = vmatpush1.msra.mxu0 0.0
        %1192 = vmatprep.subr.mxu0 0.0
        %1193 = vmatpush1.msra.mxu0 0.0
        %1194 = vmatprep.subr.mxu0 0.0
        %1195 = vmatpush1.msra.mxu0 0.0
        %1196 = vmatprep.subr.mxu0 0.0
        %1197 = vmatpush1.msra.mxu0 0.0
        %1198 = vmatprep.subr.mxu0 0.0
        %1199 = vmatpush1.msra.mxu0 0.0
        %1200 = vmatprep.subr.mxu0 0.0
        %1201 = vmatpush1.msra.mxu0 0.0
        %1202 = vmatprep.subr.mxu0 0.0
        %1203 = vmatpush1.msra.mxu0 0.0
        %1204 = vmatprep.subr.mxu0 0.0
        %1205 = vmatpush1.msra.mxu0 0.0
        %1206 = vmatprep.subr.mxu0 0.0
        %1207 = vmatpush1.msra.mxu0 0.0
        %1208 = vmatprep.subr.mxu0 0.0
        %1209 = vmatpush1.msra.mxu0 0.0
        %1210 = vmatprep.subr.mxu0 0.0
        %1211 = vmatpush1.msra.mxu0 0.0
        %1212 = vmatprep.subr.mxu0 0.0
        %1213 = vmatpush1.msra.mxu0 0.0
        %1214 = vmatprep.subr.mxu0 0.0
        %1215 = vmatpush1.msra.mxu0 0.0
        %1216 = vmatprep.subr.mxu0 0.0
        %1217 = vmatpush1.msra.mxu0 %v1181
        %1218 = vmatprep.subr.mxu0 0.0
        %1219 = vmatpush2.msra.mxu0 0.0
        %1220 = vmatprep.subr.mxu0 0.0
        %1221 = vmatpush2.msra.mxu0 0.0
        %1222 = vmatprep.subr.mxu0 0.0
        %1223 = vmatpush2.msra.mxu0 0.0
        %1224 = vmatprep.subr.mxu0 0.0
        %1225 = vmatpush2.msra.mxu0 0.0
        %1226 = vmatprep.subr.mxu0 0.0
        %1227 = vmatpush2.msra.mxu0 0.0
        %1228 = vmatprep.subr.mxu0 0.0
        %1229 = vmatpush2.msra.mxu0 0.0
        %1230 = vmatprep.subr.mxu0 0.0
        %1231 = vmatpush2.msra.mxu0 0.0
        %1232 = vmatprep.subr.mxu0 0.0
        %1233 = vmatpush2.msra.mxu0 0.0
        %1234 = vmatprep.subr.mxu0 0.0
        %1235 = vmatpush2.msra.mxu0 0.0
        %1236 = vmatprep.subr.mxu0 0.0
        %1237 = vmatpush2.msra.mxu0 0.0
        %1238 = vmatprep.subr.mxu0 0.0
        %1239 = vmatpush2.msra.mxu0 0.0
        %1240 = vmatprep.subr.mxu0 0.0
        %1241 = vmatpush2.msra.mxu0 0.0
        %1242 = vmatprep.subr.mxu0 0.0
        %1243 = vmatpush2.msra.mxu0 0.0
        %1244 = vmatprep.subr.mxu0 0.0
        %1245 = vmatpush2.msra.mxu0 0.0
        %1246 = vmatprep.subr.mxu0 0.0
        %1247 = vmatpush2.msra.mxu0 0.0
        %1248 = vmatprep.subr.mxu0 0.0
        %1249 = vmatpush2.msra.mxu0 0.0
        %1250 = vmatprep.mubr.f32.mxu0 0.0
        %1251 = vmatmul.mubr.f32.gmra.mxu0 %v1184
        %v1252 = vpop.f32.mrf.mxu0
        %v1253 = vadd.f32 0.0, %v1252
        %v1254 = vpop.f32.mrf.mxu0
        %1255 = vdwg.mxu0
        %1256 = vst.msk [vmem:[#allocation2 + $0x18] sm:$0xff] %vm580, %v1253
        %v1257 = vld [vmem:[#allocation3] sm:$0xff]
        %v1258 = vmul.f32 %v1257, 0.25
        %1259 = vst.msk [vmem:[%s493] sm:$0xff] %vm580, %v1258
        %v1260 = vld [vmem:[#allocation2] ss:$4 sm:$0xff]
        %s1261 = scalar_lea.vmem [#allocation2], 1
        %v1262 = vld [vmem:[%s1261] ss:$4 sm:$0xff]
        %s1263 = scalar_lea.vmem [#allocation2], 2
        %v1264 = vld [vmem:[%s1263] ss:$4 sm:$0xff]
        %s1265 = scalar_lea.vmem [#allocation2], 3
        %v1266 = vld [vmem:[%s1265] ss:$4 sm:$0xff]
        %1268 = vrot.lane.b32.xlu0 %v1262, 8
        %v1269 = vpop.permute.xlu0 %1268
        %1272 = vrot.lane.b32.xlu0 %v1264, 16
        %v1273 = vpop.permute.xlu0 %1272
        %1276 = vrot.lane.b32.xlu0 %v1266, 24
        %v1277 = vpop.permute.xlu0 %1276
        %v1279 = vsel %vm580, %v1260, %v1269
        %vm1280 = vcmask 130048
        %v1281 = vsel %vm1280, %v1279, %v1273
        %vm1282 = vcmask 195584
        %v1283 = vsel %vm1282, %v1281, %v1277
        %v1284 = vld [vmem:[%s3] sm:$0xff]
        %v1285 = vld [vmem:[%s3 + $0x8] sm:$0xff]
        %v1286 = vld [vmem:[%s3 + $0x10] sm:$0xff]
        %v1287 = vld [vmem:[%s3 + $0x18] sm:$0xff]
        %v1288 = vld [vmem:[%s4] sm:$0x1]
        %v1290 = vlaneseq
        %v1291 = vshrl.u32 %v1290, 7
        %v1292 = vsub.s32 0, %v1291
        %v1293 = vrot.slane %v1288, %v1292
        %v1296 = vsel %vm506, %v1283, 0
        %1298 = vmatprep.subr.mxu0 0.0
        %1299 = vmatpush1.msra.mxu0 0.0
        %1300 = vmatprep.subr.mxu0 0.0
        %1301 = vmatpush1.msra.mxu0 0.0
        %1302 = vmatprep.subr.mxu0 0.0
        %1303 = vmatpush1.msra.mxu0 0.0
        %1304 = vmatprep.subr.mxu0 0.0
        %1305 = vmatpush1.msra.mxu0 0.0
        %1306 = vmatprep.subr.mxu0 0.0
        %1307 = vmatpush1.msra.mxu0 0.0
        %1308 = vmatprep.subr.mxu0 0.0
        %1309 = vmatpush1.msra.mxu0 0.0
        %1310 = vmatprep.subr.mxu0 0.0
        %1311 = vmatpush1.msra.mxu0 0.0
        %1312 = vmatprep.subr.mxu0 0.0
        %1313 = vmatpush1.msra.mxu0 0.0
        %1314 = vmatprep.subr.mxu0 0.0
        %1315 = vmatpush1.msra.mxu0 0.0
        %1316 = vmatprep.subr.mxu0 0.0
        %1317 = vmatpush1.msra.mxu0 0.0
        %1318 = vmatprep.subr.mxu0 0.0
        %1319 = vmatpush1.msra.mxu0 0.0
        %1320 = vmatprep.subr.mxu0 0.0
        %1321 = vmatpush1.msra.mxu0 0.0
        %1322 = vmatprep.subr.mxu0 0.0
        %1323 = vmatpush1.msra.mxu0 %v1287
        %1324 = vmatprep.subr.mxu0 0.0
        %1325 = vmatpush1.msra.mxu0 %v1286
        %1326 = vmatprep.subr.mxu0 0.0
        %1327 = vmatpush1.msra.mxu0 %v1285
        %1328 = vmatprep.subr.mxu0 0.0
        %1329 = vmatpush1.msra.mxu0 %v1284
        %1330 = vmatprep.subr.mxu0 0.0
        %1331 = vmatpush2.msra.mxu0 0.0
        %1332 = vmatprep.subr.mxu0 0.0
        %1333 = vmatpush2.msra.mxu0 0.0
        %1334 = vmatprep.subr.mxu0 0.0
        %1335 = vmatpush2.msra.mxu0 0.0
        %1336 = vmatprep.subr.mxu0 0.0
        %1337 = vmatpush2.msra.mxu0 0.0
        %1338 = vmatprep.subr.mxu0 0.0
        %1339 = vmatpush2.msra.mxu0 0.0
        %1340 = vmatprep.subr.mxu0 0.0
        %1341 = vmatpush2.msra.mxu0 0.0
        %1342 = vmatprep.subr.mxu0 0.0
        %1343 = vmatpush2.msra.mxu0 0.0
        %1344 = vmatprep.subr.mxu0 0.0
        %1345 = vmatpush2.msra.mxu0 0.0
        %1346 = vmatprep.subr.mxu0 0.0
        %1347 = vmatpush2.msra.mxu0 0.0
        %1348 = vmatprep.subr.mxu0 0.0
        %1349 = vmatpush2.msra.mxu0 0.0
        %1350 = vmatprep.subr.mxu0 0.0
        %1351 = vmatpush2.msra.mxu0 0.0
        %1352 = vmatprep.subr.mxu0 0.0
        %1353 = vmatpush2.msra.mxu0 0.0
        %1354 = vmatprep.subr.mxu0 0.0
        %1355 = vmatpush2.msra.mxu0 0.0
        %1356 = vmatprep.subr.mxu0 0.0
        %1357 = vmatpush2.msra.mxu0 0.0
        %1358 = vmatprep.subr.mxu0 0.0
        %1359 = vmatpush2.msra.mxu0 0.0
        %1360 = vmatprep.subr.mxu0 0.0
        %1361 = vmatpush2.msra.mxu0 0.0
        %1362 = vmatprep.mubr.f32.mxu0 0.0
        %1363 = vmatmul.mubr.f32.gmra.mxu0 %v1296
        %v1364 = vpop.f32.mrf.mxu0
        %v1365 = vadd.f32 %v1293, %v1364
        %v1366 = vpop.f32.mrf.mxu0
        %1367 = vdwg.mxu0
        %v1368 = vadd.f32 %v1365, %v494
        %v1369 = vld [vmem:[%s5] sm:$0x1]
        %v1370 = vld [vmem:[%s6] sm:$0x1]
        %v1371 = vsel %vm506, %v1368, 0.0
        %1372 = vadd.xlane.f32.xlu0 %v1371
        %v1373 = vpop.xlane.xlu0 %1372
        %v1374 = vrcp.pop 32.0
        %v1375 = vmul.f32 %v1373, %v1374
        %v1376 = vsub.f32 %v1368, %v1375
        %v1377 = vmul.f32 %v1376, %v1376
        %v1378 = vsel %vm506, %v1377, 0.0
        %1379 = vadd.xlane.f32.xlu0 %v1378
        %v1380 = vpop.xlane.xlu0 %1379
        %v1381 = vmul.f32 %v1380, %v1374
        %v1382 = vadd.f32 %v1381, 1e-08
        %v1383 = vrsqrt.pop %v1382
        %v1384 = vmul.f32 %v1376, %v1383
        %v1386 = vlaneseq
        %v1387 = vshrl.u32 %v1386, 7
        %v1388 = vsub.s32 0, %v1387
        %v1389 = vrot.slane %v1369, %v1388
        %v1391 = vmul.f32 %v1389, %v1384
        %v1393 = vlaneseq
        %v1394 = vshrl.u32 %v1393, 7
        %v1395 = vsub.s32 0, %v1394
        %v1396 = vrot.slane %v1370, %v1395
        %v1398 = vadd.f32 %v1391, %v1396
        %v1399 = vmax.f32 %v1398, 0.0
        %v1400 = vld [vmem:[%s7] sm:$0xff]
        %v1401 = vld [vmem:[%s7 + $0x8] sm:$0xff]
        %v1402 = vld [vmem:[%s7 + $0x10] sm:$0xff]
        %v1403 = vld [vmem:[%s7 + $0x18] sm:$0xff]
        %v1404 = vld [vmem:[%s8] sm:$0x1]
        %v1406 = vlaneseq
        %v1407 = vshrl.u32 %v1406, 7
        %v1408 = vsub.s32 0, %v1407
        %v1409 = vrot.slane %v1404, %v1408
        %v1412 = vsel %vm506, %v1399, 0
        %1414 = vmatprep.subr.mxu0 0.0
        %1415 = vmatpush1.msra.mxu0 0.0
        %1416 = vmatprep.subr.mxu0 0.0
        %1417 = vmatpush1.msra.mxu0 0.0
        %1418 = vmatprep.subr.mxu0 0.0
        %1419 = vmatpush1.msra.mxu0 0.0
        %1420 = vmatprep.subr.mxu0 0.0
        %1421 = vmatpush1.msra.mxu0 0.0
        %1422 = vmatprep.subr.mxu0 0.0
        %1423 = vmatpush1.msra.mxu0 0.0
        %1424 = vmatprep.subr.mxu0 0.0
        %1425 = vmatpush1.msra.mxu0 0.0
        %1426 = vmatprep.subr.mxu0 0.0
        %1427 = vmatpush1.msra.mxu0 0.0
        %1428 = vmatprep.subr.mxu0 0.0
        %1429 = vmatpush1.msra.mxu0 0.0
        %1430 = vmatprep.subr.mxu0 0.0
        %1431 = vmatpush1.msra.mxu0 0.0
        %1432 = vmatprep.subr.mxu0 0.0
        %1433 = vmatpush1.msra.mxu0 0.0
        %1434 = vmatprep.subr.mxu0 0.0
        %1435 = vmatpush1.msra.mxu0 0.0
        %1436 = vmatprep.subr.mxu0 0.0
        %1437 = vmatpush1.msra.mxu0 0.0
        %1438 = vmatprep.subr.mxu0 0.0
        %1439 = vmatpush1.msra.mxu0 %v1403
        %1440 = vmatprep.subr.mxu0 0.0
        %1441 = vmatpush1.msra.mxu0 %v1402
        %1442 = vmatprep.subr.mxu0 0.0
        %1443 = vmatpush1.msra.mxu0 %v1401
        %1444 = vmatprep.subr.mxu0 0.0
        %1445 = vmatpush1.msra.mxu0 %v1400
        %1446 = vmatprep.subr.mxu0 0.0
        %1447 = vmatpush2.msra.mxu0 0.0
        %1448 = vmatprep.subr.mxu0 0.0
        %1449 = vmatpush2.msra.mxu0 0.0
        %1450 = vmatprep.subr.mxu0 0.0
        %1451 = vmatpush2.msra.mxu0 0.0
        %1452 = vmatprep.subr.mxu0 0.0
        %1453 = vmatpush2.msra.mxu0 0.0
        %1454 = vmatprep.subr.mxu0 0.0
        %1455 = vmatpush2.msra.mxu0 0.0
        %1456 = vmatprep.subr.mxu0 0.0
        %1457 = vmatpush2.msra.mxu0 0.0
        %1458 = vmatprep.subr.mxu0 0.0
        %1459 = vmatpush2.msra.mxu0 0.0
        %1460 = vmatprep.subr.mxu0 0.0
        %1461 = vmatpush2.msra.mxu0 0.0
        %1462 = vmatprep.subr.mxu0 0.0
        %1463 = vmatpush2.msra.mxu0 0.0
        %1464 = vmatprep.subr.mxu0 0.0
        %1465 = vmatpush2.msra.mxu0 0.0
        %1466 = vmatprep.subr.mxu0 0.0
        %1467 = vmatpush2.msra.mxu0 0.0
        %1468 = vmatprep.subr.mxu0 0.0
        %1469 = vmatpush2.msra.mxu0 0.0
        %1470 = vmatprep.subr.mxu0 0.0
        %1471 = vmatpush2.msra.mxu0 0.0
        %1472 = vmatprep.subr.mxu0 0.0
        %1473 = vmatpush2.msra.mxu0 0.0
        %1474 = vmatprep.subr.mxu0 0.0
        %1475 = vmatpush2.msra.mxu0 0.0
        %1476 = vmatprep.subr.mxu0 0.0
        %1477 = vmatpush2.msra.mxu0 0.0
        %1478 = vmatprep.mubr.f32.mxu0 0.0
        %1479 = vmatmul.mubr.f32.gmra.mxu0 %v1412
        %v1480 = vpop.f32.mrf.mxu0
        %v1481 = vadd.f32 %v1409, %v1480
        %v1482 = vpop.f32.mrf.mxu0
        %1483 = vdwg.mxu0
        %v1484 = vmax.f32 %v1481, 0.0
        %v1485 = vld [vmem:[%s9] sm:$0xff]
        %v1486 = vld [vmem:[%s9 + $0x8] sm:$0xff]
        %v1487 = vld [vmem:[%s9 + $0x10] sm:$0xff]
        %v1488 = vld [vmem:[%s9 + $0x18] sm:$0xff]
        %v1489 = vld [vmem:[%s9 + $0x20] sm:$0xff]
        %v1490 = vld [vmem:[%s9 + $0x28] sm:$0xff]
        %v1491 = vld [vmem:[%s9 + $0x30] sm:$0xff]
        %v1492 = vld [vmem:[%s9 + $0x38] sm:$0xff]
        %v1493 = vld [vmem:[%s10] sm:$0x1]
        %v1495 = vlaneseq
        %v1496 = vshrl.u32 %v1495, 7
        %v1497 = vsub.s32 0, %v1496
        %v1498 = vrot.slane %v1493, %v1497
        %vm1500 = vcmask 523264
        %v1502 = vsel %vm1500, %v1484, 0
        %1504 = vmatprep.subr.mxu0 0.0
        %1505 = vmatpush1.msra.mxu0 0.0
        %1506 = vmatprep.subr.mxu0 0.0
        %1507 = vmatpush1.msra.mxu0 0.0
        %1508 = vmatprep.subr.mxu0 0.0
        %1509 = vmatpush1.msra.mxu0 0.0
        %1510 = vmatprep.subr.mxu0 0.0
        %1511 = vmatpush1.msra.mxu0 0.0
        %1512 = vmatprep.subr.mxu0 0.0
        %1513 = vmatpush1.msra.mxu0 0.0
        %1514 = vmatprep.subr.mxu0 0.0
        %1515 = vmatpush1.msra.mxu0 0.0
        %1516 = vmatprep.subr.mxu0 0.0
        %1517 = vmatpush1.msra.mxu0 0.0
        %1518 = vmatprep.subr.mxu0 0.0
        %1519 = vmatpush1.msra.mxu0 0.0
        %1520 = vmatprep.subr.mxu0 0.0
        %1521 = vmatpush1.msra.mxu0 %v1492
        %1522 = vmatprep.subr.mxu0 0.0
        %1523 = vmatpush1.msra.mxu0 %v1491
        %1524 = vmatprep.subr.mxu0 0.0
        %1525 = vmatpush1.msra.mxu0 %v1490
        %1526 = vmatprep.subr.mxu0 0.0
        %1527 = vmatpush1.msra.mxu0 %v1489
        %1528 = vmatprep.subr.mxu0 0.0
        %1529 = vmatpush1.msra.mxu0 %v1488
        %1530 = vmatprep.subr.mxu0 0.0
        %1531 = vmatpush1.msra.mxu0 %v1487
        %1532 = vmatprep.subr.mxu0 0.0
        %1533 = vmatpush1.msra.mxu0 %v1486
        %1534 = vmatprep.subr.mxu0 0.0
        %1535 = vmatpush1.msra.mxu0 %v1485
        %1536 = vmatprep.subr.mxu0 0.0
        %1537 = vmatpush2.msra.mxu0 0.0
        %1538 = vmatprep.subr.mxu0 0.0
        %1539 = vmatpush2.msra.mxu0 0.0
        %1540 = vmatprep.subr.mxu0 0.0
        %1541 = vmatpush2.msra.mxu0 0.0
        %1542 = vmatprep.subr.mxu0 0.0
        %1543 = vmatpush2.msra.mxu0 0.0
        %1544 = vmatprep.subr.mxu0 0.0
        %1545 = vmatpush2.msra.mxu0 0.0
        %1546 = vmatprep.subr.mxu0 0.0
        %1547 = vmatpush2.msra.mxu0 0.0
        %1548 = vmatprep.subr.mxu0 0.0
        %1549 = vmatpush2.msra.mxu0 0.0
        %1550 = vmatprep.subr.mxu0 0.0
        %1551 = vmatpush2.msra.mxu0 0.0
        %1552 = vmatprep.subr.mxu0 0.0
        %1553 = vmatpush2.msra.mxu0 0.0
        %1554 = vmatprep.subr.mxu0 0.0
        %1555 = vmatpush2.msra.mxu0 0.0
        %1556 = vmatprep.subr.mxu0 0.0
        %1557 = vmatpush2.msra.mxu0 0.0
        %1558 = vmatprep.subr.mxu0 0.0
        %1559 = vmatpush2.msra.mxu0 0.0
        %1560 = vmatprep.subr.mxu0 0.0
        %1561 = vmatpush2.msra.mxu0 0.0
        %1562 = vmatprep.subr.mxu0 0.0
        %1563 = vmatpush2.msra.mxu0 0.0
        %1564 = vmatprep.subr.mxu0 0.0
        %1565 = vmatpush2.msra.mxu0 0.0
        %1566 = vmatprep.subr.mxu0 0.0
        %1567 = vmatpush2.msra.mxu0 0.0
        %1568 = vmatprep.mubr.f32.mxu0 0.0
        %1569 = vmatmul.mubr.f32.gmra.mxu0 %v1502
        %v1570 = vpop.f32.mrf.mxu0
        %v1571 = vadd.f32 %v1498, %v1570
        %v1572 = vpop.f32.mrf.mxu0
        %1573 = vdwg.mxu0
        %v1574 = vadd.f32 %v1571, %v1398
        %v1575 = vld [vmem:[%s11] sm:$0x1]
        %v1576 = vld [vmem:[%s12] sm:$0x1]
        %v1577 = vsel %vm506, %v1574, 0.0
        %1578 = vadd.xlane.f32.xlu0 %v1577
        %v1579 = vpop.xlane.xlu0 %1578
        %v1580 = vmul.f32 %v1579, %v1374
        %v1581 = vsub.f32 %v1574, %v1580
        %v1582 = vmul.f32 %v1581, %v1581
        %v1583 = vsel %vm506, %v1582, 0.0
        %1584 = vadd.xlane.f32.xlu0 %v1583
        %v1585 = vpop.xlane.xlu0 %1584
        %v1586 = vmul.f32 %v1585, %v1374
        %v1587 = vadd.f32 %v1586, 1e-08
        %v1588 = vrsqrt.pop %v1587
        %v1589 = vmul.f32 %v1581, %v1588
        %v1591 = vlaneseq
        %v1592 = vshrl.u32 %v1591, 7
        %v1593 = vsub.s32 0, %v1592
        %v1594 = vrot.slane %v1575, %v1593
        %v1596 = vmul.f32 %v1594, %v1589
        %v1598 = vlaneseq
        %v1599 = vshrl.u32 %v1598, 7
        %v1600 = vsub.s32 0, %v1599
        %v1601 = vrot.slane %v1576, %v1600
        %v1603 = vadd.f32 %v1596, %v1601
        %1604 = vst.msk [vmem:[%s486] sm:$0xff] %vm506, %v1603
        %s1605 = sand.u32 %s321, 1
        %s1606 = scalar_lea.sflag [#allocation6], %s1605
        %s1607 = sand.u32 %s321, 1
        %s1608 = smul.addr %s1607, 8
        %s1609 = scalar_lea.vmem [#allocation7], %s1608
        %s1610 = sand.u32 %s347, 1
        %s1611 = scalar_lea.sflag [#allocation9], %s1610
        %s1612 = sand.u32 %s347, 1
        %s1613 = smul.addr %s1612, 8
        %s1614 = scalar_lea.vmem [#allocation8], %s1613
        // Predicated region
        $region77: #{tpu_custom_call.1} parent=71 // pred_check
          %p1615 = pneg %p331
        $region78: #{tpu_custom_call.1} parent=71 // pred_check_branch
          %1617 = sbr.rel (%p1615) target = $region80
        $region79: #{tpu_custom_call.1} parent=71 // pred_region
          %s1619 = ssub.s32 128, 128
          %1620 = vsyncadd %s1606, %s1619
          %s1621 = smul.addr %s35, 128
          %s1622 = scalar_lea.hbm %s13, %s1621
          %s1624 = sshll.u32 %s1609, 4
          %s1625 = int_to_ptr.vmem [resolvable:$true] %s1624
          %1627 = dma.vmem_to_hbm [thread:$0]  %s1625, 128, %s1622, %s1606
        $region80: #{tpu_custom_call.1} parent=71 // pred_fallthru
          _
        // Predicated region
        $region81: #{tpu_custom_call.1} parent=71 // pred_check
          %p1628 = pneg %p357
        $region82: #{tpu_custom_call.1} parent=71 // pred_check_branch
          %1630 = sbr.rel (%p1628) target = $region84
        $region83: #{tpu_custom_call.1} parent=71 // pred_region
          %s1632 = ssub.s32 128, 128
          %1633 = vsyncadd %s1611, %s1632
          %s1634 = smul.addr %s35, 128
          %s1635 = scalar_lea.hbm %s14, %s1634
          %s1637 = sshll.u32 %s1614, 4
          %s1638 = int_to_ptr.vmem [resolvable:$true] %s1637
          %1640 = dma.vmem_to_hbm [thread:$0]  %s1638, 128, %s1635, %s1611
        $region84: #{tpu_custom_call.1} parent=71 // pred_fallthru
          _
      $region72: #{tpu_custom_call.1} parent=5 // pred_fallthru
        _
      %p1641 = scmp.le.s32.totalorder 2, %s30
      // Predicated region
      $region85: #{tpu_custom_call.1} parent=5 // pred_check
        %p1642 = pneg %p1641
      $region86: #{tpu_custom_call.1} parent=5 // pred_check_branch
        %1644 = sbr.rel (%p1642) target = $region88
      $region87: #{tpu_custom_call.1} parent=5 // pred_region
        %s1645 = ssub.s32 %s30, 2
        // Predicated region
        $region89: #{tpu_custom_call.1} parent=87 // pred_check
          %p1646 = pneg %p337
        $region90: #{tpu_custom_call.1} parent=87 // pred_check_branch
          %1648 = sbr.rel (%p1646) target = $region92
        $region91: #{tpu_custom_call.1} parent=87 // pred_region
          %s1649 = sand.u32 %s322, 1
          %s1650 = scalar_lea.sflag [#allocation6], %s1649
          %s1651 = sand.u32 %s322, 1
          %s1652 = smul.addr %s1651, 8
          %s1653 = scalar_lea.vmem [#allocation7], %s1652
          %1654 = dma.done %s1650, 128
        $region92: #{tpu_custom_call.1} parent=87 // pred_fallthru
          _
        // Predicated region
        $region93: #{tpu_custom_call.1} parent=87 // pred_check
          %p1655 = pneg %p363
        $region94: #{tpu_custom_call.1} parent=87 // pred_check_branch
          %1657 = sbr.rel (%p1655) target = $region96
        $region95: #{tpu_custom_call.1} parent=87 // pred_region
          %s1658 = sand.u32 %s348, 1
          %s1659 = scalar_lea.sflag [#allocation9], %s1658
          %s1660 = sand.u32 %s348, 1
          %s1661 = smul.addr %s1660, 8
          %s1662 = scalar_lea.vmem [#allocation8], %s1661
          %1663 = dma.done %s1659, 128
        $region96: #{tpu_custom_call.1} parent=87 // pred_fallthru
          _
      $region88: #{tpu_custom_call.1} parent=5 // pred_fallthru
        _
    $region6: #{tpu_custom_call.1} parent=1 // loop_footer
      %s34 = sadd.s32 1, %s30
    $region7: #{tpu_custom_call.1} parent=1 // loop_footer_branch
      %29 = sbr.rel target = $region3
    $region8: #{tpu_custom_call.1} parent=1 // loop_exit
      _
    %1664 = vsyncpa [#allocation5], 1
    %s1665 = scalar_lea.sflag [#allocation5], 1
    %1666 = vsyncpa %s1665, 1
    %1667 = vsyncpa [#allocation6], 1
    %s1668 = scalar_lea.sflag [#allocation6], 1
    %1669 = vsyncpa %s1668, 1
    %1670 = vsyncpa [#allocation9], 1
    %s1671 = scalar_lea.sflag [#allocation9], 1
    %1672 = vsyncpa %s1671, 1

</llo_original>
